<compile_context>
chip_gen: v5e
topology: v5e:2x2
jax: 0.10.0
libtpu: 0.0.40
codegen_flags: <defaults>
</compile_context>

<pallas_src>
import functools
import math

import jax
import jax.numpy as jnp
from jax import lax
from jax.experimental import pallas as pl
from jax.experimental.pallas import tpu as pltpu

F32 = jnp.float32
LN_EPS = 1e-5                       # PyTorch LayerNorm default
_VMEM_LIMIT = 48 * 1024 * 1024      # < 64 MiB (v7x physical), > 32 MiB default scoped


def _cparams(n_parallel):
    return pltpu.CompilerParams(
        dimension_semantics=("parallel",) * n_parallel,
        vmem_limit_bytes=_VMEM_LIMIT)


# ----------------------------- in-kernel helpers -----------------------------

def _layernorm(y, g, b, eps):
    mean = jnp.mean(y, axis=-1, keepdims=True)
    var = jnp.mean((y - mean) ** 2, axis=-1, keepdims=True)
    return (y - mean) * lax.rsqrt(var + eps) * g + b


def _softmax_rows(s):
    s = s - jnp.max(s, axis=-1, keepdims=True)
    p = jnp.exp(s)
    return p * pl.reciprocal(jnp.sum(p, axis=-1, keepdims=True), approx=True)


def _mha_heads(q_fn, k_fn, v_fn, wo_h_ref, num_heads, scale):
    """Per-head attention with the head-merge folded into the out projection.

    q_fn/k_fn/v_fn(h) -> (Lq, Dh)/(Lk, Dh)/(Lk, Dh); wo_h_ref: (H, Dh, E).
    concat_h(o_h) @ wo == sum_h o_h @ wo_h[h]; only leading-axis head indexing.
    """
    acc = None
    for h in range(num_heads):
        qh, kh, vh = q_fn(h), k_fn(h), v_fn(h)
        # trans_b matmul: contract last dims, no materialized transpose.
        s = lax.dot_general(qh, kh, (((1,), (1,)), ((), ())),
                            preferred_element_type=F32) * scale       # (Lq, Lk)
        p = _softmax_rows(s)
        oh = jnp.dot(p, vh, preferred_element_type=F32)               # (Lq, Dh)
        c = jnp.dot(oh, wo_h_ref[h], preferred_element_type=F32)      # (Lq, E)
        acc = c if acc is None else acc + c
    return acc


# ----------------------------- Pallas kernels -----------------------------

def _row_linear_kernel(x_ref, w_ref, b_ref, o_ref):
    # x_ref: (TM, K); w_ref: (K, N); b_ref: (1, N); o_ref: (TM, N)
    o_ref[...] = jnp.dot(x_ref[...], w_ref[...],
                         preferred_element_type=F32) + b_ref[...]


def _encoder_layer_kernel(x_ref, wq_ref, bq_ref, wk_ref, bk_ref, wv_ref, bv_ref,
                          wo_ref, bo_ref, ln1g_ref, ln1b_ref,
                          ff1w_ref, ff1b_ref, ff2w_ref, ff2b_ref,
                          ln2g_ref, ln2b_ref, o_ref, *, num_heads, eps):
    """Full nn.TransformerEncoderLayer (post-norm, ReLU, dropout=id), one batch."""
    x = x_ref[0]                                     # (S, E)
    E = x.shape[-1]
    scale = 1.0 / math.sqrt(E // num_heads)

    def proj(w_ref, b_ref, h):
        # per-head projection: leading-axis weight index, no activation slicing
        return jnp.dot(x, w_ref[h], preferred_element_type=F32) + b_ref[h]

    attn = _mha_heads(lambda h: proj(wq_ref, bq_ref, h),
                      lambda h: proj(wk_ref, bk_ref, h),
                      lambda h: proj(wv_ref, bv_ref, h),
                      wo_ref, num_heads, scale) + bo_ref[...]

    x1 = _layernorm(x + attn, ln1g_ref[...], ln1b_ref[...], eps)

    hmid = jnp.maximum(
        jnp.dot(x1, ff1w_ref[...], preferred_element_type=F32) + ff1b_ref[...], 0.0)
    ff = jnp.dot(hmid, ff2w_ref[...], preferred_element_type=F32) + ff2b_ref[...]

    o_ref[0] = _layernorm(x1 + ff, ln2g_ref[...], ln2b_ref[...], eps)


def _cross_attention_kernel(x_ref, k_ref, v_ref, wq_ref, bq_ref, wo_ref, bo_ref,
                            o_ref, *, num_heads):
    """Cross attention on a flat row tile of queries vs shared, pre-split K/V."""
    x = x_ref[...]                                   # (TM, E)
    E = x.shape[-1]
    scale = 1.0 / math.sqrt(E // num_heads)

    attn = _mha_heads(
        lambda h: jnp.dot(x, wq_ref[h], preferred_element_type=F32) + bq_ref[h],
        lambda h: k_ref[h],                          # (V, Dh), shared across rows
        lambda h: v_ref[h],
        wo_ref, num_heads, scale)
    o_ref[...] = attn + bo_ref[...]


# ----------------------------- Pallas wrappers -----------------------------

def flat_linear(x2d, w, b2d, *, tm=256):
    """(M, K) @ (K, N) + b, row-tiled, grid over row tiles ("parallel")."""
    M, K = x2d.shape
    N = w.shape[1]
    TM = min(tm, M)
    return pl.pallas_call(
        _row_linear_kernel,
        out_shape=jax.ShapeDtypeStruct((M, N), F32),
        grid=(pl.cdiv(M, TM),),
        in_specs=[
            pl.BlockSpec((TM, K), lambda i: (i, 0)),
            pl.BlockSpec((K, N), lambda i: (0, 0)),
            pl.BlockSpec((1, N), lambda i: (0, 0)),
        ],
        out_specs=pl.BlockSpec((TM, N), lambda i: (i, 0)),
        compiler_params=_cparams(1),
    )(x2d, w, b2d)


def transformer_encoder_layer(h, lp, num_heads, eps=LN_EPS):
    """One fused pallas_call for the whole encoder layer, grid over batch."""
    B, S, E = h.shape
    H = num_heads
    Dh = E // H
    a = lp["attn"]
    FF = lp["ff1_w"].shape[1]

    def w3(shape):
        return pl.BlockSpec(shape, lambda i: (0, 0, 0))

    def w2(shape):
        return pl.BlockSpec(shape, lambda i: (0, 0))

    kernel = functools.partial(_encoder_layer_kernel, num_heads=H, eps=eps)
    return pl.pallas_call(
        kernel,
        out_shape=jax.ShapeDtypeStruct((B, S, E), F32),
        grid=(B,),
        in_specs=[
            pl.BlockSpec((1, S, E), lambda i: (i, 0, 0)),   # x (per batch)
            w3((H, E, Dh)),   # wq_h
            w3((H, 1, Dh)),   # bq_h
            w3((H, E, Dh)),   # wk_h
            w3((H, 1, Dh)),   # bk_h
            w3((H, E, Dh)),   # wv_h
            w3((H, 1, Dh)),   # bv_h
            w3((H, Dh, E)),   # wo_h
            w2((1, E)),       # bo
            w2((1, E)),       # ln1 gamma
            w2((1, E)),       # ln1 beta
            w2((E, FF)),      # ff1 w
            w2((1, FF)),      # ff1 b
            w2((FF, E)),      # ff2 w
            w2((1, E)),       # ff2 b
            w2((1, E)),       # ln2 gamma
            w2((1, E)),       # ln2 beta
        ],
        out_specs=pl.BlockSpec((1, S, E), lambda i: (i, 0, 0)),
        compiler_params=_cparams(1),
    )(h, a["wq_h"], a["bq_h"], a["wk_h"], a["bk_h"], a["wv_h"], a["bv_h"],
      a["wo_h"], a["bo"], lp["ln1_g"], lp["ln1_b"], lp["ff1_w"], lp["ff1_b"],
      lp["ff2_w"], lp["ff2_b"], lp["ln2_g"], lp["ln2_b"])


def cross_attention(h, k_h, v_h, cp, num_heads, *, tm=256):
    """Cross attention flattened over B*S query rows; K/V broadcast to all tiles."""
    B, S, E = h.shape
    H = num_heads
    Dh = E // H
    V = k_h.shape[1]
    M = B * S
    TM = min(tm, M)

    kernel = functools.partial(_cross_attention_kernel, num_heads=H)
    out = pl.pallas_call(
        kernel,
        out_shape=jax.ShapeDtypeStruct((M, E), F32),
        grid=(pl.cdiv(M, TM),),
        in_specs=[
            pl.BlockSpec((TM, E), lambda i: (i, 0)),        # query rows (tiled)
            pl.BlockSpec((H, V, Dh), lambda i: (0, 0, 0)),  # shared K heads
            pl.BlockSpec((H, V, Dh), lambda i: (0, 0, 0)),  # shared V heads
            pl.BlockSpec((H, E, Dh), lambda i: (0, 0, 0)),  # wq per head
            pl.BlockSpec((H, 1, Dh), lambda i: (0, 0, 0)),  # bq per head
            pl.BlockSpec((H, Dh, E), lambda i: (0, 0, 0)),  # wo per head
            pl.BlockSpec((1, E), lambda i: (0, 0)),         # bo
        ],
        out_specs=pl.BlockSpec((TM, E), lambda i: (i, 0)),
        compiler_params=_cparams(1),
    )(h.reshape(M, E), k_h, v_h, cp["wq_h"], cp["bq_h"], cp["wo_h"], cp["bo"])
    return out.reshape(B, S, E)


# ----------------------------- parameter preprocessing -----------------------------

def _split_heads_w(w, H):
    E, O = w.shape
    Dh = O // H
    return jnp.transpose(w.reshape(E, H, Dh), (1, 0, 2))    # (H, E, Dh)


def _split_heads_b(b, H):
    Dh = b.shape[0] // H
    return b.reshape(H, 1, Dh)


def preprocess_params(params, num_heads):
    """One-time weight layout prep (head split, bias reshape, KV weight concat)."""
    H = num_heads

    def prep_attn(a):
        E = a["wo"].shape[0]
        Dh = E // H
        return dict(
            wq_h=_split_heads_w(a["wq"], H), bq_h=_split_heads_b(a["bq"], H),
            wk_h=_split_heads_w(a["wk"], H), bk_h=_split_heads_b(a["bk"], H),
            wv_h=_split_heads_w(a["wv"], H), bv_h=_split_heads_b(a["bv"], H),
            wo_h=a["wo"].reshape(H, Dh, E), bo=a["bo"].reshape(1, E),
        )

    layers = []
    for lp in params["encoder_layers"]:
        E = lp["ln1_g"].shape[0]
        FF = lp["ff1_w"].shape[1]
        layers.append(dict(
            attn=prep_attn(lp["self_attn"]),
            ln1_g=lp["ln1_g"].reshape(1, E), ln1_b=lp["ln1_b"].reshape(1, E),
            ff1_w=lp["ff1_w"], ff1_b=lp["ff1_b"].reshape(1, FF),
            ff2_w=lp["ff2_w"], ff2_b=lp["ff2_b"].reshape(1, E),
            ln2_g=lp["ln2_g"].reshape(1, E), ln2_b=lp["ln2_b"].reshape(1, E),
        ))

    ca = params["cross_attn"]
    E = ca["wo"].shape[0]
    Dh = E // H
    cross = dict(
        wq_h=_split_heads_w(ca["wq"], H), bq_h=_split_heads_b(ca["bq"], H),
        wo_h=ca["wo"].reshape(H, Dh, E), bo=ca["bo"].reshape(1, E),
        wkv=jnp.concatenate([ca["wk"], ca["wv"]], axis=1),          # (E, 2E)
        bkv=jnp.concatenate([ca["bk"], ca["bv"]]).reshape(1, 2 * E),
    )

    return dict(
        lin_w=params["lin_w"],
        lin_b=params["lin_b"].reshape(1, -1),
        layers=layers,
        cross=cross,
        word_embedding_T=params["word_embedding"].T,                # (V, E)
    )


# ----------------------------- Model forward -----------------------------

def encoder_pca_forward(x, prep, num_heads):
    """Forward of Encoder_PCA.  x: (B, S, input_dim) -> (x_time, x_cross)."""
    B, S, _ = x.shape
    E = prep["lin_w"].shape[1]
    H = num_heads
    Dh = E // H

    # Input linear, flattened over B*S rows.
    h = flat_linear(x.reshape(B * S, -1), prep["lin_w"], prep["lin_b"])
    h = h.reshape(B, S, E)

    for lp in prep["layers"]:
        h = transformer_encoder_layer(h, lp, num_heads)
    x_time = h

    # Shared K/V projection of the word embedding: computed ONCE per forward.
    cp = prep["cross"]
    kv = flat_linear(prep["word_embedding_T"], cp["wkv"], cp["bkv"])   # (V, 2E)
    V = kv.shape[0]
    kvh = kv.reshape(V, 2, H, Dh)
    k_h = jnp.transpose(kvh[:, 0], (1, 0, 2))                          # (H, V, Dh)
    v_h = jnp.transpose(kvh[:, 1], (1, 0, 2))                          # (H, V, Dh)

    x_cross = cross_attention(h, k_h, v_h, cp, num_heads)
    return x_time, x_cross


# ----------------------------- pure-JAX reference -----------------------------

def _reference_forward(x, params, num_heads):
    def ln(t, g, b, eps=LN_EPS):
        m = t.mean(-1, keepdims=True)
        v = ((t - m) ** 2).mean(-1, keepdims=True)
        return (t - m) / jnp.sqrt(v + eps) * g + b

    def mha(q, k, v, p):
        B, Lq, E = q.shape
        Lk = k.shape[1]
        Dh = E // num_heads
        qq = (q @ p["wq"] + p["bq"]).reshape(B, Lq, num_heads, Dh).transpose(0, 2, 1, 3)
        kk = (k @ p["wk"] + p["bk"]).reshape(B, Lk, num_heads, Dh).transpose(0, 2, 1, 3)
        vv = (v @ p["wv"] + p["bv"]).reshape(B, Lk, num_heads, Dh).transpose(0, 2, 1, 3)
        s = jnp.einsum("bhqd,bhkd->bhqk", qq, kk) / math.sqrt(Dh)
        a = jax.nn.softmax(s, axis=-1)
        o = jnp.einsum("bhqk,bhkd->bhqd", a, vv).transpose(0, 2, 1, 3).reshape(B, Lq, E)
        return o @ p["wo"] + p["bo"]

    h = x @ params["lin_w"] + params["lin_b"]
    for lp in params["encoder_layers"]:
        a = mha(h, h, h, lp["self_attn"])
        h1 = ln(h + a, lp["ln1_g"], lp["ln1_b"])
        f = jnp.maximum(h1 @ lp["ff1_w"] + lp["ff1_b"], 0.0) @ lp["ff2_w"] + lp["ff2_b"]
        h = ln(h1 + f, lp["ln2_g"], lp["ln2_b"])
    wm = params["word_embedding"].T
    wm_b = jnp.broadcast_to(wm[None], (x.shape[0],) + wm.shape)
    return h, mha(h, wm_b, wm_b, params["cross_attn"])


# ----------------------------- Parameter init -----------------------------

def init_params(key, input_dim, hidden_dim, num_heads, num_layers, vocab, ff_dim):
    keys = iter(jax.random.split(key, 128))

    def dense(shape, scale=0.02):
        return (scale * jax.random.normal(next(keys), shape)).astype(F32)

    def attn_params():
        return dict(
            wq=dense((hidden_dim, hidden_dim)), bq=jnp.zeros((hidden_dim,), F32),
            wk=dense((hidden_dim, hidden_dim)), bk=jnp.zeros((hidden_dim,), F32),
            wv=dense((hidden_dim, hidden_dim)), bv=jnp.zeros((hidden_dim,), F32),
            wo=dense((hidden_dim, hidden_dim)), bo=jnp.zeros((hidden_dim,), F32),
        )

    def layer_params():
        return dict(
            self_attn=attn_params(),
            ln1_g=jnp.ones((hidden_dim,), F32), ln1_b=jnp.zeros((hidden_dim,), F32),
            ff1_w=dense((hidden_dim, ff_dim)), ff1_b=jnp.zeros((ff_dim,), F32),
            ff2_w=dense((ff_dim, hidden_dim)), ff2_b=jnp.zeros((hidden_dim,), F32),
            ln2_g=jnp.ones((hidden_dim,), F32), ln2_b=jnp.zeros((hidden_dim,), F32),
        )

    return dict(
        lin_w=dense((input_dim, hidden_dim)),
        lin_b=jnp.zeros((hidden_dim,), F32),
        encoder_layers=[layer_params() for _ in range(num_layers)],
        cross_attn=attn_params(),
        # word_embedding handed to __init__ is (hidden_dim, vocab); module stores its .T
        word_embedding=dense((hidden_dim, vocab)),
    )


# ----------------------------- Main -----------------------------

if __name__ == "__main__":
    B, S, input_dim = 2, 8, 16
    hidden_dim, num_heads, num_layers = 32, 4, 1
    vocab = 16
    ff_dim = 2048  # nn.TransformerEncoderLayer default dim_feedforward

    key = jax.random.PRNGKey(0)
    kp, kx = jax.random.split(key)
    params = init_params(kp, input_dim, hidden_dim, num_heads, num_layers, vocab, ff_dim)
    x = jax.random.normal(kx, (B, S, input_dim), dtype=F32)

    # One-time parameter preprocessing (hoisted weight concat / head split).
    prep = preprocess_params(params, num_heads)
    jax.block_until_ready(prep)

    fwd = jax.jit(functools.partial(encoder_pca_forward, num_heads=num_heads))
    x_time, x_cross = fwd(x, prep)
    jax.block_until_ready((x_time, x_cross))

    with jax.default_matmul_precision("highest"):
        ref_time, ref_cross = jax.jit(
            functools.partial(_reference_forward, num_heads=num_heads))(x, params)
    jax.block_until_ready((ref_time, ref_cross))

    assert x_time.shape == (B, S, hidden_dim), x_time.shape
    assert x_cross.shape == (B, S, hidden_dim), x_cross.shape
    assert x_time.dtype == F32 and x_cross.dtype == F32
    assert bool(jnp.all(jnp.isfinite(x_time))) and bool(jnp.all(jnp.isfinite(x_cross)))
    # Tolerance 2e-3: kernel matmuls use default MXU precision and the softmax
    # denominator uses the approximate EUP reciprocal; reference runs at "highest".
    assert bool(jnp.allclose(x_time, ref_time, atol=2e-3, rtol=2e-3))
    assert bool(jnp.allclose(x_cross, ref_cross, atol=2e-3, rtol=2e-3))

    print("KERNEL_OK")
</pallas_src>

<mosaic_0001>
module attributes {stable_mosaic.version = 11 : i64} {
  func.func @_row_linear_kernel(%arg0: i32, %arg1: memref<16x16xf32, #tpu.memory_space<vmem>>, %arg2: memref<16x32xf32, #tpu.memory_space<vmem>>, %arg3: memref<1x32xf32, #tpu.memory_space<vmem>>, %arg4: memref<16x32xf32, #tpu.memory_space<vmem>>) attributes {dimension_semantics = [#tpu.dimension_semantics<parallel>], iteration_bounds = array<i64: 1>, scalar_prefetch = 0 : i64, scratch_operands = 0 : i64, tpu.core_type = #tpu.core_type<tc>, window_params = [{transform_indices = @transform_0, window_bounds = array<i64: 16, 16>}, {pipeline_mode = #tpu.pipeline_mode<synchronous>, transform_indices = @transform_1, window_bounds = array<i64: 16, 32>}, {pipeline_mode = #tpu.pipeline_mode<synchronous>, transform_indices = @transform_2, window_bounds = array<i64: 1, 32>}, {transform_indices = @transform_3, window_bounds = array<i64: 16, 32>}]} {
    %c0 = arith.constant 0 : index
    %c0_0 = arith.constant 0 : index
    %0 = vector.load %arg1[%c0, %c0_0] : memref<16x16xf32, #tpu.memory_space<vmem>>, vector<16x16xf32>
    %c0_1 = arith.constant 0 : index
    %c0_2 = arith.constant 0 : index
    %1 = vector.load %arg2[%c0_1, %c0_2] : memref<16x32xf32, #tpu.memory_space<vmem>>, vector<16x32xf32>
    %cst = arith.constant dense<0.000000e+00> : vector<16x32xf32>
    %2 = tpu.matmul %0, %1, %cst {dimension_numbers = #tpu.dot_dimension_numbers<[1], [0], [0], [1], [0, 0, 1, 1], [], []>} : vector<16x16xf32>, vector<16x32xf32>, vector<16x32xf32> -> vector<16x32xf32>
    %c0_3 = arith.constant 0 : index
    %c0_4 = arith.constant 0 : index
    %3 = vector.load %arg3[%c0_3, %c0_4] : memref<1x32xf32, #tpu.memory_space<vmem>>, vector<1x32xf32>
    %4 = vector.broadcast %3 : vector<1x32xf32> to vector<16x32xf32>
    %5 = arith.addf %2, %4 : vector<16x32xf32>
    %c0_5 = arith.constant 0 : index
    %c0_6 = arith.constant 0 : index
    %6 = vector.load %arg4[%c0_5, %c0_6] : memref<16x32xf32, #tpu.memory_space<vmem>>, vector<16x32xf32>
    tpu.vector_store %arg4[%c0_5, %c0_6], %5 {strides = array<i32>} : memref<16x32xf32, #tpu.memory_space<vmem>>, vector<16x32xf32>,
    return
  }
  func.func @transform_0(%arg0: i32) -> (i32, i32) {
    %c0_i32 = arith.constant 0 : i32
    %c0_i32_0 = arith.constant 0 : i32
    return %arg0, %c0_i32 : i32, i32
  }
  func.func @transform_1(%arg0: i32) -> (i32, i32) {
    %c0_i32 = arith.constant 0 : i32
    %c0_i32_0 = arith.constant 0 : i32
    %c0_i32_1 = arith.constant 0 : i32
    return %c0_i32, %c0_i32_0 : i32, i32
  }
  func.func @transform_2(%arg0: i32) -> (i32, i32) {
    %c0_i32 = arith.constant 0 : i32
    %c0_i32_0 = arith.constant 0 : i32
    %c0_i32_1 = arith.constant 0 : i32
    return %c0_i32, %c0_i32_0 : i32, i32
  }
  func.func @transform_3(%arg0: i32) -> (i32, i32) {
    %c0_i32 = arith.constant 0 : i32
    %c0_i32_0 = arith.constant 0 : i32
    return %arg0, %c0_i32 : i32, i32
  }
}

module attributes {stable_mosaic.version = 11 : i64} {
  func.func @_encoder_layer_kernel(%arg0: i32, %arg1: memref<1x8x32xf32, #tpu.memory_space<vmem>>, %arg2: memref<4x32x8xf32, #tpu.memory_space<vmem>>, %arg3: memref<4x1x8xf32, #tpu.memory_space<vmem>>, %arg4: memref<4x32x8xf32, #tpu.memory_space<vmem>>, %arg5: memref<4x1x8xf32, #tpu.memory_space<vmem>>, %arg6: memref<4x32x8xf32, #tpu.memory_space<vmem>>, %arg7: memref<4x1x8xf32, #tpu.memory_space<vmem>>, %arg8: memref<4x8x32xf32, #tpu.memory_space<vmem>>, %arg9: memref<1x32xf32, #tpu.memory_space<vmem>>, %arg10: memref<1x32xf32, #tpu.memory_space<vmem>>, %arg11: memref<1x32xf32, #tpu.memory_space<vmem>>, %arg12: memref<32x2048xf32, #tpu.memory_space<vmem>>, %arg13: memref<1x2048xf32, #tpu.memory_space<vmem>>, %arg14: memref<2048x32xf32, #tpu.memory_space<vmem>>, %arg15: memref<1x32xf32, #tpu.memory_space<vmem>>, %arg16: memref<1x32xf32, #tpu.memory_space<vmem>>, %arg17: memref<1x32xf32, #tpu.memory_space<vmem>>, %arg18: memref<1x8x32xf32, #tpu.memory_space<vmem>>) attributes {dimension_semantics = [#tpu.dimension_semantics<parallel>], iteration_bounds = array<i64: 2>, scalar_prefetch = 0 : i64, scratch_operands = 0 : i64, tpu.core_type = #tpu.core_type<tc>, window_params = [{transform_indices = @transform_0, window_bounds = array<i64: 1, 8, 32>}, {pipeline_mode = #tpu.pipeline_mode<synchronous>, transform_indices = @transform_1, window_bounds = array<i64: 4, 32, 8>}, {pipeline_mode = #tpu.pipeline_mode<synchronous>, transform_indices = @transform_2, window_bounds = array<i64: 4, 1, 8>}, {pipeline_mode = #tpu.pipeline_mode<synchronous>, transform_indices = @transform_3, window_bounds = array<i64: 4, 32, 8>}, {pipeline_mode = #tpu.pipeline_mode<synchronous>, transform_indices = @transform_4, window_bounds = array<i64: 4, 1, 8>}, {pipeline_mode = #tpu.pipeline_mode<synchronous>, transform_indices = @transform_5, window_bounds = array<i64: 4, 32, 8>}, {pipeline_mode = #tpu.pipeline_mode<synchronous>, transform_indices = @transform_6, window_bounds = array<i64: 4, 1, 8>}, {pipeline_mode = #tpu.pipeline_mode<synchronous>, transform_indices = @transform_7, window_bounds = array<i64: 4, 8, 32>}, {pipeline_mode = #tpu.pipeline_mode<synchronous>, transform_indices = @transform_8, window_bounds = array<i64: 1, 32>}, {pipeline_mode = #tpu.pipeline_mode<synchronous>, transform_indices = @transform_9, window_bounds = array<i64: 1, 32>}, {pipeline_mode = #tpu.pipeline_mode<synchronous>, transform_indices = @transform_10, window_bounds = array<i64: 1, 32>}, {pipeline_mode = #tpu.pipeline_mode<synchronous>, transform_indices = @transform_11, window_bounds = array<i64: 32, 2048>}, {pipeline_mode = #tpu.pipeline_mode<synchronous>, transform_indices = @transform_12, window_bounds = array<i64: 1, 2048>}, {pipeline_mode = #tpu.pipeline_mode<synchronous>, transform_indices = @transform_13, window_bounds = array<i64: 2048, 32>}, {pipeline_mode = #tpu.pipeline_mode<synchronous>, transform_indices = @transform_14, window_bounds = array<i64: 1, 32>}, {pipeline_mode = #tpu.pipeline_mode<synchronous>, transform_indices = @transform_15, window_bounds = array<i64: 1, 32>}, {pipeline_mode = #tpu.pipeline_mode<synchronous>, transform_indices = @transform_16, window_bounds = array<i64: 1, 32>}, {transform_indices = @transform_17, window_bounds = array<i64: 1, 8, 32>}]} {
    %c0 = arith.constant 0 : index
    %c0_0 = arith.constant 0 : index
    %c0_1 = arith.constant 0 : index
    %0 = vector.load %arg1[%c0, %c0_0, %c0_1] : memref<1x8x32xf32, #tpu.memory_space<vmem>>, vector<1x8x32xf32>
    %1 = vector.shape_cast %0 : vector<1x8x32xf32> to vector<8x32xf32>
    %c0_2 = arith.constant 0 : index
    %c0_3 = arith.constant 0 : index
    %c0_4 = arith.constant 0 : index
    %2 = vector.load %arg2[%c0_2, %c0_3, %c0_4] : memref<4x32x8xf32, #tpu.memory_space<vmem>>, vector<1x32x8xf32>
    %3 = vector.shape_cast %2 : vector<1x32x8xf32> to vector<32x8xf32>
    %cst = arith.constant dense<0.000000e+00> : vector<8x8xf32>
    %4 = tpu.matmul %1, %3, %cst {dimension_numbers = #tpu.dot_dimension_numbers<[1], [0], [0], [1], [0, 0, 1, 1], [], []>} : vector<8x32xf32>, vector<32x8xf32>, vector<8x8xf32> -> vector<8x8xf32>
    %c0_5 = arith.constant 0 : index
    %c0_6 = arith.constant 0 : index
    %c0_7 = arith.constant 0 : index
    %5 = vector.load %arg3[%c0_5, %c0_6, %c0_7] : memref<4x1x8xf32, #tpu.memory_space<vmem>>, vector<1x1x8xf32>
    %6 = vector.shape_cast %5 : vector<1x1x8xf32> to vector<1x8xf32>
    %7 = vector.broadcast %6 : vector<1x8xf32> to vector<8x8xf32>
    %8 = arith.addf %4, %7 : vector<8x8xf32>
    %c0_8 = arith.constant 0 : index
    %c0_9 = arith.constant 0 : index
    %c0_10 = arith.constant 0 : index
    %9 = vector.load %arg4[%c0_8, %c0_9, %c0_10] : memref<4x32x8xf32, #tpu.memory_space<vmem>>, vector<1x32x8xf32>
    %10 = vector.shape_cast %9 : vector<1x32x8xf32> to vector<32x8xf32>
    %cst_11 = arith.constant dense<0.000000e+00> : vector<8x8xf32>
    %11 = tpu.matmul %1, %10, %cst_11 {dimension_numbers = #tpu.dot_dimension_numbers<[1], [0], [0], [1], [0, 0, 1, 1], [], []>} : vector<8x32xf32>, vector<32x8xf32>, vector<8x8xf32> -> vector<8x8xf32>
    %c0_12 = arith.constant 0 : index
    %c0_13 = arith.constant 0 : index
    %c0_14 = arith.constant 0 : index
    %12 = vector.load %arg5[%c0_12, %c0_13, %c0_14] : memref<4x1x8xf32, #tpu.memory_space<vmem>>, vector<1x1x8xf32>
    %13 = vector.shape_cast %12 : vector<1x1x8xf32> to vector<1x8xf32>
    %14 = vector.broadcast %13 : vector<1x8xf32> to vector<8x8xf32>
    %15 = arith.addf %11, %14 : vector<8x8xf32>
    %c0_15 = arith.constant 0 : index
    %c0_16 = arith.constant 0 : index
    %c0_17 = arith.constant 0 : index
    %16 = vector.load %arg6[%c0_15, %c0_16, %c0_17] : memref<4x32x8xf32, #tpu.memory_space<vmem>>, vector<1x32x8xf32>
    %17 = vector.shape_cast %16 : vector<1x32x8xf32> to vector<32x8xf32>
    %cst_18 = arith.constant dense<0.000000e+00> : vector<8x8xf32>
    %18 = tpu.matmul %1, %17, %cst_18 {dimension_numbers = #tpu.dot_dimension_numbers<[1], [0], [0], [1], [0, 0, 1, 1], [], []>} : vector<8x32xf32>, vector<32x8xf32>, vector<8x8xf32> -> vector<8x8xf32>
    %c0_19 = arith.constant 0 : index
    %c0_20 = arith.constant 0 : index
    %c0_21 = arith.constant 0 : index
    %19 = vector.load %arg7[%c0_19, %c0_20, %c0_21] : memref<4x1x8xf32, #tpu.memory_space<vmem>>, vector<1x1x8xf32>
    %20 = vector.shape_cast %19 : vector<1x1x8xf32> to vector<1x8xf32>
    %21 = vector.broadcast %20 : vector<1x8xf32> to vector<8x8xf32>
    %22 = arith.addf %18, %21 : vector<8x8xf32>
    %cst_22 = arith.constant dense<0.000000e+00> : vector<8x8xf32>
    %23 = tpu.matmul %8, %15, %cst_22 {dimension_numbers = #tpu.dot_dimension_numbers<[1], [1], [0], [0], [0, 0, 1, 0], [], []>} : vector<8x8xf32>, vector<8x8xf32>, vector<8x8xf32> -> vector<8x8xf32>
    %cst_23 = arith.constant 0.353553385 : f32
    %24 = vector.broadcast %cst_23 : f32 to vector<8x8xf32>
    %25 = arith.mulf %23, %24 : vector<8x8xf32>
    %cst_24 = arith.constant dense<0xFF800000> : vector<8xf32>
    %26 = vector.multi_reduction <maximumf>, %25, %cst_24 [1] : vector<8x8xf32> to vector<8xf32>
    %27 = vector.shape_cast %26 : vector<8xf32> to vector<8x1xf32>
    %28 = vector.broadcast %27 : vector<8x1xf32> to vector<8x8xf32>
    %29 = arith.subf %25, %28 : vector<8x8xf32>
    %30 = math.exp %29 : vector<8x8xf32>
    %cst_25 = arith.constant dense<0.000000e+00> : vector<8xf32>
    %31 = vector.multi_reduction <add>, %30, %cst_25 [1] : vector<8x8xf32> to vector<8xf32>
    %32 = vector.shape_cast %31 : vector<8xf32> to vector<8x1xf32>
    %33 = tpu.reciprocal %32 {approx = true} : vector<8x1xf32> -> vector<8x1xf32>
    %34 = vector.broadcast %33 : vector<8x1xf32> to vector<8x8xf32>
    %35 = arith.mulf %30, %34 : vector<8x8xf32>
    %cst_26 = arith.constant dense<0.000000e+00> : vector<8x8xf32>
    %36 = tpu.matmul %35, %22, %cst_26 {dimension_numbers = #tpu.dot_dimension_numbers<[1], [0], [0], [1], [0, 0, 1, 1], [], []>} : vector<8x8xf32>, vector<8x8xf32>, vector<8x8xf32> -> vector<8x8xf32>
    %c0_27 = arith.constant 0 : index
    %c0_28 = arith.constant 0 : index
    %c0_29 = arith.constant 0 : index
    %37 = vector.load %arg8[%c0_27, %c0_28, %c0_29] : memref<4x8x32xf32, #tpu.memory_space<vmem>>, vector<1x8x32xf32>
    %38 = vector.shape_cast %37 : vector<1x8x32xf32> to vector<8x32xf32>
    %cst_30 = arith.constant dense<0.000000e+00> : vector<8x32xf32>
    %39 = tpu.matmul %36, %38, %cst_30 {dimension_numbers = #tpu.dot_dimension_numbers<[1], [0], [0], [1], [0, 0, 1, 1], [], []>} : vector<8x8xf32>, vector<8x32xf32>, vector<8x32xf32> -> vector<8x32xf32>
    %c1 = arith.constant 1 : index
    %c0_31 = arith.constant 0 : index
    %c0_32 = arith.constant 0 : index
    %40 = vector.load %arg2[%c1, %c0_31, %c0_32] : memref<4x32x8xf32, #tpu.memory_space<vmem>>, vector<1x32x8xf32>
    %41 = vector.shape_cast %40 : vector<1x32x8xf32> to vector<32x8xf32>
    %cst_33 = arith.constant dense<0.000000e+00> : vector<8x8xf32>
    %42 = tpu.matmul %1, %41, %cst_33 {dimension_numbers = #tpu.dot_dimension_numbers<[1], [0], [0], [1], [0, 0, 1, 1], [], []>} : vector<8x32xf32>, vector<32x8xf32>, vector<8x8xf32> -> vector<8x8xf32>
    %c1_34 = arith.constant 1 : index
    %c0_35 = arith.constant 0 : index
    %c0_36 = arith.constant 0 : index
    %43 = vector.load %arg3[%c1_34, %c0_35, %c0_36] : memref<4x1x8xf32, #tpu.memory_space<vmem>>, vector<1x1x8xf32>
    %44 = vector.shape_cast %43 : vector<1x1x8xf32> to vector<1x8xf32>
    %45 = vector.broadcast %44 : vector<1x8xf32> to vector<8x8xf32>
    %46 = arith.addf %42, %45 : vector<8x8xf32>
    %c1_37 = arith.constant 1 : index
    %c0_38 = arith.constant 0 : index
    %c0_39 = arith.constant 0 : index
    %47 = vector.load %arg4[%c1_37, %c0_38, %c0_39] : memref<4x32x8xf32, #tpu.memory_space<vmem>>, vector<1x32x8xf32>
    %48 = vector.shape_cast %47 : vector<1x32x8xf32> to vector<32x8xf32>
    %cst_40 = arith.constant dense<0.000000e+00> : vector<8x8xf32>
    %49 = tpu.matmul %1, %48, %cst_40 {dimension_numbers = #tpu.dot_dimension_numbers<[1], [0], [0], [1], [0, 0, 1, 1], [], []>} : vector<8x32xf32>, vector<32x8xf32>, vector<8x8xf32> -> vector<8x8xf32>
    %c1_41 = arith.constant 1 : index
    %c0_42 = arith.constant 0 : index
    %c0_43 = arith.constant 0 : index
    %50 = vector.load %arg5[%c1_41, %c0_42, %c0_43] : memref<4x1x8xf32, #tpu.memory_space<vmem>>, vector<1x1x8xf32>
    %51 = vector.shape_cast %50 : vector<1x1x8xf32> to vector<1x8xf32>
    %52 = vector.broadcast %51 : vector<1x8xf32> to vector<8x8xf32>
    %53 = arith.addf %49, %52 : vector<8x8xf32>
    %c1_44 = arith.constant 1 : index
    %c0_45 = arith.constant 0 : index
    %c0_46 = arith.constant 0 : index
    %54 = vector.load %arg6[%c1_44, %c0_45, %c0_46] : memref<4x32x8xf32, #tpu.memory_space<vmem>>, vector<1x32x8xf32>
    %55 = vector.shape_cast %54 : vector<1x32x8xf32> to vector<32x8xf32>
    %cst_47 = arith.constant dense<0.000000e+00> : vector<8x8xf32>
    %56 = tpu.matmul %1, %55, %cst_47 {dimension_numbers = #tpu.dot_dimension_numbers<[1], [0], [0], [1], [0, 0, 1, 1], [], []>} : vector<8x32xf32>, vector<32x8xf32>, vector<8x8xf32> -> vector<8x8xf32>
    %c1_48 = arith.constant 1 : index
    %c0_49 = arith.constant 0 : index
    %c0_50 = arith.constant 0 : index
    %57 = vector.load %arg7[%c1_48, %c0_49, %c0_50] : memref<4x1x8xf32, #tpu.memory_space<vmem>>, vector<1x1x8xf32>
    %58 = vector.shape_cast %57 : vector<1x1x8xf32> to vector<1x8xf32>
    %59 = vector.broadcast %58 : vector<1x8xf32> to vector<8x8xf32>
    %60 = arith.addf %56, %59 : vector<8x8xf32>
    %cst_51 = arith.constant dense<0.000000e+00> : vector<8x8xf32>
    %61 = tpu.matmul %46, %53, %cst_51 {dimension_numbers = #tpu.dot_dimension_numbers<[1], [1], [0], [0], [0, 0, 1, 0], [], []>} : vector<8x8xf32>, vector<8x8xf32>, vector<8x8xf32> -> vector<8x8xf32>
    %cst_52 = arith.constant 0.353553385 : f32
    %62 = vector.broadcast %cst_52 : f32 to vector<8x8xf32>
    %63 = arith.mulf %61, %62 : vector<8x8xf32>
    %cst_53 = arith.constant dense<0xFF800000> : vector<8xf32>
    %64 = vector.multi_reduction <maximumf>, %63, %cst_53 [1] : vector<8x8xf32> to vector<8xf32>
    %65 = vector.shape_cast %64 : vector<8xf32> to vector<8x1xf32>
    %66 = vector.broadcast %65 : vector<8x1xf32> to vector<8x8xf32>
    %67 = arith.subf %63, %66 : vector<8x8xf32>
    %68 = math.exp %67 : vector<8x8xf32>
    %cst_54 = arith.constant dense<0.000000e+00> : vector<8xf32>
    %69 = vector.multi_reduction <add>, %68, %cst_54 [1] : vector<8x8xf32> to vector<8xf32>
    %70 = vector.shape_cast %69 : vector<8xf32> to vector<8x1xf32>
    %71 = tpu.reciprocal %70 {approx = true} : vector<8x1xf32> -> vector<8x1xf32>
    %72 = vector.broadcast %71 : vector<8x1xf32> to vector<8x8xf32>
    %73 = arith.mulf %68, %72 : vector<8x8xf32>
    %cst_55 = arith.constant dense<0.000000e+00> : vector<8x8xf32>
    %74 = tpu.matmul %73, %60, %cst_55 {dimension_numbers = #tpu.dot_dimension_numbers<[1], [0], [0], [1], [0, 0, 1, 1], [], []>} : vector<8x8xf32>, vector<8x8xf32>, vector<8x8xf32> -> vector<8x8xf32>
    %c1_56 = arith.constant 1 : index
    %c0_57 = arith.constant 0 : index
    %c0_58 = arith.constant 0 : index
    %75 = vector.load %arg8[%c1_56, %c0_57, %c0_58] : memref<4x8x32xf32, #tpu.memory_space<vmem>>, vector<1x8x32xf32>
    %76 = vector.shape_cast %75 : vector<1x8x32xf32> to vector<8x32xf32>
    %cst_59 = arith.constant dense<0.000000e+00> : vector<8x32xf32>
    %77 = tpu.matmul %74, %76, %cst_59 {dimension_numbers = #tpu.dot_dimension_numbers<[1], [0], [0], [1], [0, 0, 1, 1], [], []>} : vector<8x8xf32>, vector<8x32xf32>, vector<8x32xf32> -> vector<8x32xf32>
    %78 = arith.addf %39, %77 : vector<8x32xf32>
    %c2 = arith.constant 2 : index
    %c0_60 = arith.constant 0 : index
    %c0_61 = arith.constant 0 : index
    %79 = vector.load %arg2[%c2, %c0_60, %c0_61] : memref<4x32x8xf32, #tpu.memory_space<vmem>>, vector<1x32x8xf32>
    %80 = vector.shape_cast %79 : vector<1x32x8xf32> to vector<32x8xf32>
    %cst_62 = arith.constant dense<0.000000e+00> : vector<8x8xf32>
    %81 = tpu.matmul %1, %80, %cst_62 {dimension_numbers = #tpu.dot_dimension_numbers<[1], [0], [0], [1], [0, 0, 1, 1], [], []>} : vector<8x32xf32>, vector<32x8xf32>, vector<8x8xf32> -> vector<8x8xf32>
    %c2_63 = arith.constant 2 : index
    %c0_64 = arith.constant 0 : index
    %c0_65 = arith.constant 0 : index
    %82 = vector.load %arg3[%c2_63, %c0_64, %c0_65] : memref<4x1x8xf32, #tpu.memory_space<vmem>>, vector<1x1x8xf32>
    %83 = vector.shape_cast %82 : vector<1x1x8xf32> to vector<1x8xf32>
    %84 = vector.broadcast %83 : vector<1x8xf32> to vector<8x8xf32>
    %85 = arith.addf %81, %84 : vector<8x8xf32>
    %c2_66 = arith.constant 2 : index
    %c0_67 = arith.constant 0 : index
    %c0_68 = arith.constant 0 : index
    %86 = vector.load %arg4[%c2_66, %c0_67, %c0_68] : memref<4x32x8xf32, #tpu.memory_space<vmem>>, vector<1x32x8xf32>
    %87 = vector.shape_cast %86 : vector<1x32x8xf32> to vector<32x8xf32>
    %cst_69 = arith.constant dense<0.000000e+00> : vector<8x8xf32>
    %88 = tpu.matmul %1, %87, %cst_69 {dimension_numbers = #tpu.dot_dimension_numbers<[1], [0], [0], [1], [0, 0, 1, 1], [], []>} : vector<8x32xf32>, vector<32x8xf32>, vector<8x8xf32> -> vector<8x8xf32>
    %c2_70 = arith.constant 2 : index
    %c0_71 = arith.constant 0 : index
    %c0_72 = arith.constant 0 : index
    %89 = vector.load %arg5[%c2_70, %c0_71, %c0_72] : memref<4x1x8xf32, #tpu.memory_space<vmem>>, vector<1x1x8xf32>
    %90 = vector.shape_cast %89 : vector<1x1x8xf32> to vector<1x8xf32>
    %91 = vector.broadcast %90 : vector<1x8xf32> to vector<8x8xf32>
    %92 = arith.addf %88, %91 : vector<8x8xf32>
    %c2_73 = arith.constant 2 : index
    %c0_74 = arith.constant 0 : index
    %c0_75 = arith.constant 0 : index
    %93 = vector.load %arg6[%c2_73, %c0_74, %c0_75] : memref<4x32x8xf32, #tpu.memory_space<vmem>>, vector<1x32x8xf32>
    %94 = vector.shape_cast %93 : vector<1x32x8xf32> to vector<32x8xf32>
    %cst_76 = arith.constant dense<0.000000e+00> : vector<8x8xf32>
    %95 = tpu.matmul %1, %94, %cst_76 {dimension_numbers = #tpu.dot_dimension_numbers<[1], [0], [0], [1], [0, 0, 1, 1], [], []>} : vector<8x32xf32>, vector<32x8xf32>, vector<8x8xf32> -> vector<8x8xf32>
    %c2_77 = arith.constant 2 : index
    %c0_78 = arith.constant 0 : index
    %c0_79 = arith.constant 0 : index
    %96 = vector.load %arg7[%c2_77, %c0_78, %c0_79] : memref<4x1x8xf32, #tpu.memory_space<vmem>>, vector<1x1x8xf32>
    %97 = vector.shape_cast %96 : vector<1x1x8xf32> to vector<1x8xf32>
    %98 = vector.broadcast %97 : vector<1x8xf32> to vector<8x8xf32>
    %99 = arith.addf %95, %98 : vector<8x8xf32>
    %cst_80 = arith.constant dense<0.000000e+00> : vector<8x8xf32>
    %100 = tpu.matmul %85, %92, %cst_80 {dimension_numbers = #tpu.dot_dimension_numbers<[1], [1], [0], [0], [0, 0, 1, 0], [], []>} : vector<8x8xf32>, vector<8x8xf32>, vector<8x8xf32> -> vector<8x8xf32>
    %cst_81 = arith.constant 0.353553385 : f32
    %101 = vector.broadcast %cst_81 : f32 to vector<8x8xf32>
    %102 = arith.mulf %100, %101 : vector<8x8xf32>
    %cst_82 = arith.constant dense<0xFF800000> : vector<8xf32>
    %103 = vector.multi_reduction <maximumf>, %102, %cst_82 [1] : vector<8x8xf32> to vector<8xf32>
    %104 = vector.shape_cast %103 : vector<8xf32> to vector<8x1xf32>
    %105 = vector.broadcast %104 : vector<8x1xf32> to vector<8x8xf32>
    %106 = arith.subf %102, %105 : vector<8x8xf32>
    %107 = math.exp %106 : vector<8x8xf32>
    %cst_83 = arith.constant dense<0.000000e+00> : vector<8xf32>
    %108 = vector.multi_reduction <add>, %107, %cst_83 [1] : vector<8x8xf32> to vector<8xf32>
    %109 = vector.shape_cast %108 : vector<8xf32> to vector<8x1xf32>
    %110 = tpu.reciprocal %109 {approx = true} : vector<8x1xf32> -> vector<8x1xf32>
    %111 = vector.broadcast %110 : vector<8x1xf32> to vector<8x8xf32>
    %112 = arith.mulf %107, %111 : vector<8x8xf32>
    %cst_84 = arith.constant dense<0.000000e+00> : vector<8x8xf32>
    %113 = tpu.matmul %112, %99, %cst_84 {dimension_numbers = #tpu.dot_dimension_numbers<[1], [0], [0], [1], [0, 0, 1, 1], [], []>} : vector<8x8xf32>, vector<8x8xf32>, vector<8x8xf32> -> vector<8x8xf32>
    %c2_85 = arith.constant 2 : index
    %c0_86 = arith.constant 0 : index
    %c0_87 = arith.constant 0 : index
    %114 = vector.load %arg8[%c2_85, %c0_86, %c0_87] : memref<4x8x32xf32, #tpu.memory_space<vmem>>, vector<1x8x32xf32>
    %115 = vector.shape_cast %114 : vector<1x8x32xf32> to vector<8x32xf32>
    %cst_88 = arith.constant dense<0.000000e+00> : vector<8x32xf32>
    %116 = tpu.matmul %113, %115, %cst_88 {dimension_numbers = #tpu.dot_dimension_numbers<[1], [0], [0], [1], [0, 0, 1, 1], [], []>} : vector<8x8xf32>, vector<8x32xf32>, vector<8x32xf32> -> vector<8x32xf32>
    %117 = arith.addf %78, %116 : vector<8x32xf32>
    %c3 = arith.constant 3 : index
    %c0_89 = arith.constant 0 : index
    %c0_90 = arith.constant 0 : index
    %118 = vector.load %arg2[%c3, %c0_89, %c0_90] : memref<4x32x8xf32, #tpu.memory_space<vmem>>, vector<1x32x8xf32>
    %119 = vector.shape_cast %118 : vector<1x32x8xf32> to vector<32x8xf32>
    %cst_91 = arith.constant dense<0.000000e+00> : vector<8x8xf32>
    %120 = tpu.matmul %1, %119, %cst_91 {dimension_numbers = #tpu.dot_dimension_numbers<[1], [0], [0], [1], [0, 0, 1, 1], [], []>} : vector<8x32xf32>, vector<32x8xf32>, vector<8x8xf32> -> vector<8x8xf32>
    %c3_92 = arith.constant 3 : index
    %c0_93 = arith.constant 0 : index
    %c0_94 = arith.constant 0 : index
    %121 = vector.load %arg3[%c3_92, %c0_93, %c0_94] : memref<4x1x8xf32, #tpu.memory_space<vmem>>, vector<1x1x8xf32>
    %122 = vector.shape_cast %121 : vector<1x1x8xf32> to vector<1x8xf32>
    %123 = vector.broadcast %122 : vector<1x8xf32> to vector<8x8xf32>
    %124 = arith.addf %120, %123 : vector<8x8xf32>
    %c3_95 = arith.constant 3 : index
    %c0_96 = arith.constant 0 : index
    %c0_97 = arith.constant 0 : index
    %125 = vector.load %arg4[%c3_95, %c0_96, %c0_97] : memref<4x32x8xf32, #tpu.memory_space<vmem>>, vector<1x32x8xf32>
    %126 = vector.shape_cast %125 : vector<1x32x8xf32> to vector<32x8xf32>
    %cst_98 = arith.constant dense<0.000000e+00> : vector<8x8xf32>
    %127 = tpu.matmul %1, %126, %cst_98 {dimension_numbers = #tpu.dot_dimension_numbers<[1], [0], [0], [1], [0, 0, 1, 1], [], []>} : vector<8x32xf32>, vector<32x8xf32>, vector<8x8xf32> -> vector<8x8xf32>
    %c3_99 = arith.constant 3 : index
    %c0_100 = arith.constant 0 : index
    %c0_101 = arith.constant 0 : index
    %128 = vector.load %arg5[%c3_99, %c0_100, %c0_101] : memref<4x1x8xf32, #tpu.memory_space<vmem>>, vector<1x1x8xf32>
    %129 = vector.shape_cast %128 : vector<1x1x8xf32> to vector<1x8xf32>
    %130 = vector.broadcast %129 : vector<1x8xf32> to vector<8x8xf32>
    %131 = arith.addf %127, %130 : vector<8x8xf32>
    %c3_102 = arith.constant 3 : index
    %c0_103 = arith.constant 0 : index
    %c0_104 = arith.constant 0 : index
    %132 = vector.load %arg6[%c3_102, %c0_103, %c0_104] : memref<4x32x8xf32, #tpu.memory_space<vmem>>, vector<1x32x8xf32>
    %133 = vector.shape_cast %132 : vector<1x32x8xf32> to vector<32x8xf32>
    %cst_105 = arith.constant dense<0.000000e+00> : vector<8x8xf32>
    %134 = tpu.matmul %1, %133, %cst_105 {dimension_numbers = #tpu.dot_dimension_numbers<[1], [0], [0], [1], [0, 0, 1, 1], [], []>} : vector<8x32xf32>, vector<32x8xf32>, vector<8x8xf32> -> vector<8x8xf32>
    %c3_106 = arith.constant 3 : index
    %c0_107 = arith.constant 0 : index
    %c0_108 = arith.constant 0 : index
    %135 = vector.load %arg7[%c3_106, %c0_107, %c0_108] : memref<4x1x8xf32, #tpu.memory_space<vmem>>, vector<1x1x8xf32>
    %136 = vector.shape_cast %135 : vector<1x1x8xf32> to vector<1x8xf32>
    %137 = vector.broadcast %136 : vector<1x8xf32> to vector<8x8xf32>
    %138 = arith.addf %134, %137 : vector<8x8xf32>
    %cst_109 = arith.constant dense<0.000000e+00> : vector<8x8xf32>
    %139 = tpu.matmul %124, %131, %cst_109 {dimension_numbers = #tpu.dot_dimension_numbers<[1], [1], [0], [0], [0, 0, 1, 0], [], []>} : vector<8x8xf32>, vector<8x8xf32>, vector<8x8xf32> -> vector<8x8xf32>
    %cst_110 = arith.constant 0.353553385 : f32
    %140 = vector.broadcast %cst_110 : f32 to vector<8x8xf32>
    %141 = arith.mulf %139, %140 : vector<8x8xf32>
    %cst_111 = arith.constant dense<0xFF800000> : vector<8xf32>
    %142 = vector.multi_reduction <maximumf>, %141, %cst_111 [1] : vector<8x8xf32> to vector<8xf32>
    %143 = vector.shape_cast %142 : vector<8xf32> to vector<8x1xf32>
    %144 = vector.broadcast %143 : vector<8x1xf32> to vector<8x8xf32>
    %145 = arith.subf %141, %144 : vector<8x8xf32>
    %146 = math.exp %145 : vector<8x8xf32>
    %cst_112 = arith.constant dense<0.000000e+00> : vector<8xf32>
    %147 = vector.multi_reduction <add>, %146, %cst_112 [1] : vector<8x8xf32> to vector<8xf32>
    %148 = vector.shape_cast %147 : vector<8xf32> to vector<8x1xf32>
    %149 = tpu.reciprocal %148 {approx = true} : vector<8x1xf32> -> vector<8x1xf32>
    %150 = vector.broadcast %149 : vector<8x1xf32> to vector<8x8xf32>
    %151 = arith.mulf %146, %150 : vector<8x8xf32>
    %cst_113 = arith.constant dense<0.000000e+00> : vector<8x8xf32>
    %152 = tpu.matmul %151, %138, %cst_113 {dimension_numbers = #tpu.dot_dimension_numbers<[1], [0], [0], [1], [0, 0, 1, 1], [], []>} : vector<8x8xf32>, vector<8x8xf32>, vector<8x8xf32> -> vector<8x8xf32>
    %c3_114 = arith.constant 3 : index
    %c0_115 = arith.constant 0 : index
    %c0_116 = arith.constant 0 : index
    %153 = vector.load %arg8[%c3_114, %c0_115, %c0_116] : memref<4x8x32xf32, #tpu.memory_space<vmem>>, vector<1x8x32xf32>
    %154 = vector.shape_cast %153 : vector<1x8x32xf32> to vector<8x32xf32>
    %cst_117 = arith.constant dense<0.000000e+00> : vector<8x32xf32>
    %155 = tpu.matmul %152, %154, %cst_117 {dimension_numbers = #tpu.dot_dimension_numbers<[1], [0], [0], [1], [0, 0, 1, 1], [], []>} : vector<8x8xf32>, vector<8x32xf32>, vector<8x32xf32> -> vector<8x32xf32>
    %156 = arith.addf %117, %155 : vector<8x32xf32>
    %c0_118 = arith.constant 0 : index
    %c0_119 = arith.constant 0 : index
    %157 = vector.load %arg9[%c0_118, %c0_119] : memref<1x32xf32, #tpu.memory_space<vmem>>, vector<1x32xf32>
    %158 = vector.broadcast %157 : vector<1x32xf32> to vector<8x32xf32>
    %159 = arith.addf %156, %158 : vector<8x32xf32>
    %160 = arith.addf %1, %159 : vector<8x32xf32>
    %c0_120 = arith.constant 0 : index
    %c0_121 = arith.constant 0 : index
    %161 = vector.load %arg10[%c0_120, %c0_121] : memref<1x32xf32, #tpu.memory_space<vmem>>, vector<1x32xf32>
    %c0_122 = arith.constant 0 : index
    %c0_123 = arith.constant 0 : index
    %162 = vector.load %arg11[%c0_122, %c0_123] : memref<1x32xf32, #tpu.memory_space<vmem>>, vector<1x32xf32>
    %cst_124 = arith.constant dense<0.000000e+00> : vector<8xf32>
    %163 = vector.multi_reduction <add>, %160, %cst_124 [1] : vector<8x32xf32> to vector<8xf32>
    %164 = vector.shape_cast %163 : vector<8xf32> to vector<8x1xf32>
    %cst_125 = arith.constant 3.200000e+01 : f32
    %165 = vector.broadcast %cst_125 : f32 to vector<8x1xf32>
    %166 = arith.divf %164, %165 : vector<8x1xf32>
    %167 = vector.broadcast %166 : vector<8x1xf32> to vector<8x32xf32>
    %168 = arith.subf %160, %167 : vector<8x32xf32>
    %169 = arith.mulf %168, %168 : vector<8x32xf32>
    %cst_126 = arith.constant dense<0.000000e+00> : vector<8xf32>
    %170 = vector.multi_reduction <add>, %169, %cst_126 [1] : vector<8x32xf32> to vector<8xf32>
    %171 = vector.shape_cast %170 : vector<8xf32> to vector<8x1xf32>
    %cst_127 = arith.constant 3.200000e+01 : f32
    %172 = vector.broadcast %cst_127 : f32 to vector<8x1xf32>
    %173 = arith.divf %171, %172 : vector<8x1xf32>
    %174 = vector.broadcast %166 : vector<8x1xf32> to vector<8x32xf32>
    %175 = arith.subf %160, %174 : vector<8x32xf32>
    %cst_128 = arith.constant 9.99999974E-6 : f32
    %176 = vector.broadcast %cst_128 : f32 to vector<8x1xf32>
    %177 = arith.addf %173, %176 : vector<8x1xf32>
    %178 = math.rsqrt %177 : vector<8x1xf32>
    %179 = vector.broadcast %178 : vector<8x1xf32> to vector<8x32xf32>
    %180 = arith.mulf %175, %179 : vector<8x32xf32>
    %181 = vector.broadcast %161 : vector<1x32xf32> to vector<8x32xf32>
    %182 = arith.mulf %180, %181 : vector<8x32xf32>
    %183 = vector.broadcast %162 : vector<1x32xf32> to vector<8x32xf32>
    %184 = arith.addf %182, %183 : vector<8x32xf32>
    %c0_129 = arith.constant 0 : index
    %c0_130 = arith.constant 0 : index
    %185 = vector.load %arg12[%c0_129, %c0_130] : memref<32x2048xf32, #tpu.memory_space<vmem>>, vector<32x2048xf32>
    %cst_131 = arith.constant dense<0.000000e+00> : vector<8x2048xf32>
    %186 = tpu.matmul %184, %185, %cst_131 {dimension_numbers = #tpu.dot_dimension_numbers<[1], [0], [0], [1], [0, 0, 1, 1], [], []>} : vector<8x32xf32>, vector<32x2048xf32>, vector<8x2048xf32> -> vector<8x2048xf32>
    %c0_132 = arith.constant 0 : index
    %c0_133 = arith.constant 0 : index
    %187 = vector.load %arg13[%c0_132, %c0_133] : memref<1x2048xf32, #tpu.memory_space<vmem>>, vector<1x2048xf32>
    %188 = vector.broadcast %187 : vector<1x2048xf32> to vector<8x2048xf32>
    %189 = arith.addf %186, %188 : vector<8x2048xf32>
    %cst_134 = arith.constant 0.000000e+00 : f32
    %190 = vector.broadcast %cst_134 : f32 to vector<8x2048xf32>
    %191 = arith.maximumf %189, %190 : vector<8x2048xf32>
    %c0_135 = arith.constant 0 : index
    %c0_136 = arith.constant 0 : index
    %192 = vector.load %arg14[%c0_135, %c0_136] : memref<2048x32xf32, #tpu.memory_space<vmem>>, vector<2048x32xf32>
    %cst_137 = arith.constant dense<0.000000e+00> : vector<8x32xf32>
    %193 = tpu.matmul %191, %192, %cst_137 {dimension_numbers = #tpu.dot_dimension_numbers<[1], [0], [0], [1], [0, 0, 1, 1], [], []>} : vector<8x2048xf32>, vector<2048x32xf32>, vector<8x32xf32> -> vector<8x32xf32>
    %c0_138 = arith.constant 0 : index
    %c0_139 = arith.constant 0 : index
    %194 = vector.load %arg15[%c0_138, %c0_139] : memref<1x32xf32, #tpu.memory_space<vmem>>, vector<1x32xf32>
    %195 = vector.broadcast %194 : vector<1x32xf32> to vector<8x32xf32>
    %196 = arith.addf %193, %195 : vector<8x32xf32>
    %197 = arith.addf %184, %196 : vector<8x32xf32>
    %c0_140 = arith.constant 0 : index
    %c0_141 = arith.constant 0 : index
    %198 = vector.load %arg16[%c0_140, %c0_141] : memref<1x32xf32, #tpu.memory_space<vmem>>, vector<1x32xf32>
    %c0_142 = arith.constant 0 : index
    %c0_143 = arith.constant 0 : index
    %199 = vector.load %arg17[%c0_142, %c0_143] : memref<1x32xf32, #tpu.memory_space<vmem>>, vector<1x32xf32>
    %cst_144 = arith.constant dense<0.000000e+00> : vector<8xf32>
    %200 = vector.multi_reduction <add>, %197, %cst_144 [1] : vector<8x32xf32> to vector<8xf32>
    %201 = vector.shape_cast %200 : vector<8xf32> to vector<8x1xf32>
    %cst_145 = arith.constant 3.200000e+01 : f32
    %202 = vector.broadcast %cst_145 : f32 to vector<8x1xf32>
    %203 = arith.divf %201, %202 : vector<8x1xf32>
    %204 = vector.broadcast %203 : vector<8x1xf32> to vector<8x32xf32>
    %205 = arith.subf %197, %204 : vector<8x32xf32>
    %206 = arith.mulf %205, %205 : vector<8x32xf32>
    %cst_146 = arith.constant dense<0.000000e+00> : vector<8xf32>
    %207 = vector.multi_reduction <add>, %206, %cst_146 [1] : vector<8x32xf32> to vector<8xf32>
    %208 = vector.shape_cast %207 : vector<8xf32> to vector<8x1xf32>
    %cst_147 = arith.constant 3.200000e+01 : f32
    %209 = vector.broadcast %cst_147 : f32 to vector<8x1xf32>
    %210 = arith.divf %208, %209 : vector<8x1xf32>
    %211 = vector.broadcast %203 : vector<8x1xf32> to vector<8x32xf32>
    %212 = arith.subf %197, %211 : vector<8x32xf32>
    %cst_148 = arith.constant 9.99999974E-6 : f32
    %213 = vector.broadcast %cst_148 : f32 to vector<8x1xf32>
    %214 = arith.addf %210, %213 : vector<8x1xf32>
    %215 = math.rsqrt %214 : vector<8x1xf32>
    %216 = vector.broadcast %215 : vector<8x1xf32> to vector<8x32xf32>
    %217 = arith.mulf %212, %216 : vector<8x32xf32>
    %218 = vector.broadcast %198 : vector<1x32xf32> to vector<8x32xf32>
    %219 = arith.mulf %217, %218 : vector<8x32xf32>
    %220 = vector.broadcast %199 : vector<1x32xf32> to vector<8x32xf32>
    %221 = arith.addf %219, %220 : vector<8x32xf32>
    %c0_149 = arith.constant 0 : index
    %c0_150 = arith.constant 0 : index
    %c0_151 = arith.constant 0 : index
    %222 = vector.load %arg18[%c0_149, %c0_150, %c0_151] : memref<1x8x32xf32, #tpu.memory_space<vmem>>, vector<1x8x32xf32>
    %223 = vector.shape_cast %222 : vector<1x8x32xf32> to vector<8x32xf32>
    %224 = vector.shape_cast %221 : vector<8x32xf32> to vector<1x8x32xf32>
    tpu.vector_store %arg18[%c0_149, %c0_150, %c0_151], %224 {strides = array<i32>} : memref<1x8x32xf32, #tpu.memory_space<vmem>>, vector<1x8x32xf32>,
    return
  }
  func.func @transform_0(%arg0: i32) -> (i32, i32, i32) {
    %c0_i32 = arith.constant 0 : i32
    %c0_i32_0 = arith.constant 0 : i32
    %c0_i32_1 = arith.constant 0 : i32
    return %arg0, %c0_i32, %c0_i32_0 : i32, i32, i32
  }
  func.func @transform_1(%arg0: i32) -> (i32, i32, i32) {
    %c0_i32 = arith.constant 0 : i32
    %c0_i32_0 = arith.constant 0 : i32
    %c0_i32_1 = arith.constant 0 : i32
    %c0_i32_2 = arith.constant 0 : i32
    return %c0_i32, %c0_i32_0, %c0_i32_1 : i32, i32, i32
  }
  func.func @transform_2(%arg0: i32) -> (i32, i32, i32) {
    %c0_i32 = arith.constant 0 : i32
    %c0_i32_0 = arith.constant 0 : i32
    %c0_i32_1 = arith.constant 0 : i32
    %c0_i32_2 = arith.constant 0 : i32
    return %c0_i32, %c0_i32_0, %c0_i32_1 : i32, i32, i32
  }
  func.func @transform_3(%arg0: i32) -> (i32, i32, i32) {
    %c0_i32 = arith.constant 0 : i32
    %c0_i32_0 = arith.constant 0 : i32
    %c0_i32_1 = arith.constant 0 : i32
    %c0_i32_2 = arith.constant 0 : i32
    return %c0_i32, %c0_i32_0, %c0_i32_1 : i32, i32, i32
  }
  func.func @transform_4(%arg0: i32) -> (i32, i32, i32) {
    %c0_i32 = arith.constant 0 : i32
    %c0_i32_0 = arith.constant 0 : i32
    %c0_i32_1 = arith.constant 0 : i32
    %c0_i32_2 = arith.constant 0 : i32
    return %c0_i32, %c0_i32_0, %c0_i32_1 : i32, i32, i32
  }
  func.func @transform_5(%arg0: i32) -> (i32, i32, i32) {
    %c0_i32 = arith.constant 0 : i32
    %c0_i32_0 = arith.constant 0 : i32
    %c0_i32_1 = arith.constant 0 : i32
    %c0_i32_2 = arith.constant 0 : i32
    return %c0_i32, %c0_i32_0, %c0_i32_1 : i32, i32, i32
  }
  func.func @transform_6(%arg0: i32) -> (i32, i32, i32) {
    %c0_i32 = arith.constant 0 : i32
    %c0_i32_0 = arith.constant 0 : i32
    %c0_i32_1 = arith.constant 0 : i32
    %c0_i32_2 = arith.constant 0 : i32
    return %c0_i32, %c0_i32_0, %c0_i32_1 : i32, i32, i32
  }
  func.func @transform_7(%arg0: i32) -> (i32, i32, i32) {
    %c0_i32 = arith.constant 0 : i32
    %c0_i32_0 = arith.constant 0 : i32
    %c0_i32_1 = arith.constant 0 : i32
    %c0_i32_2 = arith.constant 0 : i32
    return %c0_i32, %c0_i32_0, %c0_i32_1 : i32, i32, i32
  }
  func.func @transform_8(%arg0: i32) -> (i32, i32) {
    %c0_i32 = arith.constant 0 : i32
    %c0_i32_0 = arith.constant 0 : i32
    %c0_i32_1 = arith.constant 0 : i32
    return %c0_i32, %c0_i32_0 : i32, i32
  }
  func.func @transform_9(%arg0: i32) -> (i32, i32) {
    %c0_i32 = arith.constant 0 : i32
    %c0_i32_0 = arith.constant 0 : i32
    %c0_i32_1 = arith.constant 0 : i32
    return %c0_i32, %c0_i32_0 : i32, i32
  }
  func.func @transform_10(%arg0: i32) -> (i32, i32) {
    %c0_i32 = arith.constant 0 : i32
    %c0_i32_0 = arith.constant 0 : i32
    %c0_i32_1 = arith.constant 0 : i32
    return %c0_i32, %c0_i32_0 : i32, i32
  }
  func.func @transform_11(%arg0: i32) -> (i32, i32) {
    %c0_i32 = arith.constant 0 : i32
    %c0_i32_0 = arith.constant 0 : i32
    %c0_i32_1 = arith.constant 0 : i32
    return %c0_i32, %c0_i32_0 : i32, i32
  }
  func.func @transform_12(%arg0: i32) -> (i32, i32) {
    %c0_i32 = arith.constant 0 : i32
    %c0_i32_0 = arith.constant 0 : i32
    %c0_i32_1 = arith.constant 0 : i32
    return %c0_i32, %c0_i32_0 : i32, i32
  }
  func.func @transform_13(%arg0: i32) -> (i32, i32) {
    %c0_i32 = arith.constant 0 : i32
    %c0_i32_0 = arith.constant 0 : i32
    %c0_i32_1 = arith.constant 0 : i32
    return %c0_i32, %c0_i32_0 : i32, i32
  }
  func.func @transform_14(%arg0: i32) -> (i32, i32) {
    %c0_i32 = arith.constant 0 : i32
    %c0_i32_0 = arith.constant 0 : i32
    %c0_i32_1 = arith.constant 0 : i32
    return %c0_i32, %c0_i32_0 : i32, i32
  }
  func.func @transform_15(%arg0: i32) -> (i32, i32) {
    %c0_i32 = arith.constant 0 : i32
    %c0_i32_0 = arith.constant 0 : i32
    %c0_i32_1 = arith.constant 0 : i32
    return %c0_i32, %c0_i32_0 : i32, i32
  }
  func.func @transform_16(%arg0: i32) -> (i32, i32) {
    %c0_i32 = arith.constant 0 : i32
    %c0_i32_0 = arith.constant 0 : i32
    %c0_i32_1 = arith.constant 0 : i32
    return %c0_i32, %c0_i32_0 : i32, i32
  }
  func.func @transform_17(%arg0: i32) -> (i32, i32, i32) {
    %c0_i32 = arith.constant 0 : i32
    %c0_i32_0 = arith.constant 0 : i32
    %c0_i32_1 = arith.constant 0 : i32
    return %arg0, %c0_i32, %c0_i32_0 : i32, i32, i32
  }
}

module attributes {stable_mosaic.version = 11 : i64} {
  func.func @_row_linear_kernel(%arg0: i32, %arg1: memref<16x32xf32, #tpu.memory_space<vmem>>, %arg2: memref<32x64xf32, #tpu.memory_space<vmem>>, %arg3: memref<1x64xf32, #tpu.memory_space<vmem>>, %arg4: memref<16x64xf32, #tpu.memory_space<vmem>>) attributes {dimension_semantics = [#tpu.dimension_semantics<parallel>], iteration_bounds = array<i64: 1>, scalar_prefetch = 0 : i64, scratch_operands = 0 : i64, tpu.core_type = #tpu.core_type<tc>, window_params = [{transform_indices = @transform_0, window_bounds = array<i64: 16, 32>}, {pipeline_mode = #tpu.pipeline_mode<synchronous>, transform_indices = @transform_1, window_bounds = array<i64: 32, 64>}, {pipeline_mode = #tpu.pipeline_mode<synchronous>, transform_indices = @transform_2, window_bounds = array<i64: 1, 64>}, {transform_indices = @transform_3, window_bounds = array<i64: 16, 64>}]} {
    %c0 = arith.constant 0 : index
    %c0_0 = arith.constant 0 : index
    %0 = vector.load %arg1[%c0, %c0_0] : memref<16x32xf32, #tpu.memory_space<vmem>>, vector<16x32xf32>
    %c0_1 = arith.constant 0 : index
    %c0_2 = arith.constant 0 : index
    %1 = vector.load %arg2[%c0_1, %c0_2] : memref<32x64xf32, #tpu.memory_space<vmem>>, vector<32x64xf32>
    %cst = arith.constant dense<0.000000e+00> : vector<16x64xf32>
    %2 = tpu.matmul %0, %1, %cst {dimension_numbers = #tpu.dot_dimension_numbers<[1], [0], [0], [1], [0, 0, 1, 1], [], []>} : vector<16x32xf32>, vector<32x64xf32>, vector<16x64xf32> -> vector<16x64xf32>
    %c0_3 = arith.constant 0 : index
    %c0_4 = arith.constant 0 : index
    %3 = vector.load %arg3[%c0_3, %c0_4] : memref<1x64xf32, #tpu.memory_space<vmem>>, vector<1x64xf32>
    %4 = vector.broadcast %3 : vector<1x64xf32> to vector<16x64xf32>
    %5 = arith.addf %2, %4 : vector<16x64xf32>
    %c0_5 = arith.constant 0 : index
    %c0_6 = arith.constant 0 : index
    %6 = vector.load %arg4[%c0_5, %c0_6] : memref<16x64xf32, #tpu.memory_space<vmem>>, vector<16x64xf32>
    tpu.vector_store %arg4[%c0_5, %c0_6], %5 {strides = array<i32>} : memref<16x64xf32, #tpu.memory_space<vmem>>, vector<16x64xf32>,
    return
  }
  func.func @transform_0(%arg0: i32) -> (i32, i32) {
    %c0_i32 = arith.constant 0 : i32
    %c0_i32_0 = arith.constant 0 : i32
    return %arg0, %c0_i32 : i32, i32
  }
  func.func @transform_1(%arg0: i32) -> (i32, i32) {
    %c0_i32 = arith.constant 0 : i32
    %c0_i32_0 = arith.constant 0 : i32
    %c0_i32_1 = arith.constant 0 : i32
    return %c0_i32, %c0_i32_0 : i32, i32
  }
  func.func @transform_2(%arg0: i32) -> (i32, i32) {
    %c0_i32 = arith.constant 0 : i32
    %c0_i32_0 = arith.constant 0 : i32
    %c0_i32_1 = arith.constant 0 : i32
    return %c0_i32, %c0_i32_0 : i32, i32
  }
  func.func @transform_3(%arg0: i32) -> (i32, i32) {
    %c0_i32 = arith.constant 0 : i32
    %c0_i32_0 = arith.constant 0 : i32
    return %arg0, %c0_i32 : i32, i32
  }
}

module attributes {stable_mosaic.version = 11 : i64} {
  func.func @_cross_attention_kernel(%arg0: i32, %arg1: memref<16x32xf32, #tpu.memory_space<vmem>>, %arg2: memref<4x16x8xf32, #tpu.memory_space<vmem>>, %arg3: memref<4x16x8xf32, #tpu.memory_space<vmem>>, %arg4: memref<4x32x8xf32, #tpu.memory_space<vmem>>, %arg5: memref<4x1x8xf32, #tpu.memory_space<vmem>>, %arg6: memref<4x8x32xf32, #tpu.memory_space<vmem>>, %arg7: memref<1x32xf32, #tpu.memory_space<vmem>>, %arg8: memref<16x32xf32, #tpu.memory_space<vmem>>) attributes {dimension_semantics = [#tpu.dimension_semantics<parallel>], iteration_bounds = array<i64: 1>, scalar_prefetch = 0 : i64, scratch_operands = 0 : i64, tpu.core_type = #tpu.core_type<tc>, window_params = [{transform_indices = @transform_0, window_bounds = array<i64: 16, 32>}, {pipeline_mode = #tpu.pipeline_mode<synchronous>, transform_indices = @transform_1, window_bounds = array<i64: 4, 16, 8>}, {pipeline_mode = #tpu.pipeline_mode<synchronous>, transform_indices = @transform_2, window_bounds = array<i64: 4, 16, 8>}, {pipeline_mode = #tpu.pipeline_mode<synchronous>, transform_indices = @transform_3, window_bounds = array<i64: 4, 32, 8>}, {pipeline_mode = #tpu.pipeline_mode<synchronous>, transform_indices = @transform_4, window_bounds = array<i64: 4, 1, 8>}, {pipeline_mode = #tpu.pipeline_mode<synchronous>, transform_indices = @transform_5, window_bounds = array<i64: 4, 8, 32>}, {pipeline_mode = #tpu.pipeline_mode<synchronous>, transform_indices = @transform_6, window_bounds = array<i64: 1, 32>}, {transform_indices = @transform_7, window_bounds = array<i64: 16, 32>}]} {
    %c0 = arith.constant 0 : index
    %c0_0 = arith.constant 0 : index
    %0 = vector.load %arg1[%c0, %c0_0] : memref<16x32xf32, #tpu.memory_space<vmem>>, vector<16x32xf32>
    %c0_1 = arith.constant 0 : index
    %c0_2 = arith.constant 0 : index
    %c0_3 = arith.constant 0 : index
    %1 = vector.load %arg4[%c0_1, %c0_2, %c0_3] : memref<4x32x8xf32, #tpu.memory_space<vmem>>, vector<1x32x8xf32>
    %2 = vector.shape_cast %1 : vector<1x32x8xf32> to vector<32x8xf32>
    %cst = arith.constant dense<0.000000e+00> : vector<16x8xf32>
    %3 = tpu.matmul %0, %2, %cst {dimension_numbers = #tpu.dot_dimension_numbers<[1], [0], [0], [1], [0, 0, 1, 1], [], []>} : vector<16x32xf32>, vector<32x8xf32>, vector<16x8xf32> -> vector<16x8xf32>
    %c0_4 = arith.constant 0 : index
    %c0_5 = arith.constant 0 : index
    %c0_6 = arith.constant 0 : index
    %4 = vector.load %arg5[%c0_4, %c0_5, %c0_6] : memref<4x1x8xf32, #tpu.memory_space<vmem>>, vector<1x1x8xf32>
    %5 = vector.shape_cast %4 : vector<1x1x8xf32> to vector<1x8xf32>
    %6 = vector.broadcast %5 : vector<1x8xf32> to vector<16x8xf32>
    %7 = arith.addf %3, %6 : vector<16x8xf32>
    %c0_7 = arith.constant 0 : index
    %c0_8 = arith.constant 0 : index
    %c0_9 = arith.constant 0 : index
    %8 = vector.load %arg2[%c0_7, %c0_8, %c0_9] : memref<4x16x8xf32, #tpu.memory_space<vmem>>, vector<1x16x8xf32>
    %9 = vector.shape_cast %8 : vector<1x16x8xf32> to vector<16x8xf32>
    %c0_10 = arith.constant 0 : index
    %c0_11 = arith.constant 0 : index
    %c0_12 = arith.constant 0 : index
    %10 = vector.load %arg3[%c0_10, %c0_11, %c0_12] : memref<4x16x8xf32, #tpu.memory_space<vmem>>, vector<1x16x8xf32>
    %11 = vector.shape_cast %10 : vector<1x16x8xf32> to vector<16x8xf32>
    %cst_13 = arith.constant dense<0.000000e+00> : vector<16x16xf32>
    %12 = tpu.matmul %7, %9, %cst_13 {dimension_numbers = #tpu.dot_dimension_numbers<[1], [1], [0], [0], [0, 0, 1, 0], [], []>} : vector<16x8xf32>, vector<16x8xf32>, vector<16x16xf32> -> vector<16x16xf32>
    %cst_14 = arith.constant 0.353553385 : f32
    %13 = vector.broadcast %cst_14 : f32 to vector<16x16xf32>
    %14 = arith.mulf %12, %13 : vector<16x16xf32>
    %cst_15 = arith.constant dense<0xFF800000> : vector<16xf32>
    %15 = vector.multi_reduction <maximumf>, %14, %cst_15 [1] : vector<16x16xf32> to vector<16xf32>
    %16 = vector.shape_cast %15 : vector<16xf32> to vector<16x1xf32>
    %17 = vector.broadcast %16 : vector<16x1xf32> to vector<16x16xf32>
    %18 = arith.subf %14, %17 : vector<16x16xf32>
    %19 = math.exp %18 : vector<16x16xf32>
    %cst_16 = arith.constant dense<0.000000e+00> : vector<16xf32>
    %20 = vector.multi_reduction <add>, %19, %cst_16 [1] : vector<16x16xf32> to vector<16xf32>
    %21 = vector.shape_cast %20 : vector<16xf32> to vector<16x1xf32>
    %22 = tpu.reciprocal %21 {approx = true} : vector<16x1xf32> -> vector<16x1xf32>
    %23 = vector.broadcast %22 : vector<16x1xf32> to vector<16x16xf32>
    %24 = arith.mulf %19, %23 : vector<16x16xf32>
    %cst_17 = arith.constant dense<0.000000e+00> : vector<16x8xf32>
    %25 = tpu.matmul %24, %11, %cst_17 {dimension_numbers = #tpu.dot_dimension_numbers<[1], [0], [0], [1], [0, 0, 1, 1], [], []>} : vector<16x16xf32>, vector<16x8xf32>, vector<16x8xf32> -> vector<16x8xf32>
    %c0_18 = arith.constant 0 : index
    %c0_19 = arith.constant 0 : index
    %c0_20 = arith.constant 0 : index
    %26 = vector.load %arg6[%c0_18, %c0_19, %c0_20] : memref<4x8x32xf32, #tpu.memory_space<vmem>>, vector<1x8x32xf32>
    %27 = vector.shape_cast %26 : vector<1x8x32xf32> to vector<8x32xf32>
    %cst_21 = arith.constant dense<0.000000e+00> : vector<16x32xf32>
    %28 = tpu.matmul %25, %27, %cst_21 {dimension_numbers = #tpu.dot_dimension_numbers<[1], [0], [0], [1], [0, 0, 1, 1], [], []>} : vector<16x8xf32>, vector<8x32xf32>, vector<16x32xf32> -> vector<16x32xf32>
    %c1 = arith.constant 1 : index
    %c0_22 = arith.constant 0 : index
    %c0_23 = arith.constant 0 : index
    %29 = vector.load %arg4[%c1, %c0_22, %c0_23] : memref<4x32x8xf32, #tpu.memory_space<vmem>>, vector<1x32x8xf32>
    %30 = vector.shape_cast %29 : vector<1x32x8xf32> to vector<32x8xf32>
    %cst_24 = arith.constant dense<0.000000e+00> : vector<16x8xf32>
    %31 = tpu.matmul %0, %30, %cst_24 {dimension_numbers = #tpu.dot_dimension_numbers<[1], [0], [0], [1], [0, 0, 1, 1], [], []>} : vector<16x32xf32>, vector<32x8xf32>, vector<16x8xf32> -> vector<16x8xf32>
    %c1_25 = arith.constant 1 : index
    %c0_26 = arith.constant 0 : index
    %c0_27 = arith.constant 0 : index
    %32 = vector.load %arg5[%c1_25, %c0_26, %c0_27] : memref<4x1x8xf32, #tpu.memory_space<vmem>>, vector<1x1x8xf32>
    %33 = vector.shape_cast %32 : vector<1x1x8xf32> to vector<1x8xf32>
    %34 = vector.broadcast %33 : vector<1x8xf32> to vector<16x8xf32>
    %35 = arith.addf %31, %34 : vector<16x8xf32>
    %c1_28 = arith.constant 1 : index
    %c0_29 = arith.constant 0 : index
    %c0_30 = arith.constant 0 : index
    %36 = vector.load %arg2[%c1_28, %c0_29, %c0_30] : memref<4x16x8xf32, #tpu.memory_space<vmem>>, vector<1x16x8xf32>
    %37 = vector.shape_cast %36 : vector<1x16x8xf32> to vector<16x8xf32>
    %c1_31 = arith.constant 1 : index
    %c0_32 = arith.constant 0 : index
    %c0_33 = arith.constant 0 : index
    %38 = vector.load %arg3[%c1_31, %c0_32, %c0_33] : memref<4x16x8xf32, #tpu.memory_space<vmem>>, vector<1x16x8xf32>
    %39 = vector.shape_cast %38 : vector<1x16x8xf32> to vector<16x8xf32>
    %cst_34 = arith.constant dense<0.000000e+00> : vector<16x16xf32>
    %40 = tpu.matmul %35, %37, %cst_34 {dimension_numbers = #tpu.dot_dimension_numbers<[1], [1], [0], [0], [0, 0, 1, 0], [], []>} : vector<16x8xf32>, vector<16x8xf32>, vector<16x16xf32> -> vector<16x16xf32>
    %cst_35 = arith.constant 0.353553385 : f32
    %41 = vector.broadcast %cst_35 : f32 to vector<16x16xf32>
    %42 = arith.mulf %40, %41 : vector<16x16xf32>
    %cst_36 = arith.constant dense<0xFF800000> : vector<16xf32>
    %43 = vector.multi_reduction <maximumf>, %42, %cst_36 [1] : vector<16x16xf32> to vector<16xf32>
    %44 = vector.shape_cast %43 : vector<16xf32> to vector<16x1xf32>
    %45 = vector.broadcast %44 : vector<16x1xf32> to vector<16x16xf32>
    %46 = arith.subf %42, %45 : vector<16x16xf32>
    %47 = math.exp %46 : vector<16x16xf32>
    %cst_37 = arith.constant dense<0.000000e+00> : vector<16xf32>
    %48 = vector.multi_reduction <add>, %47, %cst_37 [1] : vector<16x16xf32> to vector<16xf32>
    %49 = vector.shape_cast %48 : vector<16xf32> to vector<16x1xf32>
    %50 = tpu.reciprocal %49 {approx = true} : vector<16x1xf32> -> vector<16x1xf32>
    %51 = vector.broadcast %50 : vector<16x1xf32> to vector<16x16xf32>
    %52 = arith.mulf %47, %51 : vector<16x16xf32>
    %cst_38 = arith.constant dense<0.000000e+00> : vector<16x8xf32>
    %53 = tpu.matmul %52, %39, %cst_38 {dimension_numbers = #tpu.dot_dimension_numbers<[1], [0], [0], [1], [0, 0, 1, 1], [], []>} : vector<16x16xf32>, vector<16x8xf32>, vector<16x8xf32> -> vector<16x8xf32>
    %c1_39 = arith.constant 1 : index
    %c0_40 = arith.constant 0 : index
    %c0_41 = arith.constant 0 : index
    %54 = vector.load %arg6[%c1_39, %c0_40, %c0_41] : memref<4x8x32xf32, #tpu.memory_space<vmem>>, vector<1x8x32xf32>
    %55 = vector.shape_cast %54 : vector<1x8x32xf32> to vector<8x32xf32>
    %cst_42 = arith.constant dense<0.000000e+00> : vector<16x32xf32>
    %56 = tpu.matmul %53, %55, %cst_42 {dimension_numbers = #tpu.dot_dimension_numbers<[1], [0], [0], [1], [0, 0, 1, 1], [], []>} : vector<16x8xf32>, vector<8x32xf32>, vector<16x32xf32> -> vector<16x32xf32>
    %57 = arith.addf %28, %56 : vector<16x32xf32>
    %c2 = arith.constant 2 : index
    %c0_43 = arith.constant 0 : index
    %c0_44 = arith.constant 0 : index
    %58 = vector.load %arg4[%c2, %c0_43, %c0_44] : memref<4x32x8xf32, #tpu.memory_space<vmem>>, vector<1x32x8xf32>
    %59 = vector.shape_cast %58 : vector<1x32x8xf32> to vector<32x8xf32>
    %cst_45 = arith.constant dense<0.000000e+00> : vector<16x8xf32>
    %60 = tpu.matmul %0, %59, %cst_45 {dimension_numbers = #tpu.dot_dimension_numbers<[1], [0], [0], [1], [0, 0, 1, 1], [], []>} : vector<16x32xf32>, vector<32x8xf32>, vector<16x8xf32> -> vector<16x8xf32>
    %c2_46 = arith.constant 2 : index
    %c0_47 = arith.constant 0 : index
    %c0_48 = arith.constant 0 : index
    %61 = vector.load %arg5[%c2_46, %c0_47, %c0_48] : memref<4x1x8xf32, #tpu.memory_space<vmem>>, vector<1x1x8xf32>
    %62 = vector.shape_cast %61 : vector<1x1x8xf32> to vector<1x8xf32>
    %63 = vector.broadcast %62 : vector<1x8xf32> to vector<16x8xf32>
    %64 = arith.addf %60, %63 : vector<16x8xf32>
    %c2_49 = arith.constant 2 : index
    %c0_50 = arith.constant 0 : index
    %c0_51 = arith.constant 0 : index
    %65 = vector.load %arg2[%c2_49, %c0_50, %c0_51] : memref<4x16x8xf32, #tpu.memory_space<vmem>>, vector<1x16x8xf32>
    %66 = vector.shape_cast %65 : vector<1x16x8xf32> to vector<16x8xf32>
    %c2_52 = arith.constant 2 : index
    %c0_53 = arith.constant 0 : index
    %c0_54 = arith.constant 0 : index
    %67 = vector.load %arg3[%c2_52, %c0_53, %c0_54] : memref<4x16x8xf32, #tpu.memory_space<vmem>>, vector<1x16x8xf32>
    %68 = vector.shape_cast %67 : vector<1x16x8xf32> to vector<16x8xf32>
    %cst_55 = arith.constant dense<0.000000e+00> : vector<16x16xf32>
    %69 = tpu.matmul %64, %66, %cst_55 {dimension_numbers = #tpu.dot_dimension_numbers<[1], [1], [0], [0], [0, 0, 1, 0], [], []>} : vector<16x8xf32>, vector<16x8xf32>, vector<16x16xf32> -> vector<16x16xf32>
    %cst_56 = arith.constant 0.353553385 : f32
    %70 = vector.broadcast %cst_56 : f32 to vector<16x16xf32>
    %71 = arith.mulf %69, %70 : vector<16x16xf32>
    %cst_57 = arith.constant dense<0xFF800000> : vector<16xf32>
    %72 = vector.multi_reduction <maximumf>, %71, %cst_57 [1] : vector<16x16xf32> to vector<16xf32>
    %73 = vector.shape_cast %72 : vector<16xf32> to vector<16x1xf32>
    %74 = vector.broadcast %73 : vector<16x1xf32> to vector<16x16xf32>
    %75 = arith.subf %71, %74 : vector<16x16xf32>
    %76 = math.exp %75 : vector<16x16xf32>
    %cst_58 = arith.constant dense<0.000000e+00> : vector<16xf32>
    %77 = vector.multi_reduction <add>, %76, %cst_58 [1] : vector<16x16xf32> to vector<16xf32>
    %78 = vector.shape_cast %77 : vector<16xf32> to vector<16x1xf32>
    %79 = tpu.reciprocal %78 {approx = true} : vector<16x1xf32> -> vector<16x1xf32>
    %80 = vector.broadcast %79 : vector<16x1xf32> to vector<16x16xf32>
    %81 = arith.mulf %76, %80 : vector<16x16xf32>
    %cst_59 = arith.constant dense<0.000000e+00> : vector<16x8xf32>
    %82 = tpu.matmul %81, %68, %cst_59 {dimension_numbers = #tpu.dot_dimension_numbers<[1], [0], [0], [1], [0, 0, 1, 1], [], []>} : vector<16x16xf32>, vector<16x8xf32>, vector<16x8xf32> -> vector<16x8xf32>
    %c2_60 = arith.constant 2 : index
    %c0_61 = arith.constant 0 : index
    %c0_62 = arith.constant 0 : index
    %83 = vector.load %arg6[%c2_60, %c0_61, %c0_62] : memref<4x8x32xf32, #tpu.memory_space<vmem>>, vector<1x8x32xf32>
    %84 = vector.shape_cast %83 : vector<1x8x32xf32> to vector<8x32xf32>
    %cst_63 = arith.constant dense<0.000000e+00> : vector<16x32xf32>
    %85 = tpu.matmul %82, %84, %cst_63 {dimension_numbers = #tpu.dot_dimension_numbers<[1], [0], [0], [1], [0, 0, 1, 1], [], []>} : vector<16x8xf32>, vector<8x32xf32>, vector<16x32xf32> -> vector<16x32xf32>
    %86 = arith.addf %57, %85 : vector<16x32xf32>
    %c3 = arith.constant 3 : index
    %c0_64 = arith.constant 0 : index
    %c0_65 = arith.constant 0 : index
    %87 = vector.load %arg4[%c3, %c0_64, %c0_65] : memref<4x32x8xf32, #tpu.memory_space<vmem>>, vector<1x32x8xf32>
    %88 = vector.shape_cast %87 : vector<1x32x8xf32> to vector<32x8xf32>
    %cst_66 = arith.constant dense<0.000000e+00> : vector<16x8xf32>
    %89 = tpu.matmul %0, %88, %cst_66 {dimension_numbers = #tpu.dot_dimension_numbers<[1], [0], [0], [1], [0, 0, 1, 1], [], []>} : vector<16x32xf32>, vector<32x8xf32>, vector<16x8xf32> -> vector<16x8xf32>
    %c3_67 = arith.constant 3 : index
    %c0_68 = arith.constant 0 : index
    %c0_69 = arith.constant 0 : index
    %90 = vector.load %arg5[%c3_67, %c0_68, %c0_69] : memref<4x1x8xf32, #tpu.memory_space<vmem>>, vector<1x1x8xf32>
    %91 = vector.shape_cast %90 : vector<1x1x8xf32> to vector<1x8xf32>
    %92 = vector.broadcast %91 : vector<1x8xf32> to vector<16x8xf32>
    %93 = arith.addf %89, %92 : vector<16x8xf32>
    %c3_70 = arith.constant 3 : index
    %c0_71 = arith.constant 0 : index
    %c0_72 = arith.constant 0 : index
    %94 = vector.load %arg2[%c3_70, %c0_71, %c0_72] : memref<4x16x8xf32, #tpu.memory_space<vmem>>, vector<1x16x8xf32>
    %95 = vector.shape_cast %94 : vector<1x16x8xf32> to vector<16x8xf32>
    %c3_73 = arith.constant 3 : index
    %c0_74 = arith.constant 0 : index
    %c0_75 = arith.constant 0 : index
    %96 = vector.load %arg3[%c3_73, %c0_74, %c0_75] : memref<4x16x8xf32, #tpu.memory_space<vmem>>, vector<1x16x8xf32>
    %97 = vector.shape_cast %96 : vector<1x16x8xf32> to vector<16x8xf32>
    %cst_76 = arith.constant dense<0.000000e+00> : vector<16x16xf32>
    %98 = tpu.matmul %93, %95, %cst_76 {dimension_numbers = #tpu.dot_dimension_numbers<[1], [1], [0], [0], [0, 0, 1, 0], [], []>} : vector<16x8xf32>, vector<16x8xf32>, vector<16x16xf32> -> vector<16x16xf32>
    %cst_77 = arith.constant 0.353553385 : f32
    %99 = vector.broadcast %cst_77 : f32 to vector<16x16xf32>
    %100 = arith.mulf %98, %99 : vector<16x16xf32>
    %cst_78 = arith.constant dense<0xFF800000> : vector<16xf32>
    %101 = vector.multi_reduction <maximumf>, %100, %cst_78 [1] : vector<16x16xf32> to vector<16xf32>
    %102 = vector.shape_cast %101 : vector<16xf32> to vector<16x1xf32>
    %103 = vector.broadcast %102 : vector<16x1xf32> to vector<16x16xf32>
    %104 = arith.subf %100, %103 : vector<16x16xf32>
    %105 = math.exp %104 : vector<16x16xf32>
    %cst_79 = arith.constant dense<0.000000e+00> : vector<16xf32>
    %106 = vector.multi_reduction <add>, %105, %cst_79 [1] : vector<16x16xf32> to vector<16xf32>
    %107 = vector.shape_cast %106 : vector<16xf32> to vector<16x1xf32>
    %108 = tpu.reciprocal %107 {approx = true} : vector<16x1xf32> -> vector<16x1xf32>
    %109 = vector.broadcast %108 : vector<16x1xf32> to vector<16x16xf32>
    %110 = arith.mulf %105, %109 : vector<16x16xf32>
    %cst_80 = arith.constant dense<0.000000e+00> : vector<16x8xf32>
    %111 = tpu.matmul %110, %97, %cst_80 {dimension_numbers = #tpu.dot_dimension_numbers<[1], [0], [0], [1], [0, 0, 1, 1], [], []>} : vector<16x16xf32>, vector<16x8xf32>, vector<16x8xf32> -> vector<16x8xf32>
    %c3_81 = arith.constant 3 : index
    %c0_82 = arith.constant 0 : index
    %c0_83 = arith.constant 0 : index
    %112 = vector.load %arg6[%c3_81, %c0_82, %c0_83] : memref<4x8x32xf32, #tpu.memory_space<vmem>>, vector<1x8x32xf32>
    %113 = vector.shape_cast %112 : vector<1x8x32xf32> to vector<8x32xf32>
    %cst_84 = arith.constant dense<0.000000e+00> : vector<16x32xf32>
    %114 = tpu.matmul %111, %113, %cst_84 {dimension_numbers = #tpu.dot_dimension_numbers<[1], [0], [0], [1], [0, 0, 1, 1], [], []>} : vector<16x8xf32>, vector<8x32xf32>, vector<16x32xf32> -> vector<16x32xf32>
    %115 = arith.addf %86, %114 : vector<16x32xf32>
    %c0_85 = arith.constant 0 : index
    %c0_86 = arith.constant 0 : index
    %116 = vector.load %arg7[%c0_85, %c0_86] : memref<1x32xf32, #tpu.memory_space<vmem>>, vector<1x32xf32>
    %117 = vector.broadcast %116 : vector<1x32xf32> to vector<16x32xf32>
    %118 = arith.addf %115, %117 : vector<16x32xf32>
    %c0_87 = arith.constant 0 : index
    %c0_88 = arith.constant 0 : index
    %119 = vector.load %arg8[%c0_87, %c0_88] : memref<16x32xf32, #tpu.memory_space<vmem>>, vector<16x32xf32>
    tpu.vector_store %arg8[%c0_87, %c0_88], %118 {strides = array<i32>} : memref<16x32xf32, #tpu.memory_space<vmem>>, vector<16x32xf32>,
    return
  }
  func.func @transform_0(%arg0: i32) -> (i32, i32) {
    %c0_i32 = arith.constant 0 : i32
    %c0_i32_0 = arith.constant 0 : i32
    return %arg0, %c0_i32 : i32, i32
  }
  func.func @transform_1(%arg0: i32) -> (i32, i32, i32) {
    %c0_i32 = arith.constant 0 : i32
    %c0_i32_0 = arith.constant 0 : i32
    %c0_i32_1 = arith.constant 0 : i32
    %c0_i32_2 = arith.constant 0 : i32
    return %c0_i32, %c0_i32_0, %c0_i32_1 : i32, i32, i32
  }
  func.func @transform_2(%arg0: i32) -> (i32, i32, i32) {
    %c0_i32 = arith.constant 0 : i32
    %c0_i32_0 = arith.constant 0 : i32
    %c0_i32_1 = arith.constant 0 : i32
    %c0_i32_2 = arith.constant 0 : i32
    return %c0_i32, %c0_i32_0, %c0_i32_1 : i32, i32, i32
  }
  func.func @transform_3(%arg0: i32) -> (i32, i32, i32) {
    %c0_i32 = arith.constant 0 : i32
    %c0_i32_0 = arith.constant 0 : i32
    %c0_i32_1 = arith.constant 0 : i32
    %c0_i32_2 = arith.constant 0 : i32
    return %c0_i32, %c0_i32_0, %c0_i32_1 : i32, i32, i32
  }
  func.func @transform_4(%arg0: i32) -> (i32, i32, i32) {
    %c0_i32 = arith.constant 0 : i32
    %c0_i32_0 = arith.constant 0 : i32
    %c0_i32_1 = arith.constant 0 : i32
    %c0_i32_2 = arith.constant 0 : i32
    return %c0_i32, %c0_i32_0, %c0_i32_1 : i32, i32, i32
  }
  func.func @transform_5(%arg0: i32) -> (i32, i32, i32) {
    %c0_i32 = arith.constant 0 : i32
    %c0_i32_0 = arith.constant 0 : i32
    %c0_i32_1 = arith.constant 0 : i32
    %c0_i32_2 = arith.constant 0 : i32
    return %c0_i32, %c0_i32_0, %c0_i32_1 : i32, i32, i32
  }
  func.func @transform_6(%arg0: i32) -> (i32, i32) {
    %c0_i32 = arith.constant 0 : i32
    %c0_i32_0 = arith.constant 0 : i32
    %c0_i32_1 = arith.constant 0 : i32
    return %c0_i32, %c0_i32_0 : i32, i32
  }
  func.func @transform_7(%arg0: i32) -> (i32, i32) {
    %c0_i32 = arith.constant 0 : i32
    %c0_i32_0 = arith.constant 0 : i32
    return %arg0, %c0_i32 : i32, i32
  }
}

</mosaic_0001>

<llo_original>
// kernel: encoder_pca_forward.4
$region0: #{encoder_pca_forward.4}
  #allocation0 [shape = 'u32[]', space=smem, size = 0x4, offset = 0x4, fixed_abs, tag = 'smem constant byte address 0x4 - core index']
  #allocation1 [shape = 'u32[72,128]{1,0:T(1,128)}', space=vmem, size = 0x9000, scoped, tag = 'internal scratch']
  %s0 = inlined_call_operand.vmem [shape: f32[16,16], index: 0, kind: input, shape index: {}]
  %s1 = inlined_call_operand.vmem [shape: f32[16,32], index: 1, kind: input, shape index: {}]
  %s2 = inlined_call_operand.vmem [shape: f32[1,32], index: 2, kind: input, shape index: {}]
  %s3 = inlined_call_operand.vmem [shape: f32[16,32], index: 3, kind: output, shape index: {}]
  %s4 = sld [smem:[#allocation0]]
  $region22: #{encoder_pca_forward.4} parent=0
    _
  %s6 = ssub.s32 1, %s4
  %s7 = scalar_select 0, %s6, %s4
  // Predicated region
  $region2: #{encoder_pca_forward.4} parent=0 // pred_check
    _
  $region3: #{encoder_pca_forward.4} parent=0 // pred_check_branch
    %9 = sbr.rel (0) target = $region5
  $region4: #{encoder_pca_forward.4} parent=0 // pred_region
    _
  $region5: #{encoder_pca_forward.4} parent=0 // pred_fallthru
    _
  // Predicated region
  $region6: #{encoder_pca_forward.4} parent=0 // pred_check
    _
  $region7: #{encoder_pca_forward.4} parent=0 // pred_check_branch
    %11 = sbr.rel (0) target = $region9
  $region8: #{encoder_pca_forward.4} parent=0 // pred_region
    _
  $region9: #{encoder_pca_forward.4} parent=0 // pred_fallthru
    _
  // Predicated region
  $region10: #{encoder_pca_forward.4} parent=0 // pred_check
    _
  $region11: #{encoder_pca_forward.4} parent=0 // pred_check_branch
    %13 = sbr.rel (0) target = $region13
  $region12: #{encoder_pca_forward.4} parent=0 // pred_region
    _
  $region13: #{encoder_pca_forward.4} parent=0 // pred_fallthru
    _
  %v14 = vld [vmem:[%s0] sm:$0xff]
  %v15 = vld [vmem:[%s0 + $0x8] sm:$0xff]
  %v16 = vld [vmem:[%s1] sm:$0xff]
  %v17 = vld [vmem:[%s1 + $0x8] sm:$0xff]
  %v18 = vld [vmem:[%s2] sm:$0x1]
  %v20 = vperm.slane %v18, 0
  %vm22 = vcmask 130048
  %v24 = vsel %vm22, %v14, 0
  %v27 = vsel %vm22, %v15, 0
  %29 = vmatpush.msra.mxu0 0.0
  %30 = vmatpush.msra.mxu0 0.0
  %31 = vmatpush.msra.mxu0 0.0
  %32 = vmatpush.msra.mxu0 0.0
  %33 = vmatpush.msra.mxu0 0.0
  %34 = vmatpush.msra.mxu0 0.0
  %35 = vmatpush.msra.mxu0 0.0
  %36 = vmatpush.msra.mxu0 0.0
  %37 = vmatpush.msra.mxu0 0.0
  %38 = vmatpush.msra.mxu0 0.0
  %39 = vmatpush.msra.mxu0 0.0
  %40 = vmatpush.msra.mxu0 0.0
  %41 = vmatpush.msra.mxu0 0.0
  %42 = vmatpush.msra.mxu0 0.0
  %43 = vmatpush.msra.mxu0 %v17
  %44 = vmatpush.msra.mxu0 %v16
  %45 = vmatmul.f32.gmra.mxu0 %v24
  %v46 = vpop.f32.mrf.mxu0
  %v47 = vadd.f32 %v20, %v46
  %48 = vmatmul.f32.gmra.mxu0 %v27
  %v49 = vpop.f32.mrf.mxu0
  %v50 = vadd.f32 %v20, %v49
  %51 = vdwg.mxu0
  %vm52 = vcmask 261120
  %53 = vst.msk [vmem:[%s3] sm:$0xff] %vm52, %v47
  %54 = vst.msk [vmem:[%s3 + $0x8] sm:$0xff] %vm52, %v50
  // Predicated region
  $region14: #{encoder_pca_forward.4} parent=0 // pred_check
    _
  $region15: #{encoder_pca_forward.4} parent=0 // pred_check_branch
    %56 = sbr.rel (0) target = $region17
  $region16: #{encoder_pca_forward.4} parent=0 // pred_region
    _
  $region17: #{encoder_pca_forward.4} parent=0 // pred_fallthru
    _
  // Predicated region
  $region18: #{encoder_pca_forward.4} parent=0 // pred_check
    _
  $region19: #{encoder_pca_forward.4} parent=0 // pred_check_branch
    %58 = sbr.rel (0) target = $region21
  $region20: #{encoder_pca_forward.4} parent=0 // pred_region
    _
  $region21: #{encoder_pca_forward.4} parent=0 // pred_fallthru
    _

// kernel: encoder_pca_forward.6
$region0: #{encoder_pca_forward.6}
  #allocation0 [shape = 'u32[]', space=smem, size = 0x4, offset = 0x4, fixed_abs, tag = 'smem constant byte address 0x4 - core index']
  #allocation1 [shape = 'u32[72,128]{1,0:T(1,128)}', space=vmem, size = 0x9000, scoped, tag = 'internal scratch']
  %s0 = inlined_call_operand.vmem [shape: f32[16,32], index: 0, kind: input, shape index: {}]
  %s1 = inlined_call_operand.vmem [shape: f32[32,64], index: 1, kind: input, shape index: {}]
  %s2 = inlined_call_operand.vmem [shape: f32[1,64], index: 2, kind: input, shape index: {}]
  %s3 = inlined_call_operand.vmem [shape: f32[16,64], index: 3, kind: output, shape index: {}]
  %s4 = sld [smem:[#allocation0]]
  $region22: #{encoder_pca_forward.6} parent=0
    _
  %s6 = ssub.s32 1, %s4
  %s7 = scalar_select 0, %s6, %s4
  // Predicated region
  $region2: #{encoder_pca_forward.6} parent=0 // pred_check
    _
  $region3: #{encoder_pca_forward.6} parent=0 // pred_check_branch
    %9 = sbr.rel (0) target = $region5
  $region4: #{encoder_pca_forward.6} parent=0 // pred_region
    _
  $region5: #{encoder_pca_forward.6} parent=0 // pred_fallthru
    _
  // Predicated region
  $region6: #{encoder_pca_forward.6} parent=0 // pred_check
    _
  $region7: #{encoder_pca_forward.6} parent=0 // pred_check_branch
    %11 = sbr.rel (0) target = $region9
  $region8: #{encoder_pca_forward.6} parent=0 // pred_region
    _
  $region9: #{encoder_pca_forward.6} parent=0 // pred_fallthru
    _
  // Predicated region
  $region10: #{encoder_pca_forward.6} parent=0 // pred_check
    _
  $region11: #{encoder_pca_forward.6} parent=0 // pred_check_branch
    %13 = sbr.rel (0) target = $region13
  $region12: #{encoder_pca_forward.6} parent=0 // pred_region
    _
  $region13: #{encoder_pca_forward.6} parent=0 // pred_fallthru
    _
  %v14 = vld [vmem:[%s0] sm:$0xff]
  %v15 = vld [vmem:[%s0 + $0x8] sm:$0xff]
  %v16 = vld [vmem:[%s1] sm:$0xff]
  %v17 = vld [vmem:[%s1 + $0x8] sm:$0xff]
  %v18 = vld [vmem:[%s1 + $0x10] sm:$0xff]
  %v19 = vld [vmem:[%s1 + $0x18] sm:$0xff]
  %v20 = vld [vmem:[%s2] sm:$0x1]
  %v22 = vperm.slane %v20, 0
  %vm24 = vcmask 261120
  %v26 = vsel %vm24, %v14, 0
  %v29 = vsel %vm24, %v15, 0
  %31 = vmatpush.msra.mxu0 0.0
  %32 = vmatpush.msra.mxu0 0.0
  %33 = vmatpush.msra.mxu0 0.0
  %34 = vmatpush.msra.mxu0 0.0
  %35 = vmatpush.msra.mxu0 0.0
  %36 = vmatpush.msra.mxu0 0.0
  %37 = vmatpush.msra.mxu0 0.0
  %38 = vmatpush.msra.mxu0 0.0
  %39 = vmatpush.msra.mxu0 0.0
  %40 = vmatpush.msra.mxu0 0.0
  %41 = vmatpush.msra.mxu0 0.0
  %42 = vmatpush.msra.mxu0 0.0
  %43 = vmatpush.msra.mxu0 %v19
  %44 = vmatpush.msra.mxu0 %v18
  %45 = vmatpush.msra.mxu0 %v17
  %46 = vmatpush.msra.mxu0 %v16
  %47 = vmatmul.f32.gmra.mxu0 %v26
  %v48 = vpop.f32.mrf.mxu0
  %v49 = vadd.f32 %v22, %v48
  %50 = vmatmul.f32.gmra.mxu0 %v29
  %v51 = vpop.f32.mrf.mxu0
  %v52 = vadd.f32 %v22, %v51
  %53 = vdwg.mxu0
  %vm54 = vcmask 523264
  %55 = vst.msk [vmem:[%s3] sm:$0xff] %vm54, %v49
  %56 = vst.msk [vmem:[%s3 + $0x8] sm:$0xff] %vm54, %v52
  // Predicated region
  $region14: #{encoder_pca_forward.6} parent=0 // pred_check
    _
  $region15: #{encoder_pca_forward.6} parent=0 // pred_check_branch
    %58 = sbr.rel (0) target = $region17
  $region16: #{encoder_pca_forward.6} parent=0 // pred_region
    _
  $region17: #{encoder_pca_forward.6} parent=0 // pred_fallthru
    _
  // Predicated region
  $region18: #{encoder_pca_forward.6} parent=0 // pred_check
    _
  $region19: #{encoder_pca_forward.6} parent=0 // pred_check_branch
    %60 = sbr.rel (0) target = $region21
  $region20: #{encoder_pca_forward.6} parent=0 // pred_region
    _
  $region21: #{encoder_pca_forward.6} parent=0 // pred_fallthru
    _

// kernel: encoder_pca_forward.7
$region0: #{encoder_pca_forward.7}
  #allocation0 [shape = 'u32[]', space=smem, size = 0x4, offset = 0x4, fixed_abs, tag = 'smem constant byte address 0x4 - core index']
  #allocation1 [shape = 'u32[72,128]{1,0:T(1,128)}', space=vmem, size = 0x9000, scoped, tag = 'internal scratch']
  %s0 = inlined_call_operand.vmem [shape: f32[16,32], index: 0, kind: input, shape index: {}]
  %s1 = inlined_call_operand.vmem [shape: f32[4,16,8], index: 1, kind: input, shape index: {}]
  %s2 = inlined_call_operand.vmem [shape: f32[4,16,8], index: 2, kind: input, shape index: {}]
  %s3 = inlined_call_operand.vmem [shape: f32[4,32,8], index: 3, kind: input, shape index: {}]
  %s4 = inlined_call_operand.vmem [shape: f32[4,1,8], index: 4, kind: input, shape index: {}]
  %s5 = inlined_call_operand.vmem [shape: f32[4,8,32], index: 5, kind: input, shape index: {}]
  %s6 = inlined_call_operand.vmem [shape: f32[1,32], index: 6, kind: input, shape index: {}]
  %s7 = inlined_call_operand.hbm [shape: f32[16,32], index: 7, kind: output, shape index: {}]
  %s8 = sld [smem:[#allocation0]]
  $region38: #{encoder_pca_forward.7} parent=0
    _
  %s10 = ssub.s32 1, %s8
  %s11 = scalar_select 0, %s10, %s8
  $region1: #{encoder_pca_forward.7} parent=0
    #allocation2 [shape = 'u8[8192]{0}', space=vmem, size = 0x2000, scoped, tag = 'output window, operand 0, single buffered']
    #allocation3 [shape = 's32[1]{0}', space=sflag, size = 0x4, scoped, tag = 'scoped memory for encoder_pca_forward.7']
    %12 = vsyncpa [#allocation3], 0
    // Predicated region
    $region2: #{encoder_pca_forward.7} parent=1 // pred_check
      _
    $region3: #{encoder_pca_forward.7} parent=1 // pred_check_branch
      %14 = sbr.rel (0) target = $region5
    $region4: #{encoder_pca_forward.7} parent=1 // pred_region
      _
    $region5: #{encoder_pca_forward.7} parent=1 // pred_fallthru
      _
    // Predicated region
    $region6: #{encoder_pca_forward.7} parent=1 // pred_check
      _
    $region7: #{encoder_pca_forward.7} parent=1 // pred_check_branch
      %16 = sbr.rel (0) target = $region9
    $region8: #{encoder_pca_forward.7} parent=1 // pred_region
      _
    $region9: #{encoder_pca_forward.7} parent=1 // pred_fallthru
      _
    // Predicated region
    $region10: #{encoder_pca_forward.7} parent=1 // pred_check
      _
    $region11: #{encoder_pca_forward.7} parent=1 // pred_check_branch
      %18 = sbr.rel (0) target = $region13
    $region12: #{encoder_pca_forward.7} parent=1 // pred_region
      _
    $region13: #{encoder_pca_forward.7} parent=1 // pred_fallthru
      _
    // Predicated region
    $region14: #{encoder_pca_forward.7} parent=1 // pred_check
      _
    $region15: #{encoder_pca_forward.7} parent=1 // pred_check_branch
      %20 = sbr.rel (0) target = $region17
    $region16: #{encoder_pca_forward.7} parent=1 // pred_region
      _
    $region17: #{encoder_pca_forward.7} parent=1 // pred_fallthru
      _
    // Predicated region
    $region18: #{encoder_pca_forward.7} parent=1 // pred_check
      _
    $region19: #{encoder_pca_forward.7} parent=1 // pred_check_branch
      %22 = sbr.rel (0) target = $region21
    $region20: #{encoder_pca_forward.7} parent=1 // pred_region
      _
    $region21: #{encoder_pca_forward.7} parent=1 // pred_fallthru
      _
    // Predicated region
    $region22: #{encoder_pca_forward.7} parent=1 // pred_check
      _
    $region23: #{encoder_pca_forward.7} parent=1 // pred_check_branch
      %24 = sbr.rel (0) target = $region25
    $region24: #{encoder_pca_forward.7} parent=1 // pred_region
      _
    $region25: #{encoder_pca_forward.7} parent=1 // pred_fallthru
      _
    // Predicated region
    $region26: #{encoder_pca_forward.7} parent=1 // pred_check
      _
    $region27: #{encoder_pca_forward.7} parent=1 // pred_check_branch
      %26 = sbr.rel (0) target = $region29
    $region28: #{encoder_pca_forward.7} parent=1 // pred_region
      _
    $region29: #{encoder_pca_forward.7} parent=1 // pred_fallthru
      _
    %v27 = vld [vmem:[%s0] sm:$0xff]
    %v28 = vld [vmem:[%s0 + $0x8] sm:$0xff]
    %v29 = vld [vmem:[%s3] sm:$0xff]
    %v30 = vld [vmem:[%s3 + $0x8] sm:$0xff]
    %v31 = vld [vmem:[%s3 + $0x10] sm:$0xff]
    %v32 = vld [vmem:[%s3 + $0x18] sm:$0xff]
    %v33 = vld [vmem:[%s4] sm:$0x1]
    %v35 = vperm.slane %v33, 0
    %vm37 = vcmask 261120
    %v39 = vsel %vm37, %v27, 0
    %v42 = vsel %vm37, %v28, 0
    %44 = vmatpush.msra.mxu0 0.0
    %45 = vmatpush.msra.mxu0 0.0
    %46 = vmatpush.msra.mxu0 0.0
    %47 = vmatpush.msra.mxu0 0.0
    %48 = vmatpush.msra.mxu0 0.0
    %49 = vmatpush.msra.mxu0 0.0
    %50 = vmatpush.msra.mxu0 0.0
    %51 = vmatpush.msra.mxu0 0.0
    %52 = vmatpush.msra.mxu0 0.0
    %53 = vmatpush.msra.mxu0 0.0
    %54 = vmatpush.msra.mxu0 0.0
    %55 = vmatpush.msra.mxu0 0.0
    %56 = vmatpush.msra.mxu0 %v32
    %57 = vmatpush.msra.mxu0 %v31
    %58 = vmatpush.msra.mxu0 %v30
    %59 = vmatpush.msra.mxu0 %v29
    %60 = vmatmul.f32.gmra.mxu0 %v39
    %v61 = vpop.f32.mrf.mxu0
    %v62 = vadd.f32 %v35, %v61
    %63 = vmatmul.f32.gmra.mxu0 %v42
    %v64 = vpop.f32.mrf.mxu0
    %v65 = vadd.f32 %v35, %v64
    %66 = vdwg.mxu0
    %v67 = vld [vmem:[%s1] sm:$0xff]
    %v68 = vld [vmem:[%s1 + $0x8] sm:$0xff]
    %v69 = vld [vmem:[%s2] sm:$0xff]
    %v70 = vld [vmem:[%s2 + $0x8] sm:$0xff]
    %vm71 = vcmask 64512
    %v73 = vsel %vm71, %v62, 0
    %v76 = vsel %vm71, %v65, 0
    %v79 = vsel %vm71, %v67, 0
    %v82 = vsel %vm71, %v68, 0
    %84 = vmatpush.xpose.msra.mxu0 0.0
    %85 = vmatpush.xpose.msra.mxu0 0.0
    %86 = vmatpush.xpose.msra.mxu0 0.0
    %87 = vmatpush.xpose.msra.mxu0 0.0
    %88 = vmatpush.xpose.msra.mxu0 0.0
    %89 = vmatpush.xpose.msra.mxu0 0.0
    %90 = vmatpush.xpose.msra.mxu0 0.0
    %91 = vmatpush.xpose.msra.mxu0 0.0
    %92 = vmatpush.xpose.msra.mxu0 0.0
    %93 = vmatpush.xpose.msra.mxu0 0.0
    %94 = vmatpush.xpose.msra.mxu0 0.0
    %95 = vmatpush.xpose.msra.mxu0 0.0
    %96 = vmatpush.xpose.msra.mxu0 0.0
    %97 = vmatpush.xpose.msra.mxu0 0.0
    %98 = vmatpush.xpose.msra.mxu0 %v82
    %99 = vmatpush.xpose.msra.mxu0 %v79
    %100 = vmatmul.f32.gmra.mxu0 %v73
    %v101 = vpop.f32.mrf.mxu0
    %v102 = vadd.f32 0.0, %v101
    %103 = vmatmul.f32.gmra.mxu0 %v76
    %v104 = vpop.f32.mrf.mxu0
    %v105 = vadd.f32 0.0, %v104
    %106 = vdwg.mxu0
    %v107 = vmul.f32 %v102, 0.35355338
    %v108 = vmul.f32 %v105, 0.35355338
    %vm109 = vcmask 130048
    %v110 = vsel %vm109, %v107, -inf
    %111 = vmax.xlane.f32.xlu0 %v110
    %v112 = vpop.xlane.xlu0 %111
    %v113 = vsel %vm109, %v108, -inf
    %114 = vmax.xlane.f32.xlu0 %v113
    %v115 = vpop.xlane.xlu0 %114
    %v116 = vsub.f32 %v107, %v112
    %v117 = vsub.f32 %v108, %v115
    %v118 = vmul.f32 %v116, 1.442695
    %v119 = vpow.pop %v118
    %v120 = vmul.f32 %v117, 1.442695
    %v121 = vpow.pop %v120
    %v122 = vsel %vm109, %v119, 0.0
    %123 = vadd.xlane.f32.xlu0 %v122
    %v124 = vpop.xlane.xlu0 %123
    %v125 = vsel %vm109, %v121, 0.0
    %126 = vadd.xlane.f32.xlu0 %v125
    %v127 = vpop.xlane.xlu0 %126
    %v128 = vrcp.pop %v124
    %v129 = vrcp.pop %v127
    %v130 = vmul.f32 %v119, %v128
    %v131 = vmul.f32 %v121, %v129
    %v133 = vsel %vm109, %v130, 0
    %v136 = vsel %vm109, %v131, 0
    %138 = vmatpush.msra.mxu0 0.0
    %139 = vmatpush.msra.mxu0 0.0
    %140 = vmatpush.msra.mxu0 0.0
    %141 = vmatpush.msra.mxu0 0.0
    %142 = vmatpush.msra.mxu0 0.0
    %143 = vmatpush.msra.mxu0 0.0
    %144 = vmatpush.msra.mxu0 0.0
    %145 = vmatpush.msra.mxu0 0.0
    %146 = vmatpush.msra.mxu0 0.0
    %147 = vmatpush.msra.mxu0 0.0
    %148 = vmatpush.msra.mxu0 0.0
    %149 = vmatpush.msra.mxu0 0.0
    %150 = vmatpush.msra.mxu0 0.0
    %151 = vmatpush.msra.mxu0 0.0
    %152 = vmatpush.msra.mxu0 %v70
    %153 = vmatpush.msra.mxu0 %v69
    %154 = vmatmul.f32.gmra.mxu0 %v133
    %v155 = vpop.f32.mrf.mxu0
    %v156 = vadd.f32 0.0, %v155
    %157 = vmatmul.f32.gmra.mxu0 %v136
    %v158 = vpop.f32.mrf.mxu0
    %v159 = vadd.f32 0.0, %v158
    %160 = vdwg.mxu0
    %v161 = vld [vmem:[%s5] sm:$0xff]
    %s162 = scalar_lea.vmem %s3, 32
    %v163 = vld [vmem:[%s162] sm:$0xff]
    %v164 = vld [vmem:[%s162 + $0x8] sm:$0xff]
    %v165 = vld [vmem:[%s162 + $0x10] sm:$0xff]
    %v166 = vld [vmem:[%s162 + $0x18] sm:$0xff]
    %s167 = scalar_lea.vmem %s4, 1
    %v168 = vld [vmem:[%s167] sm:$0x1]
    %v170 = vperm.slane %v168, 0
    %172 = vmatpush.msra.mxu0 0.0
    %173 = vmatpush.msra.mxu0 0.0
    %174 = vmatpush.msra.mxu0 0.0
    %175 = vmatpush.msra.mxu0 0.0
    %176 = vmatpush.msra.mxu0 0.0
    %177 = vmatpush.msra.mxu0 0.0
    %178 = vmatpush.msra.mxu0 0.0
    %179 = vmatpush.msra.mxu0 0.0
    %180 = vmatpush.msra.mxu0 0.0
    %181 = vmatpush.msra.mxu0 0.0
    %182 = vmatpush.msra.mxu0 0.0
    %183 = vmatpush.msra.mxu0 0.0
    %184 = vmatpush.msra.mxu0 %v166
    %185 = vmatpush.msra.mxu0 %v165
    %186 = vmatpush.msra.mxu0 %v164
    %187 = vmatpush.msra.mxu0 %v163
    %188 = vmatmul.f32.gmra.mxu0 %v39
    %v189 = vpop.f32.mrf.mxu0
    %v190 = vadd.f32 %v170, %v189
    %191 = vmatmul.f32.gmra.mxu0 %v42
    %v192 = vpop.f32.mrf.mxu0
    %v193 = vadd.f32 %v170, %v192
    %194 = vdwg.mxu0
    %s195 = scalar_lea.vmem %s1, 16
    %v196 = vld [vmem:[%s195] sm:$0xff]
    %v197 = vld [vmem:[%s195 + $0x8] sm:$0xff]
    %s198 = scalar_lea.vmem %s2, 16
    %v199 = vld [vmem:[%s198] sm:$0xff]
    %v200 = vld [vmem:[%s198 + $0x8] sm:$0xff]
    %v202 = vsel %vm71, %v190, 0
    %v205 = vsel %vm71, %v193, 0
    %v208 = vsel %vm71, %v196, 0
    %v211 = vsel %vm71, %v197, 0
    %213 = vmatpush.xpose.msra.mxu0 0.0
    %214 = vmatpush.xpose.msra.mxu0 0.0
    %215 = vmatpush.xpose.msra.mxu0 0.0
    %216 = vmatpush.xpose.msra.mxu0 0.0
    %217 = vmatpush.xpose.msra.mxu0 0.0
    %218 = vmatpush.xpose.msra.mxu0 0.0
    %219 = vmatpush.xpose.msra.mxu0 0.0
    %220 = vmatpush.xpose.msra.mxu0 0.0
    %221 = vmatpush.xpose.msra.mxu0 0.0
    %222 = vmatpush.xpose.msra.mxu0 0.0
    %223 = vmatpush.xpose.msra.mxu0 0.0
    %224 = vmatpush.xpose.msra.mxu0 0.0
    %225 = vmatpush.xpose.msra.mxu0 0.0
    %226 = vmatpush.xpose.msra.mxu0 0.0
    %227 = vmatpush.xpose.msra.mxu0 %v211
    %228 = vmatpush.xpose.msra.mxu0 %v208
    %229 = vmatmul.f32.gmra.mxu0 %v202
    %v230 = vpop.f32.mrf.mxu0
    %v231 = vadd.f32 0.0, %v230
    %232 = vmatmul.f32.gmra.mxu0 %v205
    %v233 = vpop.f32.mrf.mxu0
    %v234 = vadd.f32 0.0, %v233
    %235 = vdwg.mxu0
    %v236 = vmul.f32 %v231, 0.35355338
    %v237 = vmul.f32 %v234, 0.35355338
    %v238 = vsel %vm109, %v236, -inf
    %239 = vmax.xlane.f32.xlu0 %v238
    %v240 = vpop.xlane.xlu0 %239
    %v241 = vsel %vm109, %v237, -inf
    %242 = vmax.xlane.f32.xlu0 %v241
    %v243 = vpop.xlane.xlu0 %242
    %v244 = vsub.f32 %v236, %v240
    %v245 = vsub.f32 %v237, %v243
    %v246 = vmul.f32 %v244, 1.442695
    %v247 = vpow.pop %v246
    %v248 = vmul.f32 %v245, 1.442695
    %v249 = vpow.pop %v248
    %v250 = vsel %vm109, %v247, 0.0
    %251 = vadd.xlane.f32.xlu0 %v250
    %v252 = vpop.xlane.xlu0 %251
    %v253 = vsel %vm109, %v249, 0.0
    %254 = vadd.xlane.f32.xlu0 %v253
    %v255 = vpop.xlane.xlu0 %254
    %v256 = vrcp.pop %v252
    %v257 = vrcp.pop %v255
    %v258 = vmul.f32 %v247, %v256
    %v259 = vmul.f32 %v249, %v257
    %v261 = vsel %vm109, %v258, 0
    %v264 = vsel %vm109, %v259, 0
    %266 = vmatpush.msra.mxu0 0.0
    %267 = vmatpush.msra.mxu0 0.0
    %268 = vmatpush.msra.mxu0 0.0
    %269 = vmatpush.msra.mxu0 0.0
    %270 = vmatpush.msra.mxu0 0.0
    %271 = vmatpush.msra.mxu0 0.0
    %272 = vmatpush.msra.mxu0 0.0
    %273 = vmatpush.msra.mxu0 0.0
    %274 = vmatpush.msra.mxu0 0.0
    %275 = vmatpush.msra.mxu0 0.0
    %276 = vmatpush.msra.mxu0 0.0
    %277 = vmatpush.msra.mxu0 0.0
    %278 = vmatpush.msra.mxu0 0.0
    %279 = vmatpush.msra.mxu0 0.0
    %280 = vmatpush.msra.mxu0 %v200
    %281 = vmatpush.msra.mxu0 %v199
    %282 = vmatmul.f32.gmra.mxu0 %v261
    %v283 = vpop.f32.mrf.mxu0
    %v284 = vadd.f32 0.0, %v283
    %285 = vmatmul.f32.gmra.mxu0 %v264
    %v286 = vpop.f32.mrf.mxu0
    %v287 = vadd.f32 0.0, %v286
    %288 = vdwg.mxu0
    %s289 = scalar_lea.vmem %s5, 8
    %v290 = vld [vmem:[%s289] sm:$0xff]
    %v292 = vsel %vm71, %v284, 0
    %v295 = vsel %vm71, %v287, 0
    %297 = vmatpush.msra.mxu0 0.0
    %298 = vmatpush.msra.mxu0 0.0
    %299 = vmatpush.msra.mxu0 0.0
    %300 = vmatpush.msra.mxu0 0.0
    %301 = vmatpush.msra.mxu0 0.0
    %302 = vmatpush.msra.mxu0 0.0
    %303 = vmatpush.msra.mxu0 0.0
    %304 = vmatpush.msra.mxu0 0.0
    %305 = vmatpush.msra.mxu0 0.0
    %306 = vmatpush.msra.mxu0 0.0
    %307 = vmatpush.msra.mxu0 0.0
    %308 = vmatpush.msra.mxu0 0.0
    %309 = vmatpush.msra.mxu0 0.0
    %310 = vmatpush.msra.mxu0 0.0
    %311 = vmatpush.msra.mxu0 0.0
    %312 = vmatpush.msra.mxu0 %v290
    %313 = vmatmul.f32.gmra.mxu0 %v292
    %v314 = vpop.f32.mrf.mxu0
    %v315 = vadd.f32 0.0, %v314
    %316 = vmatmul.f32.gmra.mxu0 %v295
    %v317 = vpop.f32.mrf.mxu0
    %v318 = vadd.f32 0.0, %v317
    %319 = vdwg.mxu0
    %v321 = vsel %vm71, %v156, 0
    %v324 = vsel %vm71, %v159, 0
    %326 = vmatpush.msra.mxu0 0.0
    %327 = vmatpush.msra.mxu0 0.0
    %328 = vmatpush.msra.mxu0 0.0
    %329 = vmatpush.msra.mxu0 0.0
    %330 = vmatpush.msra.mxu0 0.0
    %331 = vmatpush.msra.mxu0 0.0
    %332 = vmatpush.msra.mxu0 0.0
    %333 = vmatpush.msra.mxu0 0.0
    %334 = vmatpush.msra.mxu0 0.0
    %335 = vmatpush.msra.mxu0 0.0
    %336 = vmatpush.msra.mxu0 0.0
    %337 = vmatpush.msra.mxu0 0.0
    %338 = vmatpush.msra.mxu0 0.0
    %339 = vmatpush.msra.mxu0 0.0
    %340 = vmatpush.msra.mxu0 0.0
    %341 = vmatpush.msra.mxu0 %v161
    %342 = vmatmul.f32.gmra.mxu0 %v321
    %v343 = vpop.f32.mrf.mxu0
    %v344 = vadd.f32 %v315, %v343
    %345 = vmatmul.f32.gmra.mxu0 %v324
    %v346 = vpop.f32.mrf.mxu0
    %v347 = vadd.f32 %v318, %v346
    %348 = vdwg.mxu0
    %s349 = scalar_lea.vmem %s3, 64
    %v350 = vld [vmem:[%s349] sm:$0xff]
    %v351 = vld [vmem:[%s349 + $0x8] sm:$0xff]
    %v352 = vld [vmem:[%s349 + $0x10] sm:$0xff]
    %v353 = vld [vmem:[%s349 + $0x18] sm:$0xff]
    %s354 = scalar_lea.vmem %s4, 2
    %v355 = vld [vmem:[%s354] sm:$0x1]
    %v357 = vperm.slane %v355, 0
    %359 = vmatpush.msra.mxu0 0.0
    %360 = vmatpush.msra.mxu0 0.0
    %361 = vmatpush.msra.mxu0 0.0
    %362 = vmatpush.msra.mxu0 0.0
    %363 = vmatpush.msra.mxu0 0.0
    %364 = vmatpush.msra.mxu0 0.0
    %365 = vmatpush.msra.mxu0 0.0
    %366 = vmatpush.msra.mxu0 0.0
    %367 = vmatpush.msra.mxu0 0.0
    %368 = vmatpush.msra.mxu0 0.0
    %369 = vmatpush.msra.mxu0 0.0
    %370 = vmatpush.msra.mxu0 0.0
    %371 = vmatpush.msra.mxu0 %v353
    %372 = vmatpush.msra.mxu0 %v352
    %373 = vmatpush.msra.mxu0 %v351
    %374 = vmatpush.msra.mxu0 %v350
    %375 = vmatmul.f32.gmra.mxu0 %v39
    %v376 = vpop.f32.mrf.mxu0
    %v377 = vadd.f32 %v357, %v376
    %378 = vmatmul.f32.gmra.mxu0 %v42
    %v379 = vpop.f32.mrf.mxu0
    %v380 = vadd.f32 %v357, %v379
    %381 = vdwg.mxu0
    %s382 = scalar_lea.vmem %s1, 32
    %v383 = vld [vmem:[%s382] sm:$0xff]
    %v384 = vld [vmem:[%s382 + $0x8] sm:$0xff]
    %s385 = scalar_lea.vmem %s2, 32
    %v386 = vld [vmem:[%s385] sm:$0xff]
    %v387 = vld [vmem:[%s385 + $0x8] sm:$0xff]
    %v389 = vsel %vm71, %v377, 0
    %v392 = vsel %vm71, %v380, 0
    %v395 = vsel %vm71, %v383, 0
    %v398 = vsel %vm71, %v384, 0
    %400 = vmatpush.xpose.msra.mxu0 0.0
    %401 = vmatpush.xpose.msra.mxu0 0.0
    %402 = vmatpush.xpose.msra.mxu0 0.0
    %403 = vmatpush.xpose.msra.mxu0 0.0
    %404 = vmatpush.xpose.msra.mxu0 0.0
    %405 = vmatpush.xpose.msra.mxu0 0.0
    %406 = vmatpush.xpose.msra.mxu0 0.0
    %407 = vmatpush.xpose.msra.mxu0 0.0
    %408 = vmatpush.xpose.msra.mxu0 0.0
    %409 = vmatpush.xpose.msra.mxu0 0.0
    %410 = vmatpush.xpose.msra.mxu0 0.0
    %411 = vmatpush.xpose.msra.mxu0 0.0
    %412 = vmatpush.xpose.msra.mxu0 0.0
    %413 = vmatpush.xpose.msra.mxu0 0.0
    %414 = vmatpush.xpose.msra.mxu0 %v398
    %415 = vmatpush.xpose.msra.mxu0 %v395
    %416 = vmatmul.f32.gmra.mxu0 %v389
    %v417 = vpop.f32.mrf.mxu0
    %v418 = vadd.f32 0.0, %v417
    %419 = vmatmul.f32.gmra.mxu0 %v392
    %v420 = vpop.f32.mrf.mxu0
    %v421 = vadd.f32 0.0, %v420
    %422 = vdwg.mxu0
    %v423 = vmul.f32 %v418, 0.35355338
    %v424 = vmul.f32 %v421, 0.35355338
    %v425 = vsel %vm109, %v423, -inf
    %426 = vmax.xlane.f32.xlu0 %v425
    %v427 = vpop.xlane.xlu0 %426
    %v428 = vsel %vm109, %v424, -inf
    %429 = vmax.xlane.f32.xlu0 %v428
    %v430 = vpop.xlane.xlu0 %429
    %v431 = vsub.f32 %v423, %v427
    %v432 = vsub.f32 %v424, %v430
    %v433 = vmul.f32 %v431, 1.442695
    %v434 = vpow.pop %v433
    %v435 = vmul.f32 %v432, 1.442695
    %v436 = vpow.pop %v435
    %v437 = vsel %vm109, %v434, 0.0
    %438 = vadd.xlane.f32.xlu0 %v437
    %v439 = vpop.xlane.xlu0 %438
    %v440 = vsel %vm109, %v436, 0.0
    %441 = vadd.xlane.f32.xlu0 %v440
    %v442 = vpop.xlane.xlu0 %441
    %v443 = vrcp.pop %v439
    %v444 = vrcp.pop %v442
    %v445 = vmul.f32 %v434, %v443
    %v446 = vmul.f32 %v436, %v444
    %v448 = vsel %vm109, %v445, 0
    %v451 = vsel %vm109, %v446, 0
    %453 = vmatpush.msra.mxu0 0.0
    %454 = vmatpush.msra.mxu0 0.0
    %455 = vmatpush.msra.mxu0 0.0
    %456 = vmatpush.msra.mxu0 0.0
    %457 = vmatpush.msra.mxu0 0.0
    %458 = vmatpush.msra.mxu0 0.0
    %459 = vmatpush.msra.mxu0 0.0
    %460 = vmatpush.msra.mxu0 0.0
    %461 = vmatpush.msra.mxu0 0.0
    %462 = vmatpush.msra.mxu0 0.0
    %463 = vmatpush.msra.mxu0 0.0
    %464 = vmatpush.msra.mxu0 0.0
    %465 = vmatpush.msra.mxu0 0.0
    %466 = vmatpush.msra.mxu0 0.0
    %467 = vmatpush.msra.mxu0 %v387
    %468 = vmatpush.msra.mxu0 %v386
    %469 = vmatmul.f32.gmra.mxu0 %v448
    %v470 = vpop.f32.mrf.mxu0
    %v471 = vadd.f32 0.0, %v470
    %472 = vmatmul.f32.gmra.mxu0 %v451
    %v473 = vpop.f32.mrf.mxu0
    %v474 = vadd.f32 0.0, %v473
    %475 = vdwg.mxu0
    %s476 = scalar_lea.vmem %s5, 16
    %v477 = vld [vmem:[%s476] sm:$0xff]
    %v479 = vsel %vm71, %v471, 0
    %v482 = vsel %vm71, %v474, 0
    %484 = vmatpush.msra.mxu0 0.0
    %485 = vmatpush.msra.mxu0 0.0
    %486 = vmatpush.msra.mxu0 0.0
    %487 = vmatpush.msra.mxu0 0.0
    %488 = vmatpush.msra.mxu0 0.0
    %489 = vmatpush.msra.mxu0 0.0
    %490 = vmatpush.msra.mxu0 0.0
    %491 = vmatpush.msra.mxu0 0.0
    %492 = vmatpush.msra.mxu0 0.0
    %493 = vmatpush.msra.mxu0 0.0
    %494 = vmatpush.msra.mxu0 0.0
    %495 = vmatpush.msra.mxu0 0.0
    %496 = vmatpush.msra.mxu0 0.0
    %497 = vmatpush.msra.mxu0 0.0
    %498 = vmatpush.msra.mxu0 0.0
    %499 = vmatpush.msra.mxu0 %v477
    %500 = vmatmul.f32.gmra.mxu0 %v479
    %v501 = vpop.f32.mrf.mxu0
    %v502 = vadd.f32 0.0, %v501
    %503 = vmatmul.f32.gmra.mxu0 %v482
    %v504 = vpop.f32.mrf.mxu0
    %v505 = vadd.f32 0.0, %v504
    %506 = vdwg.mxu0
    %v507 = vadd.f32 %v344, %v502
    %v508 = vadd.f32 %v347, %v505
    %s509 = scalar_lea.vmem %s3, 96
    %v510 = vld [vmem:[%s509] sm:$0xff]
    %v511 = vld [vmem:[%s509 + $0x8] sm:$0xff]
    %v512 = vld [vmem:[%s509 + $0x10] sm:$0xff]
    %v513 = vld [vmem:[%s509 + $0x18] sm:$0xff]
    %s514 = scalar_lea.vmem %s4, 3
    %v515 = vld [vmem:[%s514] sm:$0x1]
    %v517 = vperm.slane %v515, 0
    %519 = vmatpush.msra.mxu0 0.0
    %520 = vmatpush.msra.mxu0 0.0
    %521 = vmatpush.msra.mxu0 0.0
    %522 = vmatpush.msra.mxu0 0.0
    %523 = vmatpush.msra.mxu0 0.0
    %524 = vmatpush.msra.mxu0 0.0
    %525 = vmatpush.msra.mxu0 0.0
    %526 = vmatpush.msra.mxu0 0.0
    %527 = vmatpush.msra.mxu0 0.0
    %528 = vmatpush.msra.mxu0 0.0
    %529 = vmatpush.msra.mxu0 0.0
    %530 = vmatpush.msra.mxu0 0.0
    %531 = vmatpush.msra.mxu0 %v513
    %532 = vmatpush.msra.mxu0 %v512
    %533 = vmatpush.msra.mxu0 %v511
    %534 = vmatpush.msra.mxu0 %v510
    %535 = vmatmul.f32.gmra.mxu0 %v39
    %v536 = vpop.f32.mrf.mxu0
    %v537 = vadd.f32 %v517, %v536
    %538 = vmatmul.f32.gmra.mxu0 %v42
    %v539 = vpop.f32.mrf.mxu0
    %v540 = vadd.f32 %v517, %v539
    %541 = vdwg.mxu0
    %s542 = scalar_lea.vmem %s1, 48
    %v543 = vld [vmem:[%s542] sm:$0xff]
    %v544 = vld [vmem:[%s542 + $0x8] sm:$0xff]
    %s545 = scalar_lea.vmem %s2, 48
    %v546 = vld [vmem:[%s545] sm:$0xff]
    %v547 = vld [vmem:[%s545 + $0x8] sm:$0xff]
    %v549 = vsel %vm71, %v537, 0
    %v552 = vsel %vm71, %v540, 0
    %v555 = vsel %vm71, %v543, 0
    %v558 = vsel %vm71, %v544, 0
    %560 = vmatpush.xpose.msra.mxu0 0.0
    %561 = vmatpush.xpose.msra.mxu0 0.0
    %562 = vmatpush.xpose.msra.mxu0 0.0
    %563 = vmatpush.xpose.msra.mxu0 0.0
    %564 = vmatpush.xpose.msra.mxu0 0.0
    %565 = vmatpush.xpose.msra.mxu0 0.0
    %566 = vmatpush.xpose.msra.mxu0 0.0
    %567 = vmatpush.xpose.msra.mxu0 0.0
    %568 = vmatpush.xpose.msra.mxu0 0.0
    %569 = vmatpush.xpose.msra.mxu0 0.0
    %570 = vmatpush.xpose.msra.mxu0 0.0
    %571 = vmatpush.xpose.msra.mxu0 0.0
    %572 = vmatpush.xpose.msra.mxu0 0.0
    %573 = vmatpush.xpose.msra.mxu0 0.0
    %574 = vmatpush.xpose.msra.mxu0 %v558
    %575 = vmatpush.xpose.msra.mxu0 %v555
    %576 = vmatmul.f32.gmra.mxu0 %v549
    %v577 = vpop.f32.mrf.mxu0
    %v578 = vadd.f32 0.0, %v577
    %579 = vmatmul.f32.gmra.mxu0 %v552
    %v580 = vpop.f32.mrf.mxu0
    %v581 = vadd.f32 0.0, %v580
    %582 = vdwg.mxu0
    %v583 = vmul.f32 %v578, 0.35355338
    %v584 = vmul.f32 %v581, 0.35355338
    %v585 = vsel %vm109, %v583, -inf
    %586 = vmax.xlane.f32.xlu0 %v585
    %v587 = vpop.xlane.xlu0 %586
    %v588 = vsel %vm109, %v584, -inf
    %589 = vmax.xlane.f32.xlu0 %v588
    %v590 = vpop.xlane.xlu0 %589
    %v591 = vsub.f32 %v583, %v587
    %v592 = vsub.f32 %v584, %v590
    %v593 = vmul.f32 %v591, 1.442695
    %v594 = vpow.pop %v593
    %v595 = vmul.f32 %v592, 1.442695
    %v596 = vpow.pop %v595
    %v597 = vsel %vm109, %v594, 0.0
    %598 = vadd.xlane.f32.xlu0 %v597
    %v599 = vpop.xlane.xlu0 %598
    %v600 = vsel %vm109, %v596, 0.0
    %601 = vadd.xlane.f32.xlu0 %v600
    %v602 = vpop.xlane.xlu0 %601
    %v603 = vrcp.pop %v599
    %v604 = vrcp.pop %v602
    %v605 = vmul.f32 %v594, %v603
    %v606 = vmul.f32 %v596, %v604
    %v608 = vsel %vm109, %v605, 0
    %v611 = vsel %vm109, %v606, 0
    %613 = vmatpush.msra.mxu0 0.0
    %614 = vmatpush.msra.mxu0 0.0
    %615 = vmatpush.msra.mxu0 0.0
    %616 = vmatpush.msra.mxu0 0.0
    %617 = vmatpush.msra.mxu0 0.0
    %618 = vmatpush.msra.mxu0 0.0
    %619 = vmatpush.msra.mxu0 0.0
    %620 = vmatpush.msra.mxu0 0.0
    %621 = vmatpush.msra.mxu0 0.0
    %622 = vmatpush.msra.mxu0 0.0
    %623 = vmatpush.msra.mxu0 0.0
    %624 = vmatpush.msra.mxu0 0.0
    %625 = vmatpush.msra.mxu0 0.0
    %626 = vmatpush.msra.mxu0 0.0
    %627 = vmatpush.msra.mxu0 %v547
    %628 = vmatpush.msra.mxu0 %v546
    %629 = vmatmul.f32.gmra.mxu0 %v608
    %v630 = vpop.f32.mrf.mxu0
    %v631 = vadd.f32 0.0, %v630
    %632 = vmatmul.f32.gmra.mxu0 %v611
    %v633 = vpop.f32.mrf.mxu0
    %v634 = vadd.f32 0.0, %v633
    %635 = vdwg.mxu0
    %s636 = scalar_lea.vmem %s5, 24
    %v637 = vld [vmem:[%s636] sm:$0xff]
    %v639 = vsel %vm71, %v631, 0
    %v642 = vsel %vm71, %v634, 0
    %644 = vmatpush.msra.mxu0 0.0
    %645 = vmatpush.msra.mxu0 0.0
    %646 = vmatpush.msra.mxu0 0.0
    %647 = vmatpush.msra.mxu0 0.0
    %648 = vmatpush.msra.mxu0 0.0
    %649 = vmatpush.msra.mxu0 0.0
    %650 = vmatpush.msra.mxu0 0.0
    %651 = vmatpush.msra.mxu0 0.0
    %652 = vmatpush.msra.mxu0 0.0
    %653 = vmatpush.msra.mxu0 0.0
    %654 = vmatpush.msra.mxu0 0.0
    %655 = vmatpush.msra.mxu0 0.0
    %656 = vmatpush.msra.mxu0 0.0
    %657 = vmatpush.msra.mxu0 0.0
    %658 = vmatpush.msra.mxu0 0.0
    %659 = vmatpush.msra.mxu0 %v637
    %660 = vmatmul.f32.gmra.mxu0 %v639
    %v661 = vpop.f32.mrf.mxu0
    %v662 = vadd.f32 0.0, %v661
    %663 = vmatmul.f32.gmra.mxu0 %v642
    %v664 = vpop.f32.mrf.mxu0
    %v665 = vadd.f32 0.0, %v664
    %666 = vdwg.mxu0
    %v667 = vadd.f32 %v507, %v662
    %v668 = vadd.f32 %v508, %v665
    %v669 = vld [vmem:[%s6] sm:$0x1]
    %v671 = vperm.slane %v669, 0
    %v673 = vadd.f32 %v667, %v671
    %v674 = vadd.f32 %v668, %v671
    %675 = vst.msk [vmem:[#allocation2] sm:$0xff] %vm37, %v673
    %676 = vst.msk [vmem:[#allocation2 + $0x8] sm:$0xff] %vm37, %v674
    // Predicated region
    $region30: #{encoder_pca_forward.7} parent=1 // pred_check
      _
    $region31: #{encoder_pca_forward.7} parent=1 // pred_check_branch
      %678 = sbr.rel (0) target = $region33
    $region32: #{encoder_pca_forward.7} parent=1 // pred_region
      %680 = vsyncadd [#allocation3], 0
      %s681 = sshll.u32 [#allocation2], 4
      %s682 = int_to_ptr.vmem [resolvable:$true] %s681
      %s683 = sshll.u32 %s7, 4
      %s684 = int_to_ptr.hbm [resolvable:$true] %s683
      %689 = dma.vmem_to_hbm [thread:$0]  %s682, 256, %s684, [#allocation3], 128, 128, 8
    $region33: #{encoder_pca_forward.7} parent=1 // pred_fallthru
      _
    // Predicated region
    $region34: #{encoder_pca_forward.7} parent=1 // pred_check
      _
    $region35: #{encoder_pca_forward.7} parent=1 // pred_check_branch
      %691 = sbr.rel (0) target = $region37
    $region36: #{encoder_pca_forward.7} parent=1 // pred_region
      %693 = dma.done [#allocation3], 256
    $region37: #{encoder_pca_forward.7} parent=1 // pred_fallthru
      _
    %694 = vsyncpa [#allocation3], 1

// kernel: encoder_pca_forward.5
$region0: #{encoder_pca_forward.5}
  #allocation0 [shape = 'u32[]', space=smem, size = 0x4, offset = 0x4, fixed_abs, tag = 'smem constant byte address 0x4 - core index']
  #allocation1 [shape = 'u32[72,128]{1,0:T(1,128)}', space=vmem, size = 0x9000, scoped, tag = 'internal scratch']
  %s0 = inlined_call_operand.vmem [shape: f32[2,8,32], index: 0, kind: input, shape index: {}]
  %s1 = inlined_call_operand.vmem [shape: f32[4,32,8], index: 1, kind: input, shape index: {}]
  %s2 = inlined_call_operand.vmem [shape: f32[4,1,8], index: 2, kind: input, shape index: {}]
  %s3 = inlined_call_operand.vmem [shape: f32[4,32,8], index: 3, kind: input, shape index: {}]
  %s4 = inlined_call_operand.vmem [shape: f32[4,1,8], index: 4, kind: input, shape index: {}]
  %s5 = inlined_call_operand.vmem [shape: f32[4,32,8], index: 5, kind: input, shape index: {}]
  %s6 = inlined_call_operand.vmem [shape: f32[4,1,8], index: 6, kind: input, shape index: {}]
  %s7 = inlined_call_operand.vmem [shape: f32[4,8,32], index: 7, kind: input, shape index: {}]
  %s8 = inlined_call_operand.vmem [shape: f32[1,32], index: 8, kind: input, shape index: {}]
  %s9 = inlined_call_operand.vmem [shape: f32[1,32], index: 9, kind: input, shape index: {}]
  %s10 = inlined_call_operand.vmem [shape: f32[1,32], index: 10, kind: input, shape index: {}]
  %s11 = inlined_call_operand.vmem [shape: f32[32,2048], index: 11, kind: input, shape index: {}]
  %s12 = inlined_call_operand.vmem [shape: f32[1,2048], index: 12, kind: input, shape index: {}]
  %s13 = inlined_call_operand.vmem [shape: f32[2048,32], index: 13, kind: input, shape index: {}]
  %s14 = inlined_call_operand.vmem [shape: f32[1,32], index: 14, kind: input, shape index: {}]
  %s15 = inlined_call_operand.vmem [shape: f32[1,32], index: 15, kind: input, shape index: {}]
  %s16 = inlined_call_operand.vmem [shape: f32[1,32], index: 16, kind: input, shape index: {}]
  %s17 = inlined_call_operand.vmem [shape: f32[2,8,32], index: 17, kind: output, shape index: {}]
  %s18 = sld [smem:[#allocation0]]
  $region101: #{encoder_pca_forward.5} parent=0
    _
  %s20 = ssub.s32 1, %s18
  %s21 = scalar_select 0, %s20, %s18
  loop: start=0, step=1, limit=4
  $region2: #{encoder_pca_forward.5} parent=0 // loop_pre_header
    _
  $region3: #{encoder_pca_forward.5} parent=0 // loop_header
    %s23 = sphi 0, %s27
    %p24 = scmp.ge.s32.totalorder %s23, 4
    %s33 = sphi 0, %s35
    %s36 = sphi 0, %s33
    %s37 = sphi 0, %s36
    %s53 = sphi 0, %s37
    %s57 = sphi 0, %s57
    %s59 = sphi 0, %s57
    %s60 = sphi 0, %s59
    %s74 = sphi 0, %s60
    %s78 = sphi 0, %s78
    %s80 = sphi 0, %s78
    %s81 = sphi 0, %s80
    %s95 = sphi 0, %s81
    %s99 = sphi 0, %s99
    %s101 = sphi 0, %s99
    %s102 = sphi 0, %s101
    %s116 = sphi 0, %s102
    %s120 = sphi 0, %s120
    %s122 = sphi 0, %s120
    %s123 = sphi 0, %s122
    %s137 = sphi 0, %s123
    %s141 = sphi 0, %s141
    %s143 = sphi 0, %s141
    %s144 = sphi 0, %s143
    %s158 = sphi 0, %s144
    %s162 = sphi 0, %s162
    %s164 = sphi 0, %s162
    %s165 = sphi 0, %s164
    %s179 = sphi 0, %s165
    %s183 = sphi 0, %s183
    %s185 = sphi 0, %s183
    %s186 = sphi 0, %s185
    %s200 = sphi 0, %s186
    %s204 = sphi 0, %s204
    %s206 = sphi 0, %s204
    %s207 = sphi 0, %s206
    %s221 = sphi 0, %s207
    %s225 = sphi 0, %s225
    %s227 = sphi 0, %s225
    %s228 = sphi 0, %s227
    %s242 = sphi 0, %s228
    %s246 = sphi 0, %s246
    %s248 = sphi 0, %s246
    %s249 = sphi 0, %s248
    %s263 = sphi 0, %s249
    %s267 = sphi 0, %s267
    %s269 = sphi 0, %s267
    %s270 = sphi 0, %s269
    %s284 = sphi 0, %s270
    %s288 = sphi 0, %s288
    %s290 = sphi 0, %s288
    %s291 = sphi 0, %s290
    %s305 = sphi 0, %s291
    %s309 = sphi 0, %s309
    %s311 = sphi 0, %s309
    %s312 = sphi 0, %s311
    %s326 = sphi 0, %s312
    %s330 = sphi 0, %s330
    %s332 = sphi 0, %s330
    %s333 = sphi 0, %s332
    %s347 = sphi 0, %s333
    %s351 = sphi 0, %s351
    %s353 = sphi 0, %s351
    %s354 = sphi 0, %s353
    %s368 = sphi 0, %s354
    %s372 = sphi 0, %s372
    %s374 = sphi 0, %s372
    %s375 = sphi 0, %s374
    %s389 = sphi 0, %s375
    %s395 = sphi 0, %s397
    %s398 = sphi 0, %s395
    %s399 = sphi 0, %s398
    %s415 = sphi 0, %s399
  $region4: #{encoder_pca_forward.5} parent=0 // loop_header_branch
    %26 = sbr.rel (%p24) target = $region8
  $region5: #{encoder_pca_forward.5} parent=0 // loop_body
    %s28 = ssub.s32 %s23, 1
    %s29 = ssub.s32 %s23, 2
    %s30 = sadd.s32 %s23, 1
    %s31 = ssub.s32 %s23, %s30
    %p32 = scmp.eq.s32.totalorder %s31, 0
    %s34 = sadd.s32 %s33, 1
    %s35 = scalar_select %p32, %s33, %s34
    %p38 = pneg %p32
    %p39 = scmp.eq.s32.totalorder %s23, 1
    %p40 = por %p38, %p39
    %p41 = scmp.ne.s32.totalorder %s33, %s36
    %p42 = scmp.eq.s32.totalorder %s23, 0
    %p43 = por %p41, %p42
    %p44 = scmp.ne.s32.totalorder %s33, %s36
    %p45 = scmp.eq.s32.totalorder %s28, 1
    %p46 = por %p44, %p45
    %p47 = scmp.ne.s32.totalorder %s36, %s37
    %p48 = scmp.eq.s32.totalorder %s28, 0
    %p49 = por %p47, %p48
    %p50 = scmp.ne.s32.totalorder %s36, %s37
    %p51 = scmp.eq.s32.totalorder %s29, 1
    %p52 = por %p50, %p51
    %p54 = scmp.ne.s32.totalorder %s37, %s53
    %p55 = scmp.eq.s32.totalorder %s29, 0
    %p56 = por %p54, %p55
    %s58 = sadd.s32 %s57, 1
    %p61 = scmp.eq.s32.totalorder %s23, 1
    %p62 = scmp.ne.s32.totalorder %s57, %s59
    %p63 = scmp.eq.s32.totalorder %s23, 0
    %p64 = por %p62, %p63
    %p65 = scmp.ne.s32.totalorder %s57, %s59
    %p66 = scmp.eq.s32.totalorder %s28, 1
    %p67 = por %p65, %p66
    %p68 = scmp.ne.s32.totalorder %s59, %s60
    %p69 = scmp.eq.s32.totalorder %s28, 0
    %p70 = por %p68, %p69
    %p71 = scmp.ne.s32.totalorder %s59, %s60
    %p72 = scmp.eq.s32.totalorder %s29, 1
    %p73 = por %p71, %p72
    %p75 = scmp.ne.s32.totalorder %s60, %s74
    %p76 = scmp.eq.s32.totalorder %s29, 0
    %p77 = por %p75, %p76
    %s79 = sadd.s32 %s78, 1
    %p82 = scmp.eq.s32.totalorder %s23, 1
    %p83 = scmp.ne.s32.totalorder %s78, %s80
    %p84 = scmp.eq.s32.totalorder %s23, 0
    %p85 = por %p83, %p84
    %p86 = scmp.ne.s32.totalorder %s78, %s80
    %p87 = scmp.eq.s32.totalorder %s28, 1
    %p88 = por %p86, %p87
    %p89 = scmp.ne.s32.totalorder %s80, %s81
    %p90 = scmp.eq.s32.totalorder %s28, 0
    %p91 = por %p89, %p90
    %p92 = scmp.ne.s32.totalorder %s80, %s81
    %p93 = scmp.eq.s32.totalorder %s29, 1
    %p94 = por %p92, %p93
    %p96 = scmp.ne.s32.totalorder %s81, %s95
    %p97 = scmp.eq.s32.totalorder %s29, 0
    %p98 = por %p96, %p97
    %s100 = sadd.s32 %s99, 1
    %p103 = scmp.eq.s32.totalorder %s23, 1
    %p104 = scmp.ne.s32.totalorder %s99, %s101
    %p105 = scmp.eq.s32.totalorder %s23, 0
    %p106 = por %p104, %p105
    %p107 = scmp.ne.s32.totalorder %s99, %s101
    %p108 = scmp.eq.s32.totalorder %s28, 1
    %p109 = por %p107, %p108
    %p110 = scmp.ne.s32.totalorder %s101, %s102
    %p111 = scmp.eq.s32.totalorder %s28, 0
    %p112 = por %p110, %p111
    %p113 = scmp.ne.s32.totalorder %s101, %s102
    %p114 = scmp.eq.s32.totalorder %s29, 1
    %p115 = por %p113, %p114
    %p117 = scmp.ne.s32.totalorder %s102, %s116
    %p118 = scmp.eq.s32.totalorder %s29, 0
    %p119 = por %p117, %p118
    %s121 = sadd.s32 %s120, 1
    %p124 = scmp.eq.s32.totalorder %s23, 1
    %p125 = scmp.ne.s32.totalorder %s120, %s122
    %p126 = scmp.eq.s32.totalorder %s23, 0
    %p127 = por %p125, %p126
    %p128 = scmp.ne.s32.totalorder %s120, %s122
    %p129 = scmp.eq.s32.totalorder %s28, 1
    %p130 = por %p128, %p129
    %p131 = scmp.ne.s32.totalorder %s122, %s123
    %p132 = scmp.eq.s32.totalorder %s28, 0
    %p133 = por %p131, %p132
    %p134 = scmp.ne.s32.totalorder %s122, %s123
    %p135 = scmp.eq.s32.totalorder %s29, 1
    %p136 = por %p134, %p135
    %p138 = scmp.ne.s32.totalorder %s123, %s137
    %p139 = scmp.eq.s32.totalorder %s29, 0
    %p140 = por %p138, %p139
    %s142 = sadd.s32 %s141, 1
    %p145 = scmp.eq.s32.totalorder %s23, 1
    %p146 = scmp.ne.s32.totalorder %s141, %s143
    %p147 = scmp.eq.s32.totalorder %s23, 0
    %p148 = por %p146, %p147
    %p149 = scmp.ne.s32.totalorder %s141, %s143
    %p150 = scmp.eq.s32.totalorder %s28, 1
    %p151 = por %p149, %p150
    %p152 = scmp.ne.s32.totalorder %s143, %s144
    %p153 = scmp.eq.s32.totalorder %s28, 0
    %p154 = por %p152, %p153
    %p155 = scmp.ne.s32.totalorder %s143, %s144
    %p156 = scmp.eq.s32.totalorder %s29, 1
    %p157 = por %p155, %p156
    %p159 = scmp.ne.s32.totalorder %s144, %s158
    %p160 = scmp.eq.s32.totalorder %s29, 0
    %p161 = por %p159, %p160
    %s163 = sadd.s32 %s162, 1
    %p166 = scmp.eq.s32.totalorder %s23, 1
    %p167 = scmp.ne.s32.totalorder %s162, %s164
    %p168 = scmp.eq.s32.totalorder %s23, 0
    %p169 = por %p167, %p168
    %p170 = scmp.ne.s32.totalorder %s162, %s164
    %p171 = scmp.eq.s32.totalorder %s28, 1
    %p172 = por %p170, %p171
    %p173 = scmp.ne.s32.totalorder %s164, %s165
    %p174 = scmp.eq.s32.totalorder %s28, 0
    %p175 = por %p173, %p174
    %p176 = scmp.ne.s32.totalorder %s164, %s165
    %p177 = scmp.eq.s32.totalorder %s29, 1
    %p178 = por %p176, %p177
    %p180 = scmp.ne.s32.totalorder %s165, %s179
    %p181 = scmp.eq.s32.totalorder %s29, 0
    %p182 = por %p180, %p181
    %s184 = sadd.s32 %s183, 1
    %p187 = scmp.eq.s32.totalorder %s23, 1
    %p188 = scmp.ne.s32.totalorder %s183, %s185
    %p189 = scmp.eq.s32.totalorder %s23, 0
    %p190 = por %p188, %p189
    %p191 = scmp.ne.s32.totalorder %s183, %s185
    %p192 = scmp.eq.s32.totalorder %s28, 1
    %p193 = por %p191, %p192
    %p194 = scmp.ne.s32.totalorder %s185, %s186
    %p195 = scmp.eq.s32.totalorder %s28, 0
    %p196 = por %p194, %p195
    %p197 = scmp.ne.s32.totalorder %s185, %s186
    %p198 = scmp.eq.s32.totalorder %s29, 1
    %p199 = por %p197, %p198
    %p201 = scmp.ne.s32.totalorder %s186, %s200
    %p202 = scmp.eq.s32.totalorder %s29, 0
    %p203 = por %p201, %p202
    %s205 = sadd.s32 %s204, 1
    %p208 = scmp.eq.s32.totalorder %s23, 1
    %p209 = scmp.ne.s32.totalorder %s204, %s206
    %p210 = scmp.eq.s32.totalorder %s23, 0
    %p211 = por %p209, %p210
    %p212 = scmp.ne.s32.totalorder %s204, %s206
    %p213 = scmp.eq.s32.totalorder %s28, 1
    %p214 = por %p212, %p213
    %p215 = scmp.ne.s32.totalorder %s206, %s207
    %p216 = scmp.eq.s32.totalorder %s28, 0
    %p217 = por %p215, %p216
    %p218 = scmp.ne.s32.totalorder %s206, %s207
    %p219 = scmp.eq.s32.totalorder %s29, 1
    %p220 = por %p218, %p219
    %p222 = scmp.ne.s32.totalorder %s207, %s221
    %p223 = scmp.eq.s32.totalorder %s29, 0
    %p224 = por %p222, %p223
    %s226 = sadd.s32 %s225, 1
    %p229 = scmp.eq.s32.totalorder %s23, 1
    %p230 = scmp.ne.s32.totalorder %s225, %s227
    %p231 = scmp.eq.s32.totalorder %s23, 0
    %p232 = por %p230, %p231
    %p233 = scmp.ne.s32.totalorder %s225, %s227
    %p234 = scmp.eq.s32.totalorder %s28, 1
    %p235 = por %p233, %p234
    %p236 = scmp.ne.s32.totalorder %s227, %s228
    %p237 = scmp.eq.s32.totalorder %s28, 0
    %p238 = por %p236, %p237
    %p239 = scmp.ne.s32.totalorder %s227, %s228
    %p240 = scmp.eq.s32.totalorder %s29, 1
    %p241 = por %p239, %p240
    %p243 = scmp.ne.s32.totalorder %s228, %s242
    %p244 = scmp.eq.s32.totalorder %s29, 0
    %p245 = por %p243, %p244
    %s247 = sadd.s32 %s246, 1
    %p250 = scmp.eq.s32.totalorder %s23, 1
    %p251 = scmp.ne.s32.totalorder %s246, %s248
    %p252 = scmp.eq.s32.totalorder %s23, 0
    %p253 = por %p251, %p252
    %p254 = scmp.ne.s32.totalorder %s246, %s248
    %p255 = scmp.eq.s32.totalorder %s28, 1
    %p256 = por %p254, %p255
    %p257 = scmp.ne.s32.totalorder %s248, %s249
    %p258 = scmp.eq.s32.totalorder %s28, 0
    %p259 = por %p257, %p258
    %p260 = scmp.ne.s32.totalorder %s248, %s249
    %p261 = scmp.eq.s32.totalorder %s29, 1
    %p262 = por %p260, %p261
    %p264 = scmp.ne.s32.totalorder %s249, %s263
    %p265 = scmp.eq.s32.totalorder %s29, 0
    %p266 = por %p264, %p265
    %s268 = sadd.s32 %s267, 1
    %p271 = scmp.eq.s32.totalorder %s23, 1
    %p272 = scmp.ne.s32.totalorder %s267, %s269
    %p273 = scmp.eq.s32.totalorder %s23, 0
    %p274 = por %p272, %p273
    %p275 = scmp.ne.s32.totalorder %s267, %s269
    %p276 = scmp.eq.s32.totalorder %s28, 1
    %p277 = por %p275, %p276
    %p278 = scmp.ne.s32.totalorder %s269, %s270
    %p279 = scmp.eq.s32.totalorder %s28, 0
    %p280 = por %p278, %p279
    %p281 = scmp.ne.s32.totalorder %s269, %s270
    %p282 = scmp.eq.s32.totalorder %s29, 1
    %p283 = por %p281, %p282
    %p285 = scmp.ne.s32.totalorder %s270, %s284
    %p286 = scmp.eq.s32.totalorder %s29, 0
    %p287 = por %p285, %p286
    %s289 = sadd.s32 %s288, 1
    %p292 = scmp.eq.s32.totalorder %s23, 1
    %p293 = scmp.ne.s32.totalorder %s288, %s290
    %p294 = scmp.eq.s32.totalorder %s23, 0
    %p295 = por %p293, %p294
    %p296 = scmp.ne.s32.totalorder %s288, %s290
    %p297 = scmp.eq.s32.totalorder %s28, 1
    %p298 = por %p296, %p297
    %p299 = scmp.ne.s32.totalorder %s290, %s291
    %p300 = scmp.eq.s32.totalorder %s28, 0
    %p301 = por %p299, %p300
    %p302 = scmp.ne.s32.totalorder %s290, %s291
    %p303 = scmp.eq.s32.totalorder %s29, 1
    %p304 = por %p302, %p303
    %p306 = scmp.ne.s32.totalorder %s291, %s305
    %p307 = scmp.eq.s32.totalorder %s29, 0
    %p308 = por %p306, %p307
    %s310 = sadd.s32 %s309, 1
    %p313 = scmp.eq.s32.totalorder %s23, 1
    %p314 = scmp.ne.s32.totalorder %s309, %s311
    %p315 = scmp.eq.s32.totalorder %s23, 0
    %p316 = por %p314, %p315
    %p317 = scmp.ne.s32.totalorder %s309, %s311
    %p318 = scmp.eq.s32.totalorder %s28, 1
    %p319 = por %p317, %p318
    %p320 = scmp.ne.s32.totalorder %s311, %s312
    %p321 = scmp.eq.s32.totalorder %s28, 0
    %p322 = por %p320, %p321
    %p323 = scmp.ne.s32.totalorder %s311, %s312
    %p324 = scmp.eq.s32.totalorder %s29, 1
    %p325 = por %p323, %p324
    %p327 = scmp.ne.s32.totalorder %s312, %s326
    %p328 = scmp.eq.s32.totalorder %s29, 0
    %p329 = por %p327, %p328
    %s331 = sadd.s32 %s330, 1
    %p334 = scmp.eq.s32.totalorder %s23, 1
    %p335 = scmp.ne.s32.totalorder %s330, %s332
    %p336 = scmp.eq.s32.totalorder %s23, 0
    %p337 = por %p335, %p336
    %p338 = scmp.ne.s32.totalorder %s330, %s332
    %p339 = scmp.eq.s32.totalorder %s28, 1
    %p340 = por %p338, %p339
    %p341 = scmp.ne.s32.totalorder %s332, %s333
    %p342 = scmp.eq.s32.totalorder %s28, 0
    %p343 = por %p341, %p342
    %p344 = scmp.ne.s32.totalorder %s332, %s333
    %p345 = scmp.eq.s32.totalorder %s29, 1
    %p346 = por %p344, %p345
    %p348 = scmp.ne.s32.totalorder %s333, %s347
    %p349 = scmp.eq.s32.totalorder %s29, 0
    %p350 = por %p348, %p349
    %s352 = sadd.s32 %s351, 1
    %p355 = scmp.eq.s32.totalorder %s23, 1
    %p356 = scmp.ne.s32.totalorder %s351, %s353
    %p357 = scmp.eq.s32.totalorder %s23, 0
    %p358 = por %p356, %p357
    %p359 = scmp.ne.s32.totalorder %s351, %s353
    %p360 = scmp.eq.s32.totalorder %s28, 1
    %p361 = por %p359, %p360
    %p362 = scmp.ne.s32.totalorder %s353, %s354
    %p363 = scmp.eq.s32.totalorder %s28, 0
    %p364 = por %p362, %p363
    %p365 = scmp.ne.s32.totalorder %s353, %s354
    %p366 = scmp.eq.s32.totalorder %s29, 1
    %p367 = por %p365, %p366
    %p369 = scmp.ne.s32.totalorder %s354, %s368
    %p370 = scmp.eq.s32.totalorder %s29, 0
    %p371 = por %p369, %p370
    %s373 = sadd.s32 %s372, 1
    %p376 = scmp.eq.s32.totalorder %s23, 1
    %p377 = scmp.ne.s32.totalorder %s372, %s374
    %p378 = scmp.eq.s32.totalorder %s23, 0
    %p379 = por %p377, %p378
    %p380 = scmp.ne.s32.totalorder %s372, %s374
    %p381 = scmp.eq.s32.totalorder %s28, 1
    %p382 = por %p380, %p381
    %p383 = scmp.ne.s32.totalorder %s374, %s375
    %p384 = scmp.eq.s32.totalorder %s28, 0
    %p385 = por %p383, %p384
    %p386 = scmp.ne.s32.totalorder %s374, %s375
    %p387 = scmp.eq.s32.totalorder %s29, 1
    %p388 = por %p386, %p387
    %p390 = scmp.ne.s32.totalorder %s375, %s389
    %p391 = scmp.eq.s32.totalorder %s29, 0
    %p392 = por %p390, %p391
    %s393 = ssub.s32 %s23, %s30
    %p394 = scmp.eq.s32.totalorder %s393, 0
    %s396 = sadd.s32 %s395, 1
    %s397 = scalar_select %p394, %s395, %s396
    %p400 = pneg %p394
    %p401 = scmp.eq.s32.totalorder %s23, 1
    %p402 = por %p400, %p401
    %p403 = scmp.ne.s32.totalorder %s395, %s398
    %p404 = scmp.eq.s32.totalorder %s23, 0
    %p405 = por %p403, %p404
    %p406 = scmp.ne.s32.totalorder %s395, %s398
    %p407 = scmp.eq.s32.totalorder %s28, 1
    %p408 = por %p406, %p407
    %p409 = scmp.ne.s32.totalorder %s398, %s399
    %p410 = scmp.eq.s32.totalorder %s28, 0
    %p411 = por %p409, %p410
    %p412 = scmp.ne.s32.totalorder %s398, %s399
    %p413 = scmp.eq.s32.totalorder %s29, 1
    %p414 = por %p412, %p413
    %p416 = scmp.ne.s32.totalorder %s399, %s415
    %p417 = scmp.eq.s32.totalorder %s29, 0
    %p418 = por %p416, %p417
    %p419 = scmp.le.s32.totalorder 1, %s23
    %p420 = scmp.lt.s32.totalorder %s23, 3
    %p421 = pnand %p419, %p420
    %p422 = pneg %p421
    // Predicated region
    $region9: #{encoder_pca_forward.5} parent=5 // pred_check
      _
    $region10: #{encoder_pca_forward.5} parent=5 // pred_check_branch
      %424 = sbr.rel (%p421) target = $region12
    $region11: #{encoder_pca_forward.5} parent=5 // pred_region
      %s425 = ssub.s32 %s23, 1
      // Predicated region
      $region13: #{encoder_pca_forward.5} parent=11 // pred_check
        %p426 = pneg %p70
      $region14: #{encoder_pca_forward.5} parent=11 // pred_check_branch
        %428 = sbr.rel (%p426) target = $region16
      $region15: #{encoder_pca_forward.5} parent=11 // pred_region
        _
      $region16: #{encoder_pca_forward.5} parent=11 // pred_fallthru
        _
      // Predicated region
      $region17: #{encoder_pca_forward.5} parent=11 // pred_check
        %p429 = pneg %p91
      $region18: #{encoder_pca_forward.5} parent=11 // pred_check_branch
        %431 = sbr.rel (%p429) target = $region20
      $region19: #{encoder_pca_forward.5} parent=11 // pred_region
        _
      $region20: #{encoder_pca_forward.5} parent=11 // pred_fallthru
        _
      // Predicated region
      $region21: #{encoder_pca_forward.5} parent=11 // pred_check
        %p432 = pneg %p112
      $region22: #{encoder_pca_forward.5} parent=11 // pred_check_branch
        %434 = sbr.rel (%p432) target = $region24
      $region23: #{encoder_pca_forward.5} parent=11 // pred_region
        _
      $region24: #{encoder_pca_forward.5} parent=11 // pred_fallthru
        _
      // Predicated region
      $region25: #{encoder_pca_forward.5} parent=11 // pred_check
        %p435 = pneg %p133
      $region26: #{encoder_pca_forward.5} parent=11 // pred_check_branch
        %437 = sbr.rel (%p435) target = $region28
      $region27: #{encoder_pca_forward.5} parent=11 // pred_region
        _
      $region28: #{encoder_pca_forward.5} parent=11 // pred_fallthru
        _
      // Predicated region
      $region29: #{encoder_pca_forward.5} parent=11 // pred_check
        %p438 = pneg %p154
      $region30: #{encoder_pca_forward.5} parent=11 // pred_check_branch
        %440 = sbr.rel (%p438) target = $region32
      $region31: #{encoder_pca_forward.5} parent=11 // pred_region
        _
      $region32: #{encoder_pca_forward.5} parent=11 // pred_fallthru
        _
      // Predicated region
      $region33: #{encoder_pca_forward.5} parent=11 // pred_check
        %p441 = pneg %p175
      $region34: #{encoder_pca_forward.5} parent=11 // pred_check_branch
        %443 = sbr.rel (%p441) target = $region36
      $region35: #{encoder_pca_forward.5} parent=11 // pred_region
        _
      $region36: #{encoder_pca_forward.5} parent=11 // pred_fallthru
        _
      // Predicated region
      $region37: #{encoder_pca_forward.5} parent=11 // pred_check
        %p444 = pneg %p196
      $region38: #{encoder_pca_forward.5} parent=11 // pred_check_branch
        %446 = sbr.rel (%p444) target = $region40
      $region39: #{encoder_pca_forward.5} parent=11 // pred_region
        _
      $region40: #{encoder_pca_forward.5} parent=11 // pred_fallthru
        _
      // Predicated region
      $region41: #{encoder_pca_forward.5} parent=11 // pred_check
        %p447 = pneg %p217
      $region42: #{encoder_pca_forward.5} parent=11 // pred_check_branch
        %449 = sbr.rel (%p447) target = $region44
      $region43: #{encoder_pca_forward.5} parent=11 // pred_region
        _
      $region44: #{encoder_pca_forward.5} parent=11 // pred_fallthru
        _
      // Predicated region
      $region45: #{encoder_pca_forward.5} parent=11 // pred_check
        %p450 = pneg %p238
      $region46: #{encoder_pca_forward.5} parent=11 // pred_check_branch
        %452 = sbr.rel (%p450) target = $region48
      $region47: #{encoder_pca_forward.5} parent=11 // pred_region
        _
      $region48: #{encoder_pca_forward.5} parent=11 // pred_fallthru
        _
      // Predicated region
      $region49: #{encoder_pca_forward.5} parent=11 // pred_check
        %p453 = pneg %p259
      $region50: #{encoder_pca_forward.5} parent=11 // pred_check_branch
        %455 = sbr.rel (%p453) target = $region52
      $region51: #{encoder_pca_forward.5} parent=11 // pred_region
        _
      $region52: #{encoder_pca_forward.5} parent=11 // pred_fallthru
        _
      // Predicated region
      $region53: #{encoder_pca_forward.5} parent=11 // pred_check
        %p456 = pneg %p280
      $region54: #{encoder_pca_forward.5} parent=11 // pred_check_branch
        %458 = sbr.rel (%p456) target = $region56
      $region55: #{encoder_pca_forward.5} parent=11 // pred_region
        _
      $region56: #{encoder_pca_forward.5} parent=11 // pred_fallthru
        _
      // Predicated region
      $region57: #{encoder_pca_forward.5} parent=11 // pred_check
        %p459 = pneg %p301
      $region58: #{encoder_pca_forward.5} parent=11 // pred_check_branch
        %461 = sbr.rel (%p459) target = $region60
      $region59: #{encoder_pca_forward.5} parent=11 // pred_region
        _
      $region60: #{encoder_pca_forward.5} parent=11 // pred_fallthru
        _
      // Predicated region
      $region61: #{encoder_pca_forward.5} parent=11 // pred_check
        %p462 = pneg %p322
      $region62: #{encoder_pca_forward.5} parent=11 // pred_check_branch
        %464 = sbr.rel (%p462) target = $region64
      $region63: #{encoder_pca_forward.5} parent=11 // pred_region
        _
      $region64: #{encoder_pca_forward.5} parent=11 // pred_fallthru
        _
      // Predicated region
      $region65: #{encoder_pca_forward.5} parent=11 // pred_check
        %p465 = pneg %p343
      $region66: #{encoder_pca_forward.5} parent=11 // pred_check_branch
        %467 = sbr.rel (%p465) target = $region68
      $region67: #{encoder_pca_forward.5} parent=11 // pred_region
        _
      $region68: #{encoder_pca_forward.5} parent=11 // pred_fallthru
        _
      // Predicated region
      $region69: #{encoder_pca_forward.5} parent=11 // pred_check
        %p468 = pneg %p364
      $region70: #{encoder_pca_forward.5} parent=11 // pred_check_branch
        %470 = sbr.rel (%p468) target = $region72
      $region71: #{encoder_pca_forward.5} parent=11 // pred_region
        _
      $region72: #{encoder_pca_forward.5} parent=11 // pred_fallthru
        _
      // Predicated region
      $region73: #{encoder_pca_forward.5} parent=11 // pred_check
        %p471 = pneg %p385
      $region74: #{encoder_pca_forward.5} parent=11 // pred_check_branch
        %473 = sbr.rel (%p471) target = $region76
      $region75: #{encoder_pca_forward.5} parent=11 // pred_region
        _
      $region76: #{encoder_pca_forward.5} parent=11 // pred_fallthru
        _
    $region12: #{encoder_pca_forward.5} parent=5 // pred_fallthru
      _
    %p474 = scmp.lt.s32.totalorder %s23, 2
    // Predicated region
    $region77: #{encoder_pca_forward.5} parent=5 // pred_check
      %p475 = pneg %p474
    $region78: #{encoder_pca_forward.5} parent=5 // pred_check_branch
      %477 = sbr.rel (%p475) target = $region80
    $region79: #{encoder_pca_forward.5} parent=5 // pred_region
      // Predicated region
      $region81: #{encoder_pca_forward.5} parent=79 // pred_check
        %p478 = pneg %p43
      $region82: #{encoder_pca_forward.5} parent=79 // pred_check_branch
        %480 = sbr.rel (%p478) target = $region84
      $region83: #{encoder_pca_forward.5} parent=79 // pred_region
        %p481 = scmp.lt.s32.totalorder %s23, 1
        %s482 = scalar_select %p481, %s23, 1
        %s483 = smul.addr %s482, 8
        %s484 = scalar_lea.vmem %s0, %s483
      $region84: #{encoder_pca_forward.5} parent=79 // pred_fallthru
        _
    $region80: #{encoder_pca_forward.5} parent=5 // pred_fallthru
      _
    %p485 = scmp.le.s32.totalorder 1, %s23
    %p486 = scmp.lt.s32.totalorder %s23, 3
    %p487 = pnand %p485, %p486
    %p488 = pneg %p487
    // Predicated region
    $region85: #{encoder_pca_forward.5} parent=5 // pred_check
      _
    $region86: #{encoder_pca_forward.5} parent=5 // pred_check_branch
      %490 = sbr.rel (%p487) target = $region88
    $region87: #{encoder_pca_forward.5} parent=5 // pred_region
      %s491 = ssub.s32 %s23, 1
      %p492 = scmp.lt.s32.totalorder %s28, 1
      %s493 = scalar_select %p492, %s28, 1
      %s494 = smul.addr %s493, 8
      %s495 = scalar_lea.vmem %s0, %s494
      %p496 = pneg %p49
      %p497 = pneg %p46
      %p498 = pneg %p70
      %p499 = pneg %p67
      %p500 = pneg %p91
      %p501 = pneg %p88
      %p502 = pneg %p112
      %p503 = pneg %p109
      %p504 = pneg %p133
      %p505 = pneg %p130
      %p506 = pneg %p154
      %p507 = pneg %p151
      %p508 = pneg %p175
      %p509 = pneg %p172
      %p510 = pneg %p196
      %p511 = pneg %p193
      %p512 = pneg %p217
      %p513 = pneg %p214
      %p514 = pneg %p238
      %p515 = pneg %p235
      %p516 = pneg %p259
      %p517 = pneg %p256
      %p518 = pneg %p280
      %p519 = pneg %p277
      %p520 = pneg %p301
      %p521 = pneg %p298
      %p522 = pneg %p322
      %p523 = pneg %p319
      %p524 = pneg %p343
      %p525 = pneg %p340
      %p526 = pneg %p364
      %p527 = pneg %p361
      %p528 = pneg %p385
      %p529 = pneg %p382
      %p530 = pneg %p411
      %p531 = pneg %p408
      %p532 = scmp.lt.s32.totalorder %s28, 1
      %s533 = scalar_select %p532, %s28, 1
      %s534 = smul.addr %s533, 8
      %s535 = scalar_lea.vmem %s17, %s534
      %p536 = scmp.lt.s32.totalorder %s28, 1
      %s537 = scalar_select %p536, %s28, 1
      %s538 = smul.addr %s537, 8
      %s539 = scalar_lea.vmem %s0, %s538
      %p540 = scmp.lt.s32.totalorder %s28, 1
      %s541 = scalar_select %p540, %s28, 1
      %s542 = smul.addr %s541, 8
      %s543 = scalar_lea.vmem %s17, %s542
      %v544 = vld [vmem:[%s539] sm:$0xff]
      %v545 = vld [vmem:[%s1] sm:$0xff]
      %v546 = vld [vmem:[%s1 + $0x8] sm:$0xff]
      %v547 = vld [vmem:[%s1 + $0x10] sm:$0xff]
      %v548 = vld [vmem:[%s1 + $0x18] sm:$0xff]
      %v549 = vld [vmem:[%s2] sm:$0x1]
      %v551 = vperm.slane %v549, 0
      %vm553 = vcmask 261120
      %v555 = vsel %vm553, %v544, 0
      %557 = vmatpush.msra.mxu0 0.0
      %558 = vmatpush.msra.mxu0 0.0
      %559 = vmatpush.msra.mxu0 0.0
      %560 = vmatpush.msra.mxu0 0.0
      %561 = vmatpush.msra.mxu0 0.0
      %562 = vmatpush.msra.mxu0 0.0
      %563 = vmatpush.msra.mxu0 0.0
      %564 = vmatpush.msra.mxu0 0.0
      %565 = vmatpush.msra.mxu0 0.0
      %566 = vmatpush.msra.mxu0 0.0
      %567 = vmatpush.msra.mxu0 0.0
      %568 = vmatpush.msra.mxu0 0.0
      %569 = vmatpush.msra.mxu0 %v548
      %570 = vmatpush.msra.mxu0 %v547
      %571 = vmatpush.msra.mxu0 %v546
      %572 = vmatpush.msra.mxu0 %v545
      %573 = vmatmul.f32.gmra.mxu0 %v555
      %v574 = vpop.f32.mrf.mxu0
      %v575 = vadd.f32 %v551, %v574
      %576 = vdwg.mxu0
      %v577 = vld [vmem:[%s3] sm:$0xff]
      %v578 = vld [vmem:[%s3 + $0x8] sm:$0xff]
      %v579 = vld [vmem:[%s3 + $0x10] sm:$0xff]
      %v580 = vld [vmem:[%s3 + $0x18] sm:$0xff]
      %v581 = vld [vmem:[%s4] sm:$0x1]
      %v583 = vperm.slane %v581, 0
      %585 = vmatpush.msra.mxu0 0.0
      %586 = vmatpush.msra.mxu0 0.0
      %587 = vmatpush.msra.mxu0 0.0
      %588 = vmatpush.msra.mxu0 0.0
      %589 = vmatpush.msra.mxu0 0.0
      %590 = vmatpush.msra.mxu0 0.0
      %591 = vmatpush.msra.mxu0 0.0
      %592 = vmatpush.msra.mxu0 0.0
      %593 = vmatpush.msra.mxu0 0.0
      %594 = vmatpush.msra.mxu0 0.0
      %595 = vmatpush.msra.mxu0 0.0
      %596 = vmatpush.msra.mxu0 0.0
      %597 = vmatpush.msra.mxu0 %v580
      %598 = vmatpush.msra.mxu0 %v579
      %599 = vmatpush.msra.mxu0 %v578
      %600 = vmatpush.msra.mxu0 %v577
      %601 = vmatmul.f32.gmra.mxu0 %v555
      %v602 = vpop.f32.mrf.mxu0
      %v603 = vadd.f32 %v583, %v602
      %604 = vdwg.mxu0
      %v605 = vld [vmem:[%s5] sm:$0xff]
      %v606 = vld [vmem:[%s5 + $0x8] sm:$0xff]
      %v607 = vld [vmem:[%s5 + $0x10] sm:$0xff]
      %v608 = vld [vmem:[%s5 + $0x18] sm:$0xff]
      %v609 = vld [vmem:[%s6] sm:$0x1]
      %v611 = vperm.slane %v609, 0
      %613 = vmatpush.msra.mxu0 0.0
      %614 = vmatpush.msra.mxu0 0.0
      %615 = vmatpush.msra.mxu0 0.0
      %616 = vmatpush.msra.mxu0 0.0
      %617 = vmatpush.msra.mxu0 0.0
      %618 = vmatpush.msra.mxu0 0.0
      %619 = vmatpush.msra.mxu0 0.0
      %620 = vmatpush.msra.mxu0 0.0
      %621 = vmatpush.msra.mxu0 0.0
      %622 = vmatpush.msra.mxu0 0.0
      %623 = vmatpush.msra.mxu0 0.0
      %624 = vmatpush.msra.mxu0 0.0
      %625 = vmatpush.msra.mxu0 %v608
      %626 = vmatpush.msra.mxu0 %v607
      %627 = vmatpush.msra.mxu0 %v606
      %628 = vmatpush.msra.mxu0 %v605
      %629 = vmatmul.f32.gmra.mxu0 %v555
      %v630 = vpop.f32.mrf.mxu0
      %v631 = vadd.f32 %v611, %v630
      %632 = vdwg.mxu0
      %vm633 = vcmask 64512
      %v635 = vsel %vm633, %v575, 0
      %v638 = vsel %vm633, %v603, 0
      %640 = vmatpush.xpose.msra.mxu0 0.0
      %641 = vmatpush.xpose.msra.mxu0 0.0
      %642 = vmatpush.xpose.msra.mxu0 0.0
      %643 = vmatpush.xpose.msra.mxu0 0.0
      %644 = vmatpush.xpose.msra.mxu0 0.0
      %645 = vmatpush.xpose.msra.mxu0 0.0
      %646 = vmatpush.xpose.msra.mxu0 0.0
      %647 = vmatpush.xpose.msra.mxu0 0.0
      %648 = vmatpush.xpose.msra.mxu0 0.0
      %649 = vmatpush.xpose.msra.mxu0 0.0
      %650 = vmatpush.xpose.msra.mxu0 0.0
      %651 = vmatpush.xpose.msra.mxu0 0.0
      %652 = vmatpush.xpose.msra.mxu0 0.0
      %653 = vmatpush.xpose.msra.mxu0 0.0
      %654 = vmatpush.xpose.msra.mxu0 0.0
      %655 = vmatpush.xpose.msra.mxu0 %v638
      %656 = vmatmul.f32.gmra.mxu0 %v635
      %v657 = vpop.f32.mrf.mxu0
      %v658 = vadd.f32 0.0, %v657
      %659 = vdwg.mxu0
      %v660 = vmul.f32 %v658, 0.35355338
      %v661 = vsel %vm633, %v660, -inf
      %662 = vmax.xlane.f32.xlu0 %v661
      %v663 = vpop.xlane.xlu0 %662
      %v664 = vsub.f32 %v660, %v663
      %v665 = vmul.f32 %v664, 1.442695
      %v666 = vpow.pop %v665
      %v667 = vsel %vm633, %v666, 0.0
      %668 = vadd.xlane.f32.xlu0 %v667
      %v669 = vpop.xlane.xlu0 %668
      %v670 = vrcp.pop %v669
      %v671 = vmul.f32 %v666, %v670
      %v673 = vsel %vm633, %v671, 0
      %675 = vmatpush.msra.mxu0 0.0
      %676 = vmatpush.msra.mxu0 0.0
      %677 = vmatpush.msra.mxu0 0.0
      %678 = vmatpush.msra.mxu0 0.0
      %679 = vmatpush.msra.mxu0 0.0
      %680 = vmatpush.msra.mxu0 0.0
      %681 = vmatpush.msra.mxu0 0.0
      %682 = vmatpush.msra.mxu0 0.0
      %683 = vmatpush.msra.mxu0 0.0
      %684 = vmatpush.msra.mxu0 0.0
      %685 = vmatpush.msra.mxu0 0.0
      %686 = vmatpush.msra.mxu0 0.0
      %687 = vmatpush.msra.mxu0 0.0
      %688 = vmatpush.msra.mxu0 0.0
      %689 = vmatpush.msra.mxu0 0.0
      %690 = vmatpush.msra.mxu0 %v631
      %691 = vmatmul.f32.gmra.mxu0 %v673
      %v692 = vpop.f32.mrf.mxu0
      %v693 = vadd.f32 0.0, %v692
      %694 = vdwg.mxu0
      %v695 = vld [vmem:[%s7] sm:$0xff]
      %s696 = scalar_lea.vmem %s1, 32
      %v697 = vld [vmem:[%s696] sm:$0xff]
      %v698 = vld [vmem:[%s696 + $0x8] sm:$0xff]
      %v699 = vld [vmem:[%s696 + $0x10] sm:$0xff]
      %v700 = vld [vmem:[%s696 + $0x18] sm:$0xff]
      %s701 = scalar_lea.vmem %s2, 1
      %v702 = vld [vmem:[%s701] sm:$0x1]
      %v704 = vperm.slane %v702, 0
      %706 = vmatpush.msra.mxu0 0.0
      %707 = vmatpush.msra.mxu0 0.0
      %708 = vmatpush.msra.mxu0 0.0
      %709 = vmatpush.msra.mxu0 0.0
      %710 = vmatpush.msra.mxu0 0.0
      %711 = vmatpush.msra.mxu0 0.0
      %712 = vmatpush.msra.mxu0 0.0
      %713 = vmatpush.msra.mxu0 0.0
      %714 = vmatpush.msra.mxu0 0.0
      %715 = vmatpush.msra.mxu0 0.0
      %716 = vmatpush.msra.mxu0 0.0
      %717 = vmatpush.msra.mxu0 0.0
      %718 = vmatpush.msra.mxu0 %v700
      %719 = vmatpush.msra.mxu0 %v699
      %720 = vmatpush.msra.mxu0 %v698
      %721 = vmatpush.msra.mxu0 %v697
      %722 = vmatmul.f32.gmra.mxu0 %v555
      %v723 = vpop.f32.mrf.mxu0
      %v724 = vadd.f32 %v704, %v723
      %725 = vdwg.mxu0
      %s726 = scalar_lea.vmem %s3, 32
      %v727 = vld [vmem:[%s726] sm:$0xff]
      %v728 = vld [vmem:[%s726 + $0x8] sm:$0xff]
      %v729 = vld [vmem:[%s726 + $0x10] sm:$0xff]
      %v730 = vld [vmem:[%s726 + $0x18] sm:$0xff]
      %s731 = scalar_lea.vmem %s4, 1
      %v732 = vld [vmem:[%s731] sm:$0x1]
      %v734 = vperm.slane %v732, 0
      %736 = vmatpush.msra.mxu0 0.0
      %737 = vmatpush.msra.mxu0 0.0
      %738 = vmatpush.msra.mxu0 0.0
      %739 = vmatpush.msra.mxu0 0.0
      %740 = vmatpush.msra.mxu0 0.0
      %741 = vmatpush.msra.mxu0 0.0
      %742 = vmatpush.msra.mxu0 0.0
      %743 = vmatpush.msra.mxu0 0.0
      %744 = vmatpush.msra.mxu0 0.0
      %745 = vmatpush.msra.mxu0 0.0
      %746 = vmatpush.msra.mxu0 0.0
      %747 = vmatpush.msra.mxu0 0.0
      %748 = vmatpush.msra.mxu0 %v730
      %749 = vmatpush.msra.mxu0 %v729
      %750 = vmatpush.msra.mxu0 %v728
      %751 = vmatpush.msra.mxu0 %v727
      %752 = vmatmul.f32.gmra.mxu0 %v555
      %v753 = vpop.f32.mrf.mxu0
      %v754 = vadd.f32 %v734, %v753
      %755 = vdwg.mxu0
      %s756 = scalar_lea.vmem %s5, 32
      %v757 = vld [vmem:[%s756] sm:$0xff]
      %v758 = vld [vmem:[%s756 + $0x8] sm:$0xff]
      %v759 = vld [vmem:[%s756 + $0x10] sm:$0xff]
      %v760 = vld [vmem:[%s756 + $0x18] sm:$0xff]
      %s761 = scalar_lea.vmem %s6, 1
      %v762 = vld [vmem:[%s761] sm:$0x1]
      %v764 = vperm.slane %v762, 0
      %766 = vmatpush.msra.mxu0 0.0
      %767 = vmatpush.msra.mxu0 0.0
      %768 = vmatpush.msra.mxu0 0.0
      %769 = vmatpush.msra.mxu0 0.0
      %770 = vmatpush.msra.mxu0 0.0
      %771 = vmatpush.msra.mxu0 0.0
      %772 = vmatpush.msra.mxu0 0.0
      %773 = vmatpush.msra.mxu0 0.0
      %774 = vmatpush.msra.mxu0 0.0
      %775 = vmatpush.msra.mxu0 0.0
      %776 = vmatpush.msra.mxu0 0.0
      %777 = vmatpush.msra.mxu0 0.0
      %778 = vmatpush.msra.mxu0 %v760
      %779 = vmatpush.msra.mxu0 %v759
      %780 = vmatpush.msra.mxu0 %v758
      %781 = vmatpush.msra.mxu0 %v757
      %782 = vmatmul.f32.gmra.mxu0 %v555
      %v783 = vpop.f32.mrf.mxu0
      %v784 = vadd.f32 %v764, %v783
      %785 = vdwg.mxu0
      %v787 = vsel %vm633, %v724, 0
      %v790 = vsel %vm633, %v754, 0
      %792 = vmatpush.xpose.msra.mxu0 0.0
      %793 = vmatpush.xpose.msra.mxu0 0.0
      %794 = vmatpush.xpose.msra.mxu0 0.0
      %795 = vmatpush.xpose.msra.mxu0 0.0
      %796 = vmatpush.xpose.msra.mxu0 0.0
      %797 = vmatpush.xpose.msra.mxu0 0.0
      %798 = vmatpush.xpose.msra.mxu0 0.0
      %799 = vmatpush.xpose.msra.mxu0 0.0
      %800 = vmatpush.xpose.msra.mxu0 0.0
      %801 = vmatpush.xpose.msra.mxu0 0.0
      %802 = vmatpush.xpose.msra.mxu0 0.0
      %803 = vmatpush.xpose.msra.mxu0 0.0
      %804 = vmatpush.xpose.msra.mxu0 0.0
      %805 = vmatpush.xpose.msra.mxu0 0.0
      %806 = vmatpush.xpose.msra.mxu0 0.0
      %807 = vmatpush.xpose.msra.mxu0 %v790
      %808 = vmatmul.f32.gmra.mxu0 %v787
      %v809 = vpop.f32.mrf.mxu0
      %v810 = vadd.f32 0.0, %v809
      %811 = vdwg.mxu0
      %v812 = vmul.f32 %v810, 0.35355338
      %v813 = vsel %vm633, %v812, -inf
      %814 = vmax.xlane.f32.xlu0 %v813
      %v815 = vpop.xlane.xlu0 %814
      %v816 = vsub.f32 %v812, %v815
      %v817 = vmul.f32 %v816, 1.442695
      %v818 = vpow.pop %v817
      %v819 = vsel %vm633, %v818, 0.0
      %820 = vadd.xlane.f32.xlu0 %v819
      %v821 = vpop.xlane.xlu0 %820
      %v822 = vrcp.pop %v821
      %v823 = vmul.f32 %v818, %v822
      %v825 = vsel %vm633, %v823, 0
      %827 = vmatpush.msra.mxu0 0.0
      %828 = vmatpush.msra.mxu0 0.0
      %829 = vmatpush.msra.mxu0 0.0
      %830 = vmatpush.msra.mxu0 0.0
      %831 = vmatpush.msra.mxu0 0.0
      %832 = vmatpush.msra.mxu0 0.0
      %833 = vmatpush.msra.mxu0 0.0
      %834 = vmatpush.msra.mxu0 0.0
      %835 = vmatpush.msra.mxu0 0.0
      %836 = vmatpush.msra.mxu0 0.0
      %837 = vmatpush.msra.mxu0 0.0
      %838 = vmatpush.msra.mxu0 0.0
      %839 = vmatpush.msra.mxu0 0.0
      %840 = vmatpush.msra.mxu0 0.0
      %841 = vmatpush.msra.mxu0 0.0
      %842 = vmatpush.msra.mxu0 %v784
      %843 = vmatmul.f32.gmra.mxu0 %v825
      %v844 = vpop.f32.mrf.mxu0
      %v845 = vadd.f32 0.0, %v844
      %846 = vdwg.mxu0
      %s847 = scalar_lea.vmem %s7, 8
      %v848 = vld [vmem:[%s847] sm:$0xff]
      %v850 = vsel %vm633, %v845, 0
      %852 = vmatpush.msra.mxu0 0.0
      %853 = vmatpush.msra.mxu0 0.0
      %854 = vmatpush.msra.mxu0 0.0
      %855 = vmatpush.msra.mxu0 0.0
      %856 = vmatpush.msra.mxu0 0.0
      %857 = vmatpush.msra.mxu0 0.0
      %858 = vmatpush.msra.mxu0 0.0
      %859 = vmatpush.msra.mxu0 0.0
      %860 = vmatpush.msra.mxu0 0.0
      %861 = vmatpush.msra.mxu0 0.0
      %862 = vmatpush.msra.mxu0 0.0
      %863 = vmatpush.msra.mxu0 0.0
      %864 = vmatpush.msra.mxu0 0.0
      %865 = vmatpush.msra.mxu0 0.0
      %866 = vmatpush.msra.mxu0 0.0
      %867 = vmatpush.msra.mxu0 %v848
      %868 = vmatmul.f32.gmra.mxu0 %v850
      %v869 = vpop.f32.mrf.mxu0
      %v870 = vadd.f32 0.0, %v869
      %871 = vdwg.mxu0
      %v873 = vsel %vm633, %v693, 0
      %875 = vmatpush.msra.mxu0 0.0
      %876 = vmatpush.msra.mxu0 0.0
      %877 = vmatpush.msra.mxu0 0.0
      %878 = vmatpush.msra.mxu0 0.0
      %879 = vmatpush.msra.mxu0 0.0
      %880 = vmatpush.msra.mxu0 0.0
      %881 = vmatpush.msra.mxu0 0.0
      %882 = vmatpush.msra.mxu0 0.0
      %883 = vmatpush.msra.mxu0 0.0
      %884 = vmatpush.msra.mxu0 0.0
      %885 = vmatpush.msra.mxu0 0.0
      %886 = vmatpush.msra.mxu0 0.0
      %887 = vmatpush.msra.mxu0 0.0
      %888 = vmatpush.msra.mxu0 0.0
      %889 = vmatpush.msra.mxu0 0.0
      %890 = vmatpush.msra.mxu0 %v695
      %891 = vmatmul.f32.gmra.mxu0 %v873
      %v892 = vpop.f32.mrf.mxu0
      %v893 = vadd.f32 %v870, %v892
      %894 = vdwg.mxu0
      %s895 = scalar_lea.vmem %s1, 64
      %v896 = vld [vmem:[%s895] sm:$0xff]
      %v897 = vld [vmem:[%s895 + $0x8] sm:$0xff]
      %v898 = vld [vmem:[%s895 + $0x10] sm:$0xff]
      %v899 = vld [vmem:[%s895 + $0x18] sm:$0xff]
      %s900 = scalar_lea.vmem %s2, 2
      %v901 = vld [vmem:[%s900] sm:$0x1]
      %v903 = vperm.slane %v901, 0
      %905 = vmatpush.msra.mxu0 0.0
      %906 = vmatpush.msra.mxu0 0.0
      %907 = vmatpush.msra.mxu0 0.0
      %908 = vmatpush.msra.mxu0 0.0
      %909 = vmatpush.msra.mxu0 0.0
      %910 = vmatpush.msra.mxu0 0.0
      %911 = vmatpush.msra.mxu0 0.0
      %912 = vmatpush.msra.mxu0 0.0
      %913 = vmatpush.msra.mxu0 0.0
      %914 = vmatpush.msra.mxu0 0.0
      %915 = vmatpush.msra.mxu0 0.0
      %916 = vmatpush.msra.mxu0 0.0
      %917 = vmatpush.msra.mxu0 %v899
      %918 = vmatpush.msra.mxu0 %v898
      %919 = vmatpush.msra.mxu0 %v897
      %920 = vmatpush.msra.mxu0 %v896
      %921 = vmatmul.f32.gmra.mxu0 %v555
      %v922 = vpop.f32.mrf.mxu0
      %v923 = vadd.f32 %v903, %v922
      %924 = vdwg.mxu0
      %s925 = scalar_lea.vmem %s3, 64
      %v926 = vld [vmem:[%s925] sm:$0xff]
      %v927 = vld [vmem:[%s925 + $0x8] sm:$0xff]
      %v928 = vld [vmem:[%s925 + $0x10] sm:$0xff]
      %v929 = vld [vmem:[%s925 + $0x18] sm:$0xff]
      %s930 = scalar_lea.vmem %s4, 2
      %v931 = vld [vmem:[%s930] sm:$0x1]
      %v933 = vperm.slane %v931, 0
      %935 = vmatpush.msra.mxu0 0.0
      %936 = vmatpush.msra.mxu0 0.0
      %937 = vmatpush.msra.mxu0 0.0
      %938 = vmatpush.msra.mxu0 0.0
      %939 = vmatpush.msra.mxu0 0.0
      %940 = vmatpush.msra.mxu0 0.0
      %941 = vmatpush.msra.mxu0 0.0
      %942 = vmatpush.msra.mxu0 0.0
      %943 = vmatpush.msra.mxu0 0.0
      %944 = vmatpush.msra.mxu0 0.0
      %945 = vmatpush.msra.mxu0 0.0
      %946 = vmatpush.msra.mxu0 0.0
      %947 = vmatpush.msra.mxu0 %v929
      %948 = vmatpush.msra.mxu0 %v928
      %949 = vmatpush.msra.mxu0 %v927
      %950 = vmatpush.msra.mxu0 %v926
      %951 = vmatmul.f32.gmra.mxu0 %v555
      %v952 = vpop.f32.mrf.mxu0
      %v953 = vadd.f32 %v933, %v952
      %954 = vdwg.mxu0
      %s955 = scalar_lea.vmem %s5, 64
      %v956 = vld [vmem:[%s955] sm:$0xff]
      %v957 = vld [vmem:[%s955 + $0x8] sm:$0xff]
      %v958 = vld [vmem:[%s955 + $0x10] sm:$0xff]
      %v959 = vld [vmem:[%s955 + $0x18] sm:$0xff]
      %s960 = scalar_lea.vmem %s6, 2
      %v961 = vld [vmem:[%s960] sm:$0x1]
      %v963 = vperm.slane %v961, 0
      %965 = vmatpush.msra.mxu0 0.0
      %966 = vmatpush.msra.mxu0 0.0
      %967 = vmatpush.msra.mxu0 0.0
      %968 = vmatpush.msra.mxu0 0.0
      %969 = vmatpush.msra.mxu0 0.0
      %970 = vmatpush.msra.mxu0 0.0
      %971 = vmatpush.msra.mxu0 0.0
      %972 = vmatpush.msra.mxu0 0.0
      %973 = vmatpush.msra.mxu0 0.0
      %974 = vmatpush.msra.mxu0 0.0
      %975 = vmatpush.msra.mxu0 0.0
      %976 = vmatpush.msra.mxu0 0.0
      %977 = vmatpush.msra.mxu0 %v959
      %978 = vmatpush.msra.mxu0 %v958
      %979 = vmatpush.msra.mxu0 %v957
      %980 = vmatpush.msra.mxu0 %v956
      %981 = vmatmul.f32.gmra.mxu0 %v555
      %v982 = vpop.f32.mrf.mxu0
      %v983 = vadd.f32 %v963, %v982
      %984 = vdwg.mxu0
      %v986 = vsel %vm633, %v923, 0
      %v989 = vsel %vm633, %v953, 0
      %991 = vmatpush.xpose.msra.mxu0 0.0
      %992 = vmatpush.xpose.msra.mxu0 0.0
      %993 = vmatpush.xpose.msra.mxu0 0.0
      %994 = vmatpush.xpose.msra.mxu0 0.0
      %995 = vmatpush.xpose.msra.mxu0 0.0
      %996 = vmatpush.xpose.msra.mxu0 0.0
      %997 = vmatpush.xpose.msra.mxu0 0.0
      %998 = vmatpush.xpose.msra.mxu0 0.0
      %999 = vmatpush.xpose.msra.mxu0 0.0
      %1000 = vmatpush.xpose.msra.mxu0 0.0
      %1001 = vmatpush.xpose.msra.mxu0 0.0
      %1002 = vmatpush.xpose.msra.mxu0 0.0
      %1003 = vmatpush.xpose.msra.mxu0 0.0
      %1004 = vmatpush.xpose.msra.mxu0 0.0
      %1005 = vmatpush.xpose.msra.mxu0 0.0
      %1006 = vmatpush.xpose.msra.mxu0 %v989
      %1007 = vmatmul.f32.gmra.mxu0 %v986
      %v1008 = vpop.f32.mrf.mxu0
      %v1009 = vadd.f32 0.0, %v1008
      %1010 = vdwg.mxu0
      %v1011 = vmul.f32 %v1009, 0.35355338
      %v1012 = vsel %vm633, %v1011, -inf
      %1013 = vmax.xlane.f32.xlu0 %v1012
      %v1014 = vpop.xlane.xlu0 %1013
      %v1015 = vsub.f32 %v1011, %v1014
      %v1016 = vmul.f32 %v1015, 1.442695
      %v1017 = vpow.pop %v1016
      %v1018 = vsel %vm633, %v1017, 0.0
      %1019 = vadd.xlane.f32.xlu0 %v1018
      %v1020 = vpop.xlane.xlu0 %1019
      %v1021 = vrcp.pop %v1020
      %v1022 = vmul.f32 %v1017, %v1021
      %v1024 = vsel %vm633, %v1022, 0
      %1026 = vmatpush.msra.mxu0 0.0
      %1027 = vmatpush.msra.mxu0 0.0
      %1028 = vmatpush.msra.mxu0 0.0
      %1029 = vmatpush.msra.mxu0 0.0
      %1030 = vmatpush.msra.mxu0 0.0
      %1031 = vmatpush.msra.mxu0 0.0
      %1032 = vmatpush.msra.mxu0 0.0
      %1033 = vmatpush.msra.mxu0 0.0
      %1034 = vmatpush.msra.mxu0 0.0
      %1035 = vmatpush.msra.mxu0 0.0
      %1036 = vmatpush.msra.mxu0 0.0
      %1037 = vmatpush.msra.mxu0 0.0
      %1038 = vmatpush.msra.mxu0 0.0
      %1039 = vmatpush.msra.mxu0 0.0
      %1040 = vmatpush.msra.mxu0 0.0
      %1041 = vmatpush.msra.mxu0 %v983
      %1042 = vmatmul.f32.gmra.mxu0 %v1024
      %v1043 = vpop.f32.mrf.mxu0
      %v1044 = vadd.f32 0.0, %v1043
      %1045 = vdwg.mxu0
      %s1046 = scalar_lea.vmem %s7, 16
      %v1047 = vld [vmem:[%s1046] sm:$0xff]
      %v1049 = vsel %vm633, %v1044, 0
      %1051 = vmatpush.msra.mxu0 0.0
      %1052 = vmatpush.msra.mxu0 0.0
      %1053 = vmatpush.msra.mxu0 0.0
      %1054 = vmatpush.msra.mxu0 0.0
      %1055 = vmatpush.msra.mxu0 0.0
      %1056 = vmatpush.msra.mxu0 0.0
      %1057 = vmatpush.msra.mxu0 0.0
      %1058 = vmatpush.msra.mxu0 0.0
      %1059 = vmatpush.msra.mxu0 0.0
      %1060 = vmatpush.msra.mxu0 0.0
      %1061 = vmatpush.msra.mxu0 0.0
      %1062 = vmatpush.msra.mxu0 0.0
      %1063 = vmatpush.msra.mxu0 0.0
      %1064 = vmatpush.msra.mxu0 0.0
      %1065 = vmatpush.msra.mxu0 0.0
      %1066 = vmatpush.msra.mxu0 %v1047
      %1067 = vmatmul.f32.gmra.mxu0 %v1049
      %v1068 = vpop.f32.mrf.mxu0
      %v1069 = vadd.f32 0.0, %v1068
      %1070 = vdwg.mxu0
      %v1071 = vadd.f32 %v893, %v1069
      %s1072 = scalar_lea.vmem %s1, 96
      %v1073 = vld [vmem:[%s1072] sm:$0xff]
      %v1074 = vld [vmem:[%s1072 + $0x8] sm:$0xff]
      %v1075 = vld [vmem:[%s1072 + $0x10] sm:$0xff]
      %v1076 = vld [vmem:[%s1072 + $0x18] sm:$0xff]
      %s1077 = scalar_lea.vmem %s2, 3
      %v1078 = vld [vmem:[%s1077] sm:$0x1]
      %v1080 = vperm.slane %v1078, 0
      %1082 = vmatpush.msra.mxu0 0.0
      %1083 = vmatpush.msra.mxu0 0.0
      %1084 = vmatpush.msra.mxu0 0.0
      %1085 = vmatpush.msra.mxu0 0.0
      %1086 = vmatpush.msra.mxu0 0.0
      %1087 = vmatpush.msra.mxu0 0.0
      %1088 = vmatpush.msra.mxu0 0.0
      %1089 = vmatpush.msra.mxu0 0.0
      %1090 = vmatpush.msra.mxu0 0.0
      %1091 = vmatpush.msra.mxu0 0.0
      %1092 = vmatpush.msra.mxu0 0.0
      %1093 = vmatpush.msra.mxu0 0.0
      %1094 = vmatpush.msra.mxu0 %v1076
      %1095 = vmatpush.msra.mxu0 %v1075
      %1096 = vmatpush.msra.mxu0 %v1074
      %1097 = vmatpush.msra.mxu0 %v1073
      %1098 = vmatmul.f32.gmra.mxu0 %v555
      %v1099 = vpop.f32.mrf.mxu0
      %v1100 = vadd.f32 %v1080, %v1099
      %1101 = vdwg.mxu0
      %s1102 = scalar_lea.vmem %s3, 96
      %v1103 = vld [vmem:[%s1102] sm:$0xff]
      %v1104 = vld [vmem:[%s1102 + $0x8] sm:$0xff]
      %v1105 = vld [vmem:[%s1102 + $0x10] sm:$0xff]
      %v1106 = vld [vmem:[%s1102 + $0x18] sm:$0xff]
      %s1107 = scalar_lea.vmem %s4, 3
      %v1108 = vld [vmem:[%s1107] sm:$0x1]
      %v1110 = vperm.slane %v1108, 0
      %1112 = vmatpush.msra.mxu0 0.0
      %1113 = vmatpush.msra.mxu0 0.0
      %1114 = vmatpush.msra.mxu0 0.0
      %1115 = vmatpush.msra.mxu0 0.0
      %1116 = vmatpush.msra.mxu0 0.0
      %1117 = vmatpush.msra.mxu0 0.0
      %1118 = vmatpush.msra.mxu0 0.0
      %1119 = vmatpush.msra.mxu0 0.0
      %1120 = vmatpush.msra.mxu0 0.0
      %1121 = vmatpush.msra.mxu0 0.0
      %1122 = vmatpush.msra.mxu0 0.0
      %1123 = vmatpush.msra.mxu0 0.0
      %1124 = vmatpush.msra.mxu0 %v1106
      %1125 = vmatpush.msra.mxu0 %v1105
      %1126 = vmatpush.msra.mxu0 %v1104
      %1127 = vmatpush.msra.mxu0 %v1103
      %1128 = vmatmul.f32.gmra.mxu0 %v555
      %v1129 = vpop.f32.mrf.mxu0
      %v1130 = vadd.f32 %v1110, %v1129
      %1131 = vdwg.mxu0
      %s1132 = scalar_lea.vmem %s5, 96
      %v1133 = vld [vmem:[%s1132] sm:$0xff]
      %v1134 = vld [vmem:[%s1132 + $0x8] sm:$0xff]
      %v1135 = vld [vmem:[%s1132 + $0x10] sm:$0xff]
      %v1136 = vld [vmem:[%s1132 + $0x18] sm:$0xff]
      %s1137 = scalar_lea.vmem %s6, 3
      %v1138 = vld [vmem:[%s1137] sm:$0x1]
      %v1140 = vperm.slane %v1138, 0
      %1142 = vmatpush.msra.mxu0 0.0
      %1143 = vmatpush.msra.mxu0 0.0
      %1144 = vmatpush.msra.mxu0 0.0
      %1145 = vmatpush.msra.mxu0 0.0
      %1146 = vmatpush.msra.mxu0 0.0
      %1147 = vmatpush.msra.mxu0 0.0
      %1148 = vmatpush.msra.mxu0 0.0
      %1149 = vmatpush.msra.mxu0 0.0
      %1150 = vmatpush.msra.mxu0 0.0
      %1151 = vmatpush.msra.mxu0 0.0
      %1152 = vmatpush.msra.mxu0 0.0
      %1153 = vmatpush.msra.mxu0 0.0
      %1154 = vmatpush.msra.mxu0 %v1136
      %1155 = vmatpush.msra.mxu0 %v1135
      %1156 = vmatpush.msra.mxu0 %v1134
      %1157 = vmatpush.msra.mxu0 %v1133
      %1158 = vmatmul.f32.gmra.mxu0 %v555
      %v1159 = vpop.f32.mrf.mxu0
      %v1160 = vadd.f32 %v1140, %v1159
      %1161 = vdwg.mxu0
      %v1163 = vsel %vm633, %v1100, 0
      %v1166 = vsel %vm633, %v1130, 0
      %1168 = vmatpush.xpose.msra.mxu0 0.0
      %1169 = vmatpush.xpose.msra.mxu0 0.0
      %1170 = vmatpush.xpose.msra.mxu0 0.0
      %1171 = vmatpush.xpose.msra.mxu0 0.0
      %1172 = vmatpush.xpose.msra.mxu0 0.0
      %1173 = vmatpush.xpose.msra.mxu0 0.0
      %1174 = vmatpush.xpose.msra.mxu0 0.0
      %1175 = vmatpush.xpose.msra.mxu0 0.0
      %1176 = vmatpush.xpose.msra.mxu0 0.0
      %1177 = vmatpush.xpose.msra.mxu0 0.0
      %1178 = vmatpush.xpose.msra.mxu0 0.0
      %1179 = vmatpush.xpose.msra.mxu0 0.0
      %1180 = vmatpush.xpose.msra.mxu0 0.0
      %1181 = vmatpush.xpose.msra.mxu0 0.0
      %1182 = vmatpush.xpose.msra.mxu0 0.0
      %1183 = vmatpush.xpose.msra.mxu0 %v1166
      %1184 = vmatmul.f32.gmra.mxu0 %v1163
      %v1185 = vpop.f32.mrf.mxu0
      %v1186 = vadd.f32 0.0, %v1185
      %1187 = vdwg.mxu0
      %v1188 = vmul.f32 %v1186, 0.35355338
      %v1189 = vsel %vm633, %v1188, -inf
      %1190 = vmax.xlane.f32.xlu0 %v1189
      %v1191 = vpop.xlane.xlu0 %1190
      %v1192 = vsub.f32 %v1188, %v1191
      %v1193 = vmul.f32 %v1192, 1.442695
      %v1194 = vpow.pop %v1193
      %v1195 = vsel %vm633, %v1194, 0.0
      %1196 = vadd.xlane.f32.xlu0 %v1195
      %v1197 = vpop.xlane.xlu0 %1196
      %v1198 = vrcp.pop %v1197
      %v1199 = vmul.f32 %v1194, %v1198
      %v1201 = vsel %vm633, %v1199, 0
      %1203 = vmatpush.msra.mxu0 0.0
      %1204 = vmatpush.msra.mxu0 0.0
      %1205 = vmatpush.msra.mxu0 0.0
      %1206 = vmatpush.msra.mxu0 0.0
      %1207 = vmatpush.msra.mxu0 0.0
      %1208 = vmatpush.msra.mxu0 0.0
      %1209 = vmatpush.msra.mxu0 0.0
      %1210 = vmatpush.msra.mxu0 0.0
      %1211 = vmatpush.msra.mxu0 0.0
      %1212 = vmatpush.msra.mxu0 0.0
      %1213 = vmatpush.msra.mxu0 0.0
      %1214 = vmatpush.msra.mxu0 0.0
      %1215 = vmatpush.msra.mxu0 0.0
      %1216 = vmatpush.msra.mxu0 0.0
      %1217 = vmatpush.msra.mxu0 0.0
      %1218 = vmatpush.msra.mxu0 %v1160
      %1219 = vmatmul.f32.gmra.mxu0 %v1201
      %v1220 = vpop.f32.mrf.mxu0
      %v1221 = vadd.f32 0.0, %v1220
      %1222 = vdwg.mxu0
      %s1223 = scalar_lea.vmem %s7, 24
      %v1224 = vld [vmem:[%s1223] sm:$0xff]
      %v1226 = vsel %vm633, %v1221, 0
      %1228 = vmatpush.msra.mxu0 0.0
      %1229 = vmatpush.msra.mxu0 0.0
      %1230 = vmatpush.msra.mxu0 0.0
      %1231 = vmatpush.msra.mxu0 0.0
      %1232 = vmatpush.msra.mxu0 0.0
      %1233 = vmatpush.msra.mxu0 0.0
      %1234 = vmatpush.msra.mxu0 0.0
      %1235 = vmatpush.msra.mxu0 0.0
      %1236 = vmatpush.msra.mxu0 0.0
      %1237 = vmatpush.msra.mxu0 0.0
      %1238 = vmatpush.msra.mxu0 0.0
      %1239 = vmatpush.msra.mxu0 0.0
      %1240 = vmatpush.msra.mxu0 0.0
      %1241 = vmatpush.msra.mxu0 0.0
      %1242 = vmatpush.msra.mxu0 0.0
      %1243 = vmatpush.msra.mxu0 %v1224
      %1244 = vmatmul.f32.gmra.mxu0 %v1226
      %v1245 = vpop.f32.mrf.mxu0
      %v1246 = vadd.f32 0.0, %v1245
      %1247 = vdwg.mxu0
      %v1248 = vadd.f32 %v1071, %v1246
      %v1249 = vld [vmem:[%s8] sm:$0x1]
      %v1251 = vperm.slane %v1249, 0
      %v1253 = vadd.f32 %v1248, %v1251
      %v1254 = vadd.f32 %v544, %v1253
      %v1255 = vld [vmem:[%s9] sm:$0x1]
      %v1256 = vld [vmem:[%s10] sm:$0x1]
      %v1257 = vsel %vm553, %v1254, 0.0
      %1258 = vadd.xlane.f32.xlu0 %v1257
      %v1259 = vpop.xlane.xlu0 %1258
      %v1260 = vrcp.pop 32.0
      %v1261 = vmul.f32 32.0, %v1260
      %v1262 = vsub.f32 1.0, %v1261
      %v1263 = vmul.f32 %v1260, %v1262
      %v1264 = vadd.f32 %v1260, %v1263
      %vm1265 = vweird.f32 %v1260
      %v1266 = vsel %vm1265, %v1260, %v1264
      %v1267 = vmul.f32 %v1259, %v1266
      %v1268 = vsub.f32 %v1254, %v1267
      %v1269 = vmul.f32 %v1268, %v1268
      %v1270 = vsel %vm553, %v1269, 0.0
      %1271 = vadd.xlane.f32.xlu0 %v1270
      %v1272 = vpop.xlane.xlu0 %1271
      %v1273 = vmul.f32 %v1272, %v1266
      %v1274 = vadd.f32 %v1273, 1e-05
      %v1275 = vrsqrt.pop %v1274
      %v1276 = vmul.f32 %v1275, %v1274
      %v1277 = vmul.f32 %v1276, %v1275
      %v1278 = vmul.f32 0.5, %v1277
      %v1279 = vsub.f32 1.5, %v1278
      %v1280 = vmul.f32 %v1275, %v1279
      %vm1281 = vweird.f32 %v1274
      %vm1282 = vweird.f32 %v1275
      %vm1283 = vmor %vm1281, %vm1282
      %v1284 = vsel %vm1283, %v1275, %v1280
      %v1285 = vmul.f32 %v1268, %v1284
      %v1287 = vperm.slane %v1255, 0
      %v1289 = vmul.f32 %v1285, %v1287
      %v1291 = vperm.slane %v1256, 0
      %v1293 = vadd.f32 %v1289, %v1291
      %v1294 = vld [vmem:[%s11] sm:$0xff]
      %v1295 = vld [vmem:[%s11 + $0x8] sm:$0xff]
      %v1296 = vld [vmem:[%s11 + $0x10] sm:$0xff]
      %v1297 = vld [vmem:[%s11 + $0x18] sm:$0xff]
      %v1298 = vld [vmem:[%s11 + $0x20] sm:$0xff]
      %v1299 = vld [vmem:[%s11 + $0x28] sm:$0xff]
      %v1300 = vld [vmem:[%s11 + $0x30] sm:$0xff]
      %v1301 = vld [vmem:[%s11 + $0x38] sm:$0xff]
      %v1302 = vld [vmem:[%s11 + $0x40] sm:$0xff]
      %v1303 = vld [vmem:[%s11 + $0x48] sm:$0xff]
      %v1304 = vld [vmem:[%s11 + $0x50] sm:$0xff]
      %v1305 = vld [vmem:[%s11 + $0x58] sm:$0xff]
      %v1306 = vld [vmem:[%s11 + $0x60] sm:$0xff]
      %v1307 = vld [vmem:[%s11 + $0x68] sm:$0xff]
      %v1308 = vld [vmem:[%s11 + $0x70] sm:$0xff]
      %v1309 = vld [vmem:[%s11 + $0x78] sm:$0xff]
      %v1310 = vld [vmem:[%s11 + $0x80] sm:$0xff]
      %v1311 = vld [vmem:[%s11 + $0x88] sm:$0xff]
      %v1312 = vld [vmem:[%s11 + $0x90] sm:$0xff]
      %v1313 = vld [vmem:[%s11 + $0x98] sm:$0xff]
      %v1314 = vld [vmem:[%s11 + $0xa0] sm:$0xff]
      %v1315 = vld [vmem:[%s11 + $0xa8] sm:$0xff]
      %v1316 = vld [vmem:[%s11 + $0xb0] sm:$0xff]
      %v1317 = vld [vmem:[%s11 + $0xb8] sm:$0xff]
      %v1318 = vld [vmem:[%s11 + $0xc0] sm:$0xff]
      %v1319 = vld [vmem:[%s11 + $0xc8] sm:$0xff]
      %v1320 = vld [vmem:[%s11 + $0xd0] sm:$0xff]
      %v1321 = vld [vmem:[%s11 + $0xd8] sm:$0xff]
      %v1322 = vld [vmem:[%s11 + $0xe0] sm:$0xff]
      %v1323 = vld [vmem:[%s11 + $0xe8] sm:$0xff]
      %v1324 = vld [vmem:[%s11 + $0xf0] sm:$0xff]
      %v1325 = vld [vmem:[%s11 + $0xf8] sm:$0xff]
      %v1326 = vld [vmem:[%s11 + $0x100] sm:$0xff]
      %v1327 = vld [vmem:[%s11 + $0x108] sm:$0xff]
      %v1328 = vld [vmem:[%s11 + $0x110] sm:$0xff]
      %v1329 = vld [vmem:[%s11 + $0x118] sm:$0xff]
      %v1330 = vld [vmem:[%s11 + $0x120] sm:$0xff]
      %v1331 = vld [vmem:[%s11 + $0x128] sm:$0xff]
      %v1332 = vld [vmem:[%s11 + $0x130] sm:$0xff]
      %v1333 = vld [vmem:[%s11 + $0x138] sm:$0xff]
      %v1334 = vld [vmem:[%s11 + $0x140] sm:$0xff]
      %v1335 = vld [vmem:[%s11 + $0x148] sm:$0xff]
      %v1336 = vld [vmem:[%s11 + $0x150] sm:$0xff]
      %v1337 = vld [vmem:[%s11 + $0x158] sm:$0xff]
      %v1338 = vld [vmem:[%s11 + $0x160] sm:$0xff]
      %v1339 = vld [vmem:[%s11 + $0x168] sm:$0xff]
      %v1340 = vld [vmem:[%s11 + $0x170] sm:$0xff]
      %v1341 = vld [vmem:[%s11 + $0x178] sm:$0xff]
      %v1342 = vld [vmem:[%s11 + $0x180] sm:$0xff]
      %v1343 = vld [vmem:[%s11 + $0x188] sm:$0xff]
      %v1344 = vld [vmem:[%s11 + $0x190] sm:$0xff]
      %v1345 = vld [vmem:[%s11 + $0x198] sm:$0xff]
      %v1346 = vld [vmem:[%s11 + $0x1a0] sm:$0xff]
      %v1347 = vld [vmem:[%s11 + $0x1a8] sm:$0xff]
      %v1348 = vld [vmem:[%s11 + $0x1b0] sm:$0xff]
      %v1349 = vld [vmem:[%s11 + $0x1b8] sm:$0xff]
      %v1350 = vld [vmem:[%s11 + $0x1c0] sm:$0xff]
      %v1351 = vld [vmem:[%s11 + $0x1c8] sm:$0xff]
      %v1352 = vld [vmem:[%s11 + $0x1d0] sm:$0xff]
      %v1353 = vld [vmem:[%s11 + $0x1d8] sm:$0xff]
      %v1354 = vld [vmem:[%s11 + $0x1e0] sm:$0xff]
      %v1355 = vld [vmem:[%s11 + $0x1e8] sm:$0xff]
      %v1356 = vld [vmem:[%s11 + $0x1f0] sm:$0xff]
      %v1357 = vld [vmem:[%s11 + $0x1f8] sm:$0xff]
      %v1358 = vld [vmem:[%s12] sm:$0xff]
      %v1359 = vld [vmem:[%s12 + $0x8] sm:$0xff]
      %v1362 = vperm.slane %v1358, 0
      %v1363 = vperm.slane %v1358, 1
      %v1364 = vperm.slane %v1358, 2
      %v1365 = vperm.slane %v1358, 3
      %v1366 = vperm.slane %v1358, 4
      %v1367 = vperm.slane %v1358, 5
      %v1368 = vperm.slane %v1358, 6
      %v1369 = vperm.slane %v1358, 7
      %v1370 = vperm.slane %v1359, 0
      %v1371 = vperm.slane %v1359, 1
      %v1372 = vperm.slane %v1359, 2
      %v1373 = vperm.slane %v1359, 3
      %v1374 = vperm.slane %v1359, 4
      %v1375 = vperm.slane %v1359, 5
      %v1376 = vperm.slane %v1359, 6
      %v1377 = vperm.slane %v1359, 7
      %v1395 = vsel %vm553, %v1293, 0
      %1397 = vmatpush.msra.mxu0 0.0
      %1398 = vmatpush.msra.mxu0 0.0
      %1399 = vmatpush.msra.mxu0 0.0
      %1400 = vmatpush.msra.mxu0 0.0
      %1401 = vmatpush.msra.mxu0 0.0
      %1402 = vmatpush.msra.mxu0 0.0
      %1403 = vmatpush.msra.mxu0 0.0
      %1404 = vmatpush.msra.mxu0 0.0
      %1405 = vmatpush.msra.mxu0 0.0
      %1406 = vmatpush.msra.mxu0 0.0
      %1407 = vmatpush.msra.mxu0 0.0
      %1408 = vmatpush.msra.mxu0 0.0
      %1409 = vmatpush.msra.mxu0 %v1342
      %1410 = vmatpush.msra.mxu0 %v1326
      %1411 = vmatpush.msra.mxu0 %v1310
      %1412 = vmatpush.msra.mxu0 %v1294
      %1413 = vmatmul.f32.gmra.mxu0 %v1395
      %v1414 = vpop.f32.mrf.mxu0
      %v1415 = vadd.f32 %v1362, %v1414
      %1416 = vdwg.mxu0
      %1417 = vmatpush.msra.mxu0 0.0
      %1418 = vmatpush.msra.mxu0 0.0
      %1419 = vmatpush.msra.mxu0 0.0
      %1420 = vmatpush.msra.mxu0 0.0
      %1421 = vmatpush.msra.mxu0 0.0
      %1422 = vmatpush.msra.mxu0 0.0
      %1423 = vmatpush.msra.mxu0 0.0
      %1424 = vmatpush.msra.mxu0 0.0
      %1425 = vmatpush.msra.mxu0 0.0
      %1426 = vmatpush.msra.mxu0 0.0
      %1427 = vmatpush.msra.mxu0 0.0
      %1428 = vmatpush.msra.mxu0 0.0
      %1429 = vmatpush.msra.mxu0 %v1343
      %1430 = vmatpush.msra.mxu0 %v1327
      %1431 = vmatpush.msra.mxu0 %v1311
      %1432 = vmatpush.msra.mxu0 %v1295
      %1433 = vmatmul.f32.gmra.mxu0 %v1395
      %v1434 = vpop.f32.mrf.mxu0
      %v1435 = vadd.f32 %v1363, %v1434
      %1436 = vdwg.mxu0
      %1437 = vmatpush.msra.mxu0 0.0
      %1438 = vmatpush.msra.mxu0 0.0
      %1439 = vmatpush.msra.mxu0 0.0
      %1440 = vmatpush.msra.mxu0 0.0
      %1441 = vmatpush.msra.mxu0 0.0
      %1442 = vmatpush.msra.mxu0 0.0
      %1443 = vmatpush.msra.mxu0 0.0
      %1444 = vmatpush.msra.mxu0 0.0
      %1445 = vmatpush.msra.mxu0 0.0
      %1446 = vmatpush.msra.mxu0 0.0
      %1447 = vmatpush.msra.mxu0 0.0
      %1448 = vmatpush.msra.mxu0 0.0
      %1449 = vmatpush.msra.mxu0 %v1344
      %1450 = vmatpush.msra.mxu0 %v1328
      %1451 = vmatpush.msra.mxu0 %v1312
      %1452 = vmatpush.msra.mxu0 %v1296
      %1453 = vmatmul.f32.gmra.mxu0 %v1395
      %v1454 = vpop.f32.mrf.mxu0
      %v1455 = vadd.f32 %v1364, %v1454
      %1456 = vdwg.mxu0
      %1457 = vmatpush.msra.mxu0 0.0
      %1458 = vmatpush.msra.mxu0 0.0
      %1459 = vmatpush.msra.mxu0 0.0
      %1460 = vmatpush.msra.mxu0 0.0
      %1461 = vmatpush.msra.mxu0 0.0
      %1462 = vmatpush.msra.mxu0 0.0
      %1463 = vmatpush.msra.mxu0 0.0
      %1464 = vmatpush.msra.mxu0 0.0
      %1465 = vmatpush.msra.mxu0 0.0
      %1466 = vmatpush.msra.mxu0 0.0
      %1467 = vmatpush.msra.mxu0 0.0
      %1468 = vmatpush.msra.mxu0 0.0
      %1469 = vmatpush.msra.mxu0 %v1345
      %1470 = vmatpush.msra.mxu0 %v1329
      %1471 = vmatpush.msra.mxu0 %v1313
      %1472 = vmatpush.msra.mxu0 %v1297
      %1473 = vmatmul.f32.gmra.mxu0 %v1395
      %v1474 = vpop.f32.mrf.mxu0
      %v1475 = vadd.f32 %v1365, %v1474
      %1476 = vdwg.mxu0
      %1477 = vmatpush.msra.mxu0 0.0
      %1478 = vmatpush.msra.mxu0 0.0
      %1479 = vmatpush.msra.mxu0 0.0
      %1480 = vmatpush.msra.mxu0 0.0
      %1481 = vmatpush.msra.mxu0 0.0
      %1482 = vmatpush.msra.mxu0 0.0
      %1483 = vmatpush.msra.mxu0 0.0
      %1484 = vmatpush.msra.mxu0 0.0
      %1485 = vmatpush.msra.mxu0 0.0
      %1486 = vmatpush.msra.mxu0 0.0
      %1487 = vmatpush.msra.mxu0 0.0
      %1488 = vmatpush.msra.mxu0 0.0
      %1489 = vmatpush.msra.mxu0 %v1346
      %1490 = vmatpush.msra.mxu0 %v1330
      %1491 = vmatpush.msra.mxu0 %v1314
      %1492 = vmatpush.msra.mxu0 %v1298
      %1493 = vmatmul.f32.gmra.mxu0 %v1395
      %v1494 = vpop.f32.mrf.mxu0
      %v1495 = vadd.f32 %v1366, %v1494
      %1496 = vdwg.mxu0
      %1497 = vmatpush.msra.mxu0 0.0
      %1498 = vmatpush.msra.mxu0 0.0
      %1499 = vmatpush.msra.mxu0 0.0
      %1500 = vmatpush.msra.mxu0 0.0
      %1501 = vmatpush.msra.mxu0 0.0
      %1502 = vmatpush.msra.mxu0 0.0
      %1503 = vmatpush.msra.mxu0 0.0
      %1504 = vmatpush.msra.mxu0 0.0
      %1505 = vmatpush.msra.mxu0 0.0
      %1506 = vmatpush.msra.mxu0 0.0
      %1507 = vmatpush.msra.mxu0 0.0
      %1508 = vmatpush.msra.mxu0 0.0
      %1509 = vmatpush.msra.mxu0 %v1347
      %1510 = vmatpush.msra.mxu0 %v1331
      %1511 = vmatpush.msra.mxu0 %v1315
      %1512 = vmatpush.msra.mxu0 %v1299
      %1513 = vmatmul.f32.gmra.mxu0 %v1395
      %v1514 = vpop.f32.mrf.mxu0
      %v1515 = vadd.f32 %v1367, %v1514
      %1516 = vdwg.mxu0
      %1517 = vmatpush.msra.mxu0 0.0
      %1518 = vmatpush.msra.mxu0 0.0
      %1519 = vmatpush.msra.mxu0 0.0
      %1520 = vmatpush.msra.mxu0 0.0
      %1521 = vmatpush.msra.mxu0 0.0
      %1522 = vmatpush.msra.mxu0 0.0
      %1523 = vmatpush.msra.mxu0 0.0
      %1524 = vmatpush.msra.mxu0 0.0
      %1525 = vmatpush.msra.mxu0 0.0
      %1526 = vmatpush.msra.mxu0 0.0
      %1527 = vmatpush.msra.mxu0 0.0
      %1528 = vmatpush.msra.mxu0 0.0
      %1529 = vmatpush.msra.mxu0 %v1348
      %1530 = vmatpush.msra.mxu0 %v1332
      %1531 = vmatpush.msra.mxu0 %v1316
      %1532 = vmatpush.msra.mxu0 %v1300
      %1533 = vmatmul.f32.gmra.mxu0 %v1395
      %v1534 = vpop.f32.mrf.mxu0
      %v1535 = vadd.f32 %v1368, %v1534
      %1536 = vdwg.mxu0
      %1537 = vmatpush.msra.mxu0 0.0
      %1538 = vmatpush.msra.mxu0 0.0
      %1539 = vmatpush.msra.mxu0 0.0
      %1540 = vmatpush.msra.mxu0 0.0
      %1541 = vmatpush.msra.mxu0 0.0
      %1542 = vmatpush.msra.mxu0 0.0
      %1543 = vmatpush.msra.mxu0 0.0
      %1544 = vmatpush.msra.mxu0 0.0
      %1545 = vmatpush.msra.mxu0 0.0
      %1546 = vmatpush.msra.mxu0 0.0
      %1547 = vmatpush.msra.mxu0 0.0
      %1548 = vmatpush.msra.mxu0 0.0
      %1549 = vmatpush.msra.mxu0 %v1349
      %1550 = vmatpush.msra.mxu0 %v1333
      %1551 = vmatpush.msra.mxu0 %v1317
      %1552 = vmatpush.msra.mxu0 %v1301
      %1553 = vmatmul.f32.gmra.mxu0 %v1395
      %v1554 = vpop.f32.mrf.mxu0
      %v1555 = vadd.f32 %v1369, %v1554
      %1556 = vdwg.mxu0
      %1557 = vmatpush.msra.mxu0 0.0
      %1558 = vmatpush.msra.mxu0 0.0
      %1559 = vmatpush.msra.mxu0 0.0
      %1560 = vmatpush.msra.mxu0 0.0
      %1561 = vmatpush.msra.mxu0 0.0
      %1562 = vmatpush.msra.mxu0 0.0
      %1563 = vmatpush.msra.mxu0 0.0
      %1564 = vmatpush.msra.mxu0 0.0
      %1565 = vmatpush.msra.mxu0 0.0
      %1566 = vmatpush.msra.mxu0 0.0
      %1567 = vmatpush.msra.mxu0 0.0
      %1568 = vmatpush.msra.mxu0 0.0
      %1569 = vmatpush.msra.mxu0 %v1350
      %1570 = vmatpush.msra.mxu0 %v1334
      %1571 = vmatpush.msra.mxu0 %v1318
      %1572 = vmatpush.msra.mxu0 %v1302
      %1573 = vmatmul.f32.gmra.mxu0 %v1395
      %v1574 = vpop.f32.mrf.mxu0
      %v1575 = vadd.f32 %v1370, %v1574
      %1576 = vdwg.mxu0
      %1577 = vmatpush.msra.mxu0 0.0
      %1578 = vmatpush.msra.mxu0 0.0
      %1579 = vmatpush.msra.mxu0 0.0
      %1580 = vmatpush.msra.mxu0 0.0
      %1581 = vmatpush.msra.mxu0 0.0
      %1582 = vmatpush.msra.mxu0 0.0
      %1583 = vmatpush.msra.mxu0 0.0
      %1584 = vmatpush.msra.mxu0 0.0
      %1585 = vmatpush.msra.mxu0 0.0
      %1586 = vmatpush.msra.mxu0 0.0
      %1587 = vmatpush.msra.mxu0 0.0
      %1588 = vmatpush.msra.mxu0 0.0
      %1589 = vmatpush.msra.mxu0 %v1351
      %1590 = vmatpush.msra.mxu0 %v1335
      %1591 = vmatpush.msra.mxu0 %v1319
      %1592 = vmatpush.msra.mxu0 %v1303
      %1593 = vmatmul.f32.gmra.mxu0 %v1395
      %v1594 = vpop.f32.mrf.mxu0
      %v1595 = vadd.f32 %v1371, %v1594
      %1596 = vdwg.mxu0
      %1597 = vmatpush.msra.mxu0 0.0
      %1598 = vmatpush.msra.mxu0 0.0
      %1599 = vmatpush.msra.mxu0 0.0
      %1600 = vmatpush.msra.mxu0 0.0
      %1601 = vmatpush.msra.mxu0 0.0
      %1602 = vmatpush.msra.mxu0 0.0
      %1603 = vmatpush.msra.mxu0 0.0
      %1604 = vmatpush.msra.mxu0 0.0
      %1605 = vmatpush.msra.mxu0 0.0
      %1606 = vmatpush.msra.mxu0 0.0
      %1607 = vmatpush.msra.mxu0 0.0
      %1608 = vmatpush.msra.mxu0 0.0
      %1609 = vmatpush.msra.mxu0 %v1352
      %1610 = vmatpush.msra.mxu0 %v1336
      %1611 = vmatpush.msra.mxu0 %v1320
      %1612 = vmatpush.msra.mxu0 %v1304
      %1613 = vmatmul.f32.gmra.mxu0 %v1395
      %v1614 = vpop.f32.mrf.mxu0
      %v1615 = vadd.f32 %v1372, %v1614
      %1616 = vdwg.mxu0
      %1617 = vmatpush.msra.mxu0 0.0
      %1618 = vmatpush.msra.mxu0 0.0
      %1619 = vmatpush.msra.mxu0 0.0
      %1620 = vmatpush.msra.mxu0 0.0
      %1621 = vmatpush.msra.mxu0 0.0
      %1622 = vmatpush.msra.mxu0 0.0
      %1623 = vmatpush.msra.mxu0 0.0
      %1624 = vmatpush.msra.mxu0 0.0
      %1625 = vmatpush.msra.mxu0 0.0
      %1626 = vmatpush.msra.mxu0 0.0
      %1627 = vmatpush.msra.mxu0 0.0
      %1628 = vmatpush.msra.mxu0 0.0
      %1629 = vmatpush.msra.mxu0 %v1353
      %1630 = vmatpush.msra.mxu0 %v1337
      %1631 = vmatpush.msra.mxu0 %v1321
      %1632 = vmatpush.msra.mxu0 %v1305
      %1633 = vmatmul.f32.gmra.mxu0 %v1395
      %v1634 = vpop.f32.mrf.mxu0
      %v1635 = vadd.f32 %v1373, %v1634
      %1636 = vdwg.mxu0
      %1637 = vmatpush.msra.mxu0 0.0
      %1638 = vmatpush.msra.mxu0 0.0
      %1639 = vmatpush.msra.mxu0 0.0
      %1640 = vmatpush.msra.mxu0 0.0
      %1641 = vmatpush.msra.mxu0 0.0
      %1642 = vmatpush.msra.mxu0 0.0
      %1643 = vmatpush.msra.mxu0 0.0
      %1644 = vmatpush.msra.mxu0 0.0
      %1645 = vmatpush.msra.mxu0 0.0
      %1646 = vmatpush.msra.mxu0 0.0
      %1647 = vmatpush.msra.mxu0 0.0
      %1648 = vmatpush.msra.mxu0 0.0
      %1649 = vmatpush.msra.mxu0 %v1354
      %1650 = vmatpush.msra.mxu0 %v1338
      %1651 = vmatpush.msra.mxu0 %v1322
      %1652 = vmatpush.msra.mxu0 %v1306
      %1653 = vmatmul.f32.gmra.mxu0 %v1395
      %v1654 = vpop.f32.mrf.mxu0
      %v1655 = vadd.f32 %v1374, %v1654
      %1656 = vdwg.mxu0
      %1657 = vmatpush.msra.mxu0 0.0
      %1658 = vmatpush.msra.mxu0 0.0
      %1659 = vmatpush.msra.mxu0 0.0
      %1660 = vmatpush.msra.mxu0 0.0
      %1661 = vmatpush.msra.mxu0 0.0
      %1662 = vmatpush.msra.mxu0 0.0
      %1663 = vmatpush.msra.mxu0 0.0
      %1664 = vmatpush.msra.mxu0 0.0
      %1665 = vmatpush.msra.mxu0 0.0
      %1666 = vmatpush.msra.mxu0 0.0
      %1667 = vmatpush.msra.mxu0 0.0
      %1668 = vmatpush.msra.mxu0 0.0
      %1669 = vmatpush.msra.mxu0 %v1355
      %1670 = vmatpush.msra.mxu0 %v1339
      %1671 = vmatpush.msra.mxu0 %v1323
      %1672 = vmatpush.msra.mxu0 %v1307
      %1673 = vmatmul.f32.gmra.mxu0 %v1395
      %v1674 = vpop.f32.mrf.mxu0
      %v1675 = vadd.f32 %v1375, %v1674
      %1676 = vdwg.mxu0
      %1677 = vmatpush.msra.mxu0 0.0
      %1678 = vmatpush.msra.mxu0 0.0
      %1679 = vmatpush.msra.mxu0 0.0
      %1680 = vmatpush.msra.mxu0 0.0
      %1681 = vmatpush.msra.mxu0 0.0
      %1682 = vmatpush.msra.mxu0 0.0
      %1683 = vmatpush.msra.mxu0 0.0
      %1684 = vmatpush.msra.mxu0 0.0
      %1685 = vmatpush.msra.mxu0 0.0
      %1686 = vmatpush.msra.mxu0 0.0
      %1687 = vmatpush.msra.mxu0 0.0
      %1688 = vmatpush.msra.mxu0 0.0
      %1689 = vmatpush.msra.mxu0 %v1356
      %1690 = vmatpush.msra.mxu0 %v1340
      %1691 = vmatpush.msra.mxu0 %v1324
      %1692 = vmatpush.msra.mxu0 %v1308
      %1693 = vmatmul.f32.gmra.mxu0 %v1395
      %v1694 = vpop.f32.mrf.mxu0
      %v1695 = vadd.f32 %v1376, %v1694
      %1696 = vdwg.mxu0
      %1697 = vmatpush.msra.mxu0 0.0
      %1698 = vmatpush.msra.mxu0 0.0
      %1699 = vmatpush.msra.mxu0 0.0
      %1700 = vmatpush.msra.mxu0 0.0
      %1701 = vmatpush.msra.mxu0 0.0
      %1702 = vmatpush.msra.mxu0 0.0
      %1703 = vmatpush.msra.mxu0 0.0
      %1704 = vmatpush.msra.mxu0 0.0
      %1705 = vmatpush.msra.mxu0 0.0
      %1706 = vmatpush.msra.mxu0 0.0
      %1707 = vmatpush.msra.mxu0 0.0
      %1708 = vmatpush.msra.mxu0 0.0
      %1709 = vmatpush.msra.mxu0 %v1357
      %1710 = vmatpush.msra.mxu0 %v1341
      %1711 = vmatpush.msra.mxu0 %v1325
      %1712 = vmatpush.msra.mxu0 %v1309
      %1713 = vmatmul.f32.gmra.mxu0 %v1395
      %v1714 = vpop.f32.mrf.mxu0
      %v1715 = vadd.f32 %v1377, %v1714
      %1716 = vdwg.mxu0
      %v1717 = vmax.f32 %v1415, 0.0
      %v1718 = vmax.f32 %v1435, 0.0
      %v1719 = vmax.f32 %v1455, 0.0
      %v1720 = vmax.f32 %v1475, 0.0
      %v1721 = vmax.f32 %v1495, 0.0
      %v1722 = vmax.f32 %v1515, 0.0
      %v1723 = vmax.f32 %v1535, 0.0
      %v1724 = vmax.f32 %v1555, 0.0
      %v1725 = vmax.f32 %v1575, 0.0
      %v1726 = vmax.f32 %v1595, 0.0
      %v1727 = vmax.f32 %v1615, 0.0
      %v1728 = vmax.f32 %v1635, 0.0
      %v1729 = vmax.f32 %v1655, 0.0
      %v1730 = vmax.f32 %v1675, 0.0
      %v1731 = vmax.f32 %v1695, 0.0
      %v1732 = vmax.f32 %v1715, 0.0
      %v1733 = vld [vmem:[%s13] sm:$0xff]
      %v1734 = vld [vmem:[%s13 + $0x8] sm:$0xff]
      %v1735 = vld [vmem:[%s13 + $0x10] sm:$0xff]
      %v1736 = vld [vmem:[%s13 + $0x18] sm:$0xff]
      %v1737 = vld [vmem:[%s13 + $0x20] sm:$0xff]
      %v1738 = vld [vmem:[%s13 + $0x28] sm:$0xff]
      %v1739 = vld [vmem:[%s13 + $0x30] sm:$0xff]
      %v1740 = vld [vmem:[%s13 + $0x38] sm:$0xff]
      %v1741 = vld [vmem:[%s13 + $0x40] sm:$0xff]
      %v1742 = vld [vmem:[%s13 + $0x48] sm:$0xff]
      %v1743 = vld [vmem:[%s13 + $0x50] sm:$0xff]
      %v1744 = vld [vmem:[%s13 + $0x58] sm:$0xff]
      %v1745 = vld [vmem:[%s13 + $0x60] sm:$0xff]
      %v1746 = vld [vmem:[%s13 + $0x68] sm:$0xff]
      %v1747 = vld [vmem:[%s13 + $0x70] sm:$0xff]
      %v1748 = vld [vmem:[%s13 + $0x78] sm:$0xff]
      %v1749 = vld [vmem:[%s13 + $0x80] sm:$0xff]
      %v1750 = vld [vmem:[%s13 + $0x88] sm:$0xff]
      %v1751 = vld [vmem:[%s13 + $0x90] sm:$0xff]
      %v1752 = vld [vmem:[%s13 + $0x98] sm:$0xff]
      %v1753 = vld [vmem:[%s13 + $0xa0] sm:$0xff]
      %v1754 = vld [vmem:[%s13 + $0xa8] sm:$0xff]
      %v1755 = vld [vmem:[%s13 + $0xb0] sm:$0xff]
      %v1756 = vld [vmem:[%s13 + $0xb8] sm:$0xff]
      %v1757 = vld [vmem:[%s13 + $0xc0] sm:$0xff]
      %v1758 = vld [vmem:[%s13 + $0xc8] sm:$0xff]
      %v1759 = vld [vmem:[%s13 + $0xd0] sm:$0xff]
      %v1760 = vld [vmem:[%s13 + $0xd8] sm:$0xff]
      %v1761 = vld [vmem:[%s13 + $0xe0] sm:$0xff]
      %v1762 = vld [vmem:[%s13 + $0xe8] sm:$0xff]
      %v1763 = vld [vmem:[%s13 + $0xf0] sm:$0xff]
      %v1764 = vld [vmem:[%s13 + $0xf8] sm:$0xff]
      %v1765 = vld [vmem:[%s13 + $0x100] sm:$0xff]
      %v1766 = vld [vmem:[%s13 + $0x108] sm:$0xff]
      %v1767 = vld [vmem:[%s13 + $0x110] sm:$0xff]
      %v1768 = vld [vmem:[%s13 + $0x118] sm:$0xff]
      %v1769 = vld [vmem:[%s13 + $0x120] sm:$0xff]
      %v1770 = vld [vmem:[%s13 + $0x128] sm:$0xff]
      %v1771 = vld [vmem:[%s13 + $0x130] sm:$0xff]
      %v1772 = vld [vmem:[%s13 + $0x138] sm:$0xff]
      %v1773 = vld [vmem:[%s13 + $0x140] sm:$0xff]
      %v1774 = vld [vmem:[%s13 + $0x148] sm:$0xff]
      %v1775 = vld [vmem:[%s13 + $0x150] sm:$0xff]
      %v1776 = vld [vmem:[%s13 + $0x158] sm:$0xff]
      %v1777 = vld [vmem:[%s13 + $0x160] sm:$0xff]
      %v1778 = vld [vmem:[%s13 + $0x168] sm:$0xff]
      %v1779 = vld [vmem:[%s13 + $0x170] sm:$0xff]
      %v1780 = vld [vmem:[%s13 + $0x178] sm:$0xff]
      %v1781 = vld [vmem:[%s13 + $0x180] sm:$0xff]
      %v1782 = vld [vmem:[%s13 + $0x188] sm:$0xff]
      %v1783 = vld [vmem:[%s13 + $0x190] sm:$0xff]
      %v1784 = vld [vmem:[%s13 + $0x198] sm:$0xff]
      %v1785 = vld [vmem:[%s13 + $0x1a0] sm:$0xff]
      %v1786 = vld [vmem:[%s13 + $0x1a8] sm:$0xff]
      %v1787 = vld [vmem:[%s13 + $0x1b0] sm:$0xff]
      %v1788 = vld [vmem:[%s13 + $0x1b8] sm:$0xff]
      %v1789 = vld [vmem:[%s13 + $0x1c0] sm:$0xff]
      %v1790 = vld [vmem:[%s13 + $0x1c8] sm:$0xff]
      %v1791 = vld [vmem:[%s13 + $0x1d0] sm:$0xff]
      %v1792 = vld [vmem:[%s13 + $0x1d8] sm:$0xff]
      %v1793 = vld [vmem:[%s13 + $0x1e0] sm:$0xff]
      %v1794 = vld [vmem:[%s13 + $0x1e8] sm:$0xff]
      %v1795 = vld [vmem:[%s13 + $0x1f0] sm:$0xff]
      %v1796 = vld [vmem:[%s13 + $0x1f8] sm:$0xff]
      %v1797 = vld [vmem:[%s13 + $0x200] sm:$0xff]
      %v1798 = vld [vmem:[%s13 + $0x208] sm:$0xff]
      %v1799 = vld [vmem:[%s13 + $0x210] sm:$0xff]
      %v1800 = vld [vmem:[%s13 + $0x218] sm:$0xff]
      %v1801 = vld [vmem:[%s13 + $0x220] sm:$0xff]
      %v1802 = vld [vmem:[%s13 + $0x228] sm:$0xff]
      %v1803 = vld [vmem:[%s13 + $0x230] sm:$0xff]
      %v1804 = vld [vmem:[%s13 + $0x238] sm:$0xff]
      %v1805 = vld [vmem:[%s13 + $0x240] sm:$0xff]
      %v1806 = vld [vmem:[%s13 + $0x248] sm:$0xff]
      %v1807 = vld [vmem:[%s13 + $0x250] sm:$0xff]
      %v1808 = vld [vmem:[%s13 + $0x258] sm:$0xff]
      %v1809 = vld [vmem:[%s13 + $0x260] sm:$0xff]
      %v1810 = vld [vmem:[%s13 + $0x268] sm:$0xff]
      %v1811 = vld [vmem:[%s13 + $0x270] sm:$0xff]
      %v1812 = vld [vmem:[%s13 + $0x278] sm:$0xff]
      %v1813 = vld [vmem:[%s13 + $0x280] sm:$0xff]
      %v1814 = vld [vmem:[%s13 + $0x288] sm:$0xff]
      %v1815 = vld [vmem:[%s13 + $0x290] sm:$0xff]
      %v1816 = vld [vmem:[%s13 + $0x298] sm:$0xff]
      %v1817 = vld [vmem:[%s13 + $0x2a0] sm:$0xff]
      %v1818 = vld [vmem:[%s13 + $0x2a8] sm:$0xff]
      %v1819 = vld [vmem:[%s13 + $0x2b0] sm:$0xff]
      %v1820 = vld [vmem:[%s13 + $0x2b8] sm:$0xff]
      %v1821 = vld [vmem:[%s13 + $0x2c0] sm:$0xff]
      %v1822 = vld [vmem:[%s13 + $0x2c8] sm:$0xff]
      %v1823 = vld [vmem:[%s13 + $0x2d0] sm:$0xff]
      %v1824 = vld [vmem:[%s13 + $0x2d8] sm:$0xff]
      %v1825 = vld [vmem:[%s13 + $0x2e0] sm:$0xff]
      %v1826 = vld [vmem:[%s13 + $0x2e8] sm:$0xff]
      %v1827 = vld [vmem:[%s13 + $0x2f0] sm:$0xff]
      %v1828 = vld [vmem:[%s13 + $0x2f8] sm:$0xff]
      %v1829 = vld [vmem:[%s13 + $0x300] sm:$0xff]
      %v1830 = vld [vmem:[%s13 + $0x308] sm:$0xff]
      %v1831 = vld [vmem:[%s13 + $0x310] sm:$0xff]
      %v1832 = vld [vmem:[%s13 + $0x318] sm:$0xff]
      %v1833 = vld [vmem:[%s13 + $0x320] sm:$0xff]
      %v1834 = vld [vmem:[%s13 + $0x328] sm:$0xff]
      %v1835 = vld [vmem:[%s13 + $0x330] sm:$0xff]
      %v1836 = vld [vmem:[%s13 + $0x338] sm:$0xff]
      %v1837 = vld [vmem:[%s13 + $0x340] sm:$0xff]
      %v1838 = vld [vmem:[%s13 + $0x348] sm:$0xff]
      %v1839 = vld [vmem:[%s13 + $0x350] sm:$0xff]
      %v1840 = vld [vmem:[%s13 + $0x358] sm:$0xff]
      %v1841 = vld [vmem:[%s13 + $0x360] sm:$0xff]
      %v1842 = vld [vmem:[%s13 + $0x368] sm:$0xff]
      %v1843 = vld [vmem:[%s13 + $0x370] sm:$0xff]
      %v1844 = vld [vmem:[%s13 + $0x378] sm:$0xff]
      %v1845 = vld [vmem:[%s13 + $0x380] sm:$0xff]
      %v1846 = vld [vmem:[%s13 + $0x388] sm:$0xff]
      %v1847 = vld [vmem:[%s13 + $0x390] sm:$0xff]
      %v1848 = vld [vmem:[%s13 + $0x398] sm:$0xff]
      %v1849 = vld [vmem:[%s13 + $0x3a0] sm:$0xff]
      %v1850 = vld [vmem:[%s13 + $0x3a8] sm:$0xff]
      %v1851 = vld [vmem:[%s13 + $0x3b0] sm:$0xff]
      %v1852 = vld [vmem:[%s13 + $0x3b8] sm:$0xff]
      %v1853 = vld [vmem:[%s13 + $0x3c0] sm:$0xff]
      %v1854 = vld [vmem:[%s13 + $0x3c8] sm:$0xff]
      %v1855 = vld [vmem:[%s13 + $0x3d0] sm:$0xff]
      %v1856 = vld [vmem:[%s13 + $0x3d8] sm:$0xff]
      %v1857 = vld [vmem:[%s13 + $0x3e0] sm:$0xff]
      %v1858 = vld [vmem:[%s13 + $0x3e8] sm:$0xff]
      %v1859 = vld [vmem:[%s13 + $0x3f0] sm:$0xff]
      %v1860 = vld [vmem:[%s13 + $0x3f8] sm:$0xff]
      %v1861 = vld [vmem:[%s13 + $0x400] sm:$0xff]
      %v1862 = vld [vmem:[%s13 + $0x408] sm:$0xff]
      %v1863 = vld [vmem:[%s13 + $0x410] sm:$0xff]
      %v1864 = vld [vmem:[%s13 + $0x418] sm:$0xff]
      %v1865 = vld [vmem:[%s13 + $0x420] sm:$0xff]
      %v1866 = vld [vmem:[%s13 + $0x428] sm:$0xff]
      %v1867 = vld [vmem:[%s13 + $0x430] sm:$0xff]
      %v1868 = vld [vmem:[%s13 + $0x438] sm:$0xff]
      %v1869 = vld [vmem:[%s13 + $0x440] sm:$0xff]
      %v1870 = vld [vmem:[%s13 + $0x448] sm:$0xff]
      %v1871 = vld [vmem:[%s13 + $0x450] sm:$0xff]
      %v1872 = vld [vmem:[%s13 + $0x458] sm:$0xff]
      %v1873 = vld [vmem:[%s13 + $0x460] sm:$0xff]
      %v1874 = vld [vmem:[%s13 + $0x468] sm:$0xff]
      %v1875 = vld [vmem:[%s13 + $0x470] sm:$0xff]
      %v1876 = vld [vmem:[%s13 + $0x478] sm:$0xff]
      %v1877 = vld [vmem:[%s13 + $0x480] sm:$0xff]
      %v1878 = vld [vmem:[%s13 + $0x488] sm:$0xff]
      %v1879 = vld [vmem:[%s13 + $0x490] sm:$0xff]
      %v1880 = vld [vmem:[%s13 + $0x498] sm:$0xff]
      %v1881 = vld [vmem:[%s13 + $0x4a0] sm:$0xff]
      %v1882 = vld [vmem:[%s13 + $0x4a8] sm:$0xff]
      %v1883 = vld [vmem:[%s13 + $0x4b0] sm:$0xff]
      %v1884 = vld [vmem:[%s13 + $0x4b8] sm:$0xff]
      %v1885 = vld [vmem:[%s13 + $0x4c0] sm:$0xff]
      %v1886 = vld [vmem:[%s13 + $0x4c8] sm:$0xff]
      %v1887 = vld [vmem:[%s13 + $0x4d0] sm:$0xff]
      %v1888 = vld [vmem:[%s13 + $0x4d8] sm:$0xff]
      %v1889 = vld [vmem:[%s13 + $0x4e0] sm:$0xff]
      %v1890 = vld [vmem:[%s13 + $0x4e8] sm:$0xff]
      %v1891 = vld [vmem:[%s13 + $0x4f0] sm:$0xff]
      %v1892 = vld [vmem:[%s13 + $0x4f8] sm:$0xff]
      %v1893 = vld [vmem:[%s13 + $0x500] sm:$0xff]
      %v1894 = vld [vmem:[%s13 + $0x508] sm:$0xff]
      %v1895 = vld [vmem:[%s13 + $0x510] sm:$0xff]
      %v1896 = vld [vmem:[%s13 + $0x518] sm:$0xff]
      %v1897 = vld [vmem:[%s13 + $0x520] sm:$0xff]
      %v1898 = vld [vmem:[%s13 + $0x528] sm:$0xff]
      %v1899 = vld [vmem:[%s13 + $0x530] sm:$0xff]
      %v1900 = vld [vmem:[%s13 + $0x538] sm:$0xff]
      %v1901 = vld [vmem:[%s13 + $0x540] sm:$0xff]
      %v1902 = vld [vmem:[%s13 + $0x548] sm:$0xff]
      %v1903 = vld [vmem:[%s13 + $0x550] sm:$0xff]
      %v1904 = vld [vmem:[%s13 + $0x558] sm:$0xff]
      %v1905 = vld [vmem:[%s13 + $0x560] sm:$0xff]
      %v1906 = vld [vmem:[%s13 + $0x568] sm:$0xff]
      %v1907 = vld [vmem:[%s13 + $0x570] sm:$0xff]
      %v1908 = vld [vmem:[%s13 + $0x578] sm:$0xff]
      %v1909 = vld [vmem:[%s13 + $0x580] sm:$0xff]
      %v1910 = vld [vmem:[%s13 + $0x588] sm:$0xff]
      %v1911 = vld [vmem:[%s13 + $0x590] sm:$0xff]
      %v1912 = vld [vmem:[%s13 + $0x598] sm:$0xff]
      %v1913 = vld [vmem:[%s13 + $0x5a0] sm:$0xff]
      %v1914 = vld [vmem:[%s13 + $0x5a8] sm:$0xff]
      %v1915 = vld [vmem:[%s13 + $0x5b0] sm:$0xff]
      %v1916 = vld [vmem:[%s13 + $0x5b8] sm:$0xff]
      %v1917 = vld [vmem:[%s13 + $0x5c0] sm:$0xff]
      %v1918 = vld [vmem:[%s13 + $0x5c8] sm:$0xff]
      %v1919 = vld [vmem:[%s13 + $0x5d0] sm:$0xff]
      %v1920 = vld [vmem:[%s13 + $0x5d8] sm:$0xff]
      %v1921 = vld [vmem:[%s13 + $0x5e0] sm:$0xff]
      %v1922 = vld [vmem:[%s13 + $0x5e8] sm:$0xff]
      %v1923 = vld [vmem:[%s13 + $0x5f0] sm:$0xff]
      %v1924 = vld [vmem:[%s13 + $0x5f8] sm:$0xff]
      %v1925 = vld [vmem:[%s13 + $0x600] sm:$0xff]
      %v1926 = vld [vmem:[%s13 + $0x608] sm:$0xff]
      %v1927 = vld [vmem:[%s13 + $0x610] sm:$0xff]
      %v1928 = vld [vmem:[%s13 + $0x618] sm:$0xff]
      %v1929 = vld [vmem:[%s13 + $0x620] sm:$0xff]
      %v1930 = vld [vmem:[%s13 + $0x628] sm:$0xff]
      %v1931 = vld [vmem:[%s13 + $0x630] sm:$0xff]
      %v1932 = vld [vmem:[%s13 + $0x638] sm:$0xff]
      %v1933 = vld [vmem:[%s13 + $0x640] sm:$0xff]
      %v1934 = vld [vmem:[%s13 + $0x648] sm:$0xff]
      %v1935 = vld [vmem:[%s13 + $0x650] sm:$0xff]
      %v1936 = vld [vmem:[%s13 + $0x658] sm:$0xff]
      %v1937 = vld [vmem:[%s13 + $0x660] sm:$0xff]
      %v1938 = vld [vmem:[%s13 + $0x668] sm:$0xff]
      %v1939 = vld [vmem:[%s13 + $0x670] sm:$0xff]
      %v1940 = vld [vmem:[%s13 + $0x678] sm:$0xff]
      %v1941 = vld [vmem:[%s13 + $0x680] sm:$0xff]
      %v1942 = vld [vmem:[%s13 + $0x688] sm:$0xff]
      %v1943 = vld [vmem:[%s13 + $0x690] sm:$0xff]
      %v1944 = vld [vmem:[%s13 + $0x698] sm:$0xff]
      %v1945 = vld [vmem:[%s13 + $0x6a0] sm:$0xff]
      %v1946 = vld [vmem:[%s13 + $0x6a8] sm:$0xff]
      %v1947 = vld [vmem:[%s13 + $0x6b0] sm:$0xff]
      %v1948 = vld [vmem:[%s13 + $0x6b8] sm:$0xff]
      %v1949 = vld [vmem:[%s13 + $0x6c0] sm:$0xff]
      %v1950 = vld [vmem:[%s13 + $0x6c8] sm:$0xff]
      %v1951 = vld [vmem:[%s13 + $0x6d0] sm:$0xff]
      %v1952 = vld [vmem:[%s13 + $0x6d8] sm:$0xff]
      %v1953 = vld [vmem:[%s13 + $0x6e0] sm:$0xff]
      %v1954 = vld [vmem:[%s13 + $0x6e8] sm:$0xff]
      %v1955 = vld [vmem:[%s13 + $0x6f0] sm:$0xff]
      %v1956 = vld [vmem:[%s13 + $0x6f8] sm:$0xff]
      %v1957 = vld [vmem:[%s13 + $0x700] sm:$0xff]
      %v1958 = vld [vmem:[%s13 + $0x708] sm:$0xff]
      %v1959 = vld [vmem:[%s13 + $0x710] sm:$0xff]
      %v1960 = vld [vmem:[%s13 + $0x718] sm:$0xff]
      %v1961 = vld [vmem:[%s13 + $0x720] sm:$0xff]
      %v1962 = vld [vmem:[%s13 + $0x728] sm:$0xff]
      %v1963 = vld [vmem:[%s13 + $0x730] sm:$0xff]
      %v1964 = vld [vmem:[%s13 + $0x738] sm:$0xff]
      %v1965 = vld [vmem:[%s13 + $0x740] sm:$0xff]
      %v1966 = vld [vmem:[%s13 + $0x748] sm:$0xff]
      %v1967 = vld [vmem:[%s13 + $0x750] sm:$0xff]
      %v1968 = vld [vmem:[%s13 + $0x758] sm:$0xff]
      %v1969 = vld [vmem:[%s13 + $0x760] sm:$0xff]
      %v1970 = vld [vmem:[%s13 + $0x768] sm:$0xff]
      %v1971 = vld [vmem:[%s13 + $0x770] sm:$0xff]
      %v1972 = vld [vmem:[%s13 + $0x778] sm:$0xff]
      %v1973 = vld [vmem:[%s13 + $0x780] sm:$0xff]
      %v1974 = vld [vmem:[%s13 + $0x788] sm:$0xff]
      %v1975 = vld [vmem:[%s13 + $0x790] sm:$0xff]
      %v1976 = vld [vmem:[%s13 + $0x798] sm:$0xff]
      %v1977 = vld [vmem:[%s13 + $0x7a0] sm:$0xff]
      %v1978 = vld [vmem:[%s13 + $0x7a8] sm:$0xff]
      %v1979 = vld [vmem:[%s13 + $0x7b0] sm:$0xff]
      %v1980 = vld [vmem:[%s13 + $0x7b8] sm:$0xff]
      %v1981 = vld [vmem:[%s13 + $0x7c0] sm:$0xff]
      %v1982 = vld [vmem:[%s13 + $0x7c8] sm:$0xff]
      %v1983 = vld [vmem:[%s13 + $0x7d0] sm:$0xff]
      %v1984 = vld [vmem:[%s13 + $0x7d8] sm:$0xff]
      %v1985 = vld [vmem:[%s13 + $0x7e0] sm:$0xff]
      %v1986 = vld [vmem:[%s13 + $0x7e8] sm:$0xff]
      %v1987 = vld [vmem:[%s13 + $0x7f0] sm:$0xff]
      %v1988 = vld [vmem:[%s13 + $0x7f8] sm:$0xff]
      %v1989 = vld [vmem:[%s14] sm:$0x1]
      %v1991 = vperm.slane %v1989, 0
      %1993 = vmatpush.msra.mxu0 %v1748
      %1994 = vmatpush.msra.mxu0 %v1747
      %1995 = vmatpush.msra.mxu0 %v1746
      %1996 = vmatpush.msra.mxu0 %v1745
      %1997 = vmatpush.msra.mxu0 %v1744
      %1998 = vmatpush.msra.mxu0 %v1743
      %1999 = vmatpush.msra.mxu0 %v1742
      %2000 = vmatpush.msra.mxu0 %v1741
      %2001 = vmatpush.msra.mxu0 %v1740
      %2002 = vmatpush.msra.mxu0 %v1739
      %2003 = vmatpush.msra.mxu0 %v1738
      %2004 = vmatpush.msra.mxu0 %v1737
      %2005 = vmatpush.msra.mxu0 %v1736
      %2006 = vmatpush.msra.mxu0 %v1735
      %2007 = vmatpush.msra.mxu0 %v1734
      %2008 = vmatpush.msra.mxu0 %v1733
      %2009 = vmatmul.f32.gmra.mxu0 %v1717
      %v2010 = vpop.f32.mrf.mxu0
      %v2011 = vadd.f32 %v1991, %v2010
      %2012 = vdwg.mxu0
      %2013 = vmatpush.msra.mxu0 %v1764
      %2014 = vmatpush.msra.mxu0 %v1763
      %2015 = vmatpush.msra.mxu0 %v1762
      %2016 = vmatpush.msra.mxu0 %v1761
      %2017 = vmatpush.msra.mxu0 %v1760
      %2018 = vmatpush.msra.mxu0 %v1759
      %2019 = vmatpush.msra.mxu0 %v1758
      %2020 = vmatpush.msra.mxu0 %v1757
      %2021 = vmatpush.msra.mxu0 %v1756
      %2022 = vmatpush.msra.mxu0 %v1755
      %2023 = vmatpush.msra.mxu0 %v1754
      %2024 = vmatpush.msra.mxu0 %v1753
      %2025 = vmatpush.msra.mxu0 %v1752
      %2026 = vmatpush.msra.mxu0 %v1751
      %2027 = vmatpush.msra.mxu0 %v1750
      %2028 = vmatpush.msra.mxu0 %v1749
      %2029 = vmatmul.f32.gmra.mxu0 %v1718
      %v2030 = vpop.f32.mrf.mxu0
      %v2031 = vadd.f32 %v2011, %v2030
      %2032 = vdwg.mxu0
      %2033 = vmatpush.msra.mxu0 %v1780
      %2034 = vmatpush.msra.mxu0 %v1779
      %2035 = vmatpush.msra.mxu0 %v1778
      %2036 = vmatpush.msra.mxu0 %v1777
      %2037 = vmatpush.msra.mxu0 %v1776
      %2038 = vmatpush.msra.mxu0 %v1775
      %2039 = vmatpush.msra.mxu0 %v1774
      %2040 = vmatpush.msra.mxu0 %v1773
      %2041 = vmatpush.msra.mxu0 %v1772
      %2042 = vmatpush.msra.mxu0 %v1771
      %2043 = vmatpush.msra.mxu0 %v1770
      %2044 = vmatpush.msra.mxu0 %v1769
      %2045 = vmatpush.msra.mxu0 %v1768
      %2046 = vmatpush.msra.mxu0 %v1767
      %2047 = vmatpush.msra.mxu0 %v1766
      %2048 = vmatpush.msra.mxu0 %v1765
      %2049 = vmatmul.f32.gmra.mxu0 %v1719
      %v2050 = vpop.f32.mrf.mxu0
      %v2051 = vadd.f32 %v2031, %v2050
      %2052 = vdwg.mxu0
      %2053 = vmatpush.msra.mxu0 %v1796
      %2054 = vmatpush.msra.mxu0 %v1795
      %2055 = vmatpush.msra.mxu0 %v1794
      %2056 = vmatpush.msra.mxu0 %v1793
      %2057 = vmatpush.msra.mxu0 %v1792
      %2058 = vmatpush.msra.mxu0 %v1791
      %2059 = vmatpush.msra.mxu0 %v1790
      %2060 = vmatpush.msra.mxu0 %v1789
      %2061 = vmatpush.msra.mxu0 %v1788
      %2062 = vmatpush.msra.mxu0 %v1787
      %2063 = vmatpush.msra.mxu0 %v1786
      %2064 = vmatpush.msra.mxu0 %v1785
      %2065 = vmatpush.msra.mxu0 %v1784
      %2066 = vmatpush.msra.mxu0 %v1783
      %2067 = vmatpush.msra.mxu0 %v1782
      %2068 = vmatpush.msra.mxu0 %v1781
      %2069 = vmatmul.f32.gmra.mxu0 %v1720
      %v2070 = vpop.f32.mrf.mxu0
      %v2071 = vadd.f32 %v2051, %v2070
      %2072 = vdwg.mxu0
      %2073 = vmatpush.msra.mxu0 %v1812
      %2074 = vmatpush.msra.mxu0 %v1811
      %2075 = vmatpush.msra.mxu0 %v1810
      %2076 = vmatpush.msra.mxu0 %v1809
      %2077 = vmatpush.msra.mxu0 %v1808
      %2078 = vmatpush.msra.mxu0 %v1807
      %2079 = vmatpush.msra.mxu0 %v1806
      %2080 = vmatpush.msra.mxu0 %v1805
      %2081 = vmatpush.msra.mxu0 %v1804
      %2082 = vmatpush.msra.mxu0 %v1803
      %2083 = vmatpush.msra.mxu0 %v1802
      %2084 = vmatpush.msra.mxu0 %v1801
      %2085 = vmatpush.msra.mxu0 %v1800
      %2086 = vmatpush.msra.mxu0 %v1799
      %2087 = vmatpush.msra.mxu0 %v1798
      %2088 = vmatpush.msra.mxu0 %v1797
      %2089 = vmatmul.f32.gmra.mxu0 %v1721
      %v2090 = vpop.f32.mrf.mxu0
      %v2091 = vadd.f32 %v2071, %v2090
      %2092 = vdwg.mxu0
      %2093 = vmatpush.msra.mxu0 %v1828
      %2094 = vmatpush.msra.mxu0 %v1827
      %2095 = vmatpush.msra.mxu0 %v1826
      %2096 = vmatpush.msra.mxu0 %v1825
      %2097 = vmatpush.msra.mxu0 %v1824
      %2098 = vmatpush.msra.mxu0 %v1823
      %2099 = vmatpush.msra.mxu0 %v1822
      %2100 = vmatpush.msra.mxu0 %v1821
      %2101 = vmatpush.msra.mxu0 %v1820
      %2102 = vmatpush.msra.mxu0 %v1819
      %2103 = vmatpush.msra.mxu0 %v1818
      %2104 = vmatpush.msra.mxu0 %v1817
      %2105 = vmatpush.msra.mxu0 %v1816
      %2106 = vmatpush.msra.mxu0 %v1815
      %2107 = vmatpush.msra.mxu0 %v1814
      %2108 = vmatpush.msra.mxu0 %v1813
      %2109 = vmatmul.f32.gmra.mxu0 %v1722
      %v2110 = vpop.f32.mrf.mxu0
      %v2111 = vadd.f32 %v2091, %v2110
      %2112 = vdwg.mxu0
      %2113 = vmatpush.msra.mxu0 %v1844
      %2114 = vmatpush.msra.mxu0 %v1843
      %2115 = vmatpush.msra.mxu0 %v1842
      %2116 = vmatpush.msra.mxu0 %v1841
      %2117 = vmatpush.msra.mxu0 %v1840
      %2118 = vmatpush.msra.mxu0 %v1839
      %2119 = vmatpush.msra.mxu0 %v1838
      %2120 = vmatpush.msra.mxu0 %v1837
      %2121 = vmatpush.msra.mxu0 %v1836
      %2122 = vmatpush.msra.mxu0 %v1835
      %2123 = vmatpush.msra.mxu0 %v1834
      %2124 = vmatpush.msra.mxu0 %v1833
      %2125 = vmatpush.msra.mxu0 %v1832
      %2126 = vmatpush.msra.mxu0 %v1831
      %2127 = vmatpush.msra.mxu0 %v1830
      %2128 = vmatpush.msra.mxu0 %v1829
      %2129 = vmatmul.f32.gmra.mxu0 %v1723
      %v2130 = vpop.f32.mrf.mxu0
      %v2131 = vadd.f32 %v2111, %v2130
      %2132 = vdwg.mxu0
      %2133 = vmatpush.msra.mxu0 %v1860
      %2134 = vmatpush.msra.mxu0 %v1859
      %2135 = vmatpush.msra.mxu0 %v1858
      %2136 = vmatpush.msra.mxu0 %v1857
      %2137 = vmatpush.msra.mxu0 %v1856
      %2138 = vmatpush.msra.mxu0 %v1855
      %2139 = vmatpush.msra.mxu0 %v1854
      %2140 = vmatpush.msra.mxu0 %v1853
      %2141 = vmatpush.msra.mxu0 %v1852
      %2142 = vmatpush.msra.mxu0 %v1851
      %2143 = vmatpush.msra.mxu0 %v1850
      %2144 = vmatpush.msra.mxu0 %v1849
      %2145 = vmatpush.msra.mxu0 %v1848
      %2146 = vmatpush.msra.mxu0 %v1847
      %2147 = vmatpush.msra.mxu0 %v1846
      %2148 = vmatpush.msra.mxu0 %v1845
      %2149 = vmatmul.f32.gmra.mxu0 %v1724
      %v2150 = vpop.f32.mrf.mxu0
      %v2151 = vadd.f32 %v2131, %v2150
      %2152 = vdwg.mxu0
      %2153 = vmatpush.msra.mxu0 %v1876
      %2154 = vmatpush.msra.mxu0 %v1875
      %2155 = vmatpush.msra.mxu0 %v1874
      %2156 = vmatpush.msra.mxu0 %v1873
      %2157 = vmatpush.msra.mxu0 %v1872
      %2158 = vmatpush.msra.mxu0 %v1871
      %2159 = vmatpush.msra.mxu0 %v1870
      %2160 = vmatpush.msra.mxu0 %v1869
      %2161 = vmatpush.msra.mxu0 %v1868
      %2162 = vmatpush.msra.mxu0 %v1867
      %2163 = vmatpush.msra.mxu0 %v1866
      %2164 = vmatpush.msra.mxu0 %v1865
      %2165 = vmatpush.msra.mxu0 %v1864
      %2166 = vmatpush.msra.mxu0 %v1863
      %2167 = vmatpush.msra.mxu0 %v1862
      %2168 = vmatpush.msra.mxu0 %v1861
      %2169 = vmatmul.f32.gmra.mxu0 %v1725
      %v2170 = vpop.f32.mrf.mxu0
      %v2171 = vadd.f32 %v2151, %v2170
      %2172 = vdwg.mxu0
      %2173 = vmatpush.msra.mxu0 %v1892
      %2174 = vmatpush.msra.mxu0 %v1891
      %2175 = vmatpush.msra.mxu0 %v1890
      %2176 = vmatpush.msra.mxu0 %v1889
      %2177 = vmatpush.msra.mxu0 %v1888
      %2178 = vmatpush.msra.mxu0 %v1887
      %2179 = vmatpush.msra.mxu0 %v1886
      %2180 = vmatpush.msra.mxu0 %v1885
      %2181 = vmatpush.msra.mxu0 %v1884
      %2182 = vmatpush.msra.mxu0 %v1883
      %2183 = vmatpush.msra.mxu0 %v1882
      %2184 = vmatpush.msra.mxu0 %v1881
      %2185 = vmatpush.msra.mxu0 %v1880
      %2186 = vmatpush.msra.mxu0 %v1879
      %2187 = vmatpush.msra.mxu0 %v1878
      %2188 = vmatpush.msra.mxu0 %v1877
      %2189 = vmatmul.f32.gmra.mxu0 %v1726
      %v2190 = vpop.f32.mrf.mxu0
      %v2191 = vadd.f32 %v2171, %v2190
      %2192 = vdwg.mxu0
      %2193 = vmatpush.msra.mxu0 %v1908
      %2194 = vmatpush.msra.mxu0 %v1907
      %2195 = vmatpush.msra.mxu0 %v1906
      %2196 = vmatpush.msra.mxu0 %v1905
      %2197 = vmatpush.msra.mxu0 %v1904
      %2198 = vmatpush.msra.mxu0 %v1903
      %2199 = vmatpush.msra.mxu0 %v1902
      %2200 = vmatpush.msra.mxu0 %v1901
      %2201 = vmatpush.msra.mxu0 %v1900
      %2202 = vmatpush.msra.mxu0 %v1899
      %2203 = vmatpush.msra.mxu0 %v1898
      %2204 = vmatpush.msra.mxu0 %v1897
      %2205 = vmatpush.msra.mxu0 %v1896
      %2206 = vmatpush.msra.mxu0 %v1895
      %2207 = vmatpush.msra.mxu0 %v1894
      %2208 = vmatpush.msra.mxu0 %v1893
      %2209 = vmatmul.f32.gmra.mxu0 %v1727
      %v2210 = vpop.f32.mrf.mxu0
      %v2211 = vadd.f32 %v2191, %v2210
      %2212 = vdwg.mxu0
      %2213 = vmatpush.msra.mxu0 %v1924
      %2214 = vmatpush.msra.mxu0 %v1923
      %2215 = vmatpush.msra.mxu0 %v1922
      %2216 = vmatpush.msra.mxu0 %v1921
      %2217 = vmatpush.msra.mxu0 %v1920
      %2218 = vmatpush.msra.mxu0 %v1919
      %2219 = vmatpush.msra.mxu0 %v1918
      %2220 = vmatpush.msra.mxu0 %v1917
      %2221 = vmatpush.msra.mxu0 %v1916
      %2222 = vmatpush.msra.mxu0 %v1915
      %2223 = vmatpush.msra.mxu0 %v1914
      %2224 = vmatpush.msra.mxu0 %v1913
      %2225 = vmatpush.msra.mxu0 %v1912
      %2226 = vmatpush.msra.mxu0 %v1911
      %2227 = vmatpush.msra.mxu0 %v1910
      %2228 = vmatpush.msra.mxu0 %v1909
      %2229 = vmatmul.f32.gmra.mxu0 %v1728
      %v2230 = vpop.f32.mrf.mxu0
      %v2231 = vadd.f32 %v2211, %v2230
      %2232 = vdwg.mxu0
      %2233 = vmatpush.msra.mxu0 %v1940
      %2234 = vmatpush.msra.mxu0 %v1939
      %2235 = vmatpush.msra.mxu0 %v1938
      %2236 = vmatpush.msra.mxu0 %v1937
      %2237 = vmatpush.msra.mxu0 %v1936
      %2238 = vmatpush.msra.mxu0 %v1935
      %2239 = vmatpush.msra.mxu0 %v1934
      %2240 = vmatpush.msra.mxu0 %v1933
      %2241 = vmatpush.msra.mxu0 %v1932
      %2242 = vmatpush.msra.mxu0 %v1931
      %2243 = vmatpush.msra.mxu0 %v1930
      %2244 = vmatpush.msra.mxu0 %v1929
      %2245 = vmatpush.msra.mxu0 %v1928
      %2246 = vmatpush.msra.mxu0 %v1927
      %2247 = vmatpush.msra.mxu0 %v1926
      %2248 = vmatpush.msra.mxu0 %v1925
      %2249 = vmatmul.f32.gmra.mxu0 %v1729
      %v2250 = vpop.f32.mrf.mxu0
      %v2251 = vadd.f32 %v2231, %v2250
      %2252 = vdwg.mxu0
      %2253 = vmatpush.msra.mxu0 %v1956
      %2254 = vmatpush.msra.mxu0 %v1955
      %2255 = vmatpush.msra.mxu0 %v1954
      %2256 = vmatpush.msra.mxu0 %v1953
      %2257 = vmatpush.msra.mxu0 %v1952
      %2258 = vmatpush.msra.mxu0 %v1951
      %2259 = vmatpush.msra.mxu0 %v1950
      %2260 = vmatpush.msra.mxu0 %v1949
      %2261 = vmatpush.msra.mxu0 %v1948
      %2262 = vmatpush.msra.mxu0 %v1947
      %2263 = vmatpush.msra.mxu0 %v1946
      %2264 = vmatpush.msra.mxu0 %v1945
      %2265 = vmatpush.msra.mxu0 %v1944
      %2266 = vmatpush.msra.mxu0 %v1943
      %2267 = vmatpush.msra.mxu0 %v1942
      %2268 = vmatpush.msra.mxu0 %v1941
      %2269 = vmatmul.f32.gmra.mxu0 %v1730
      %v2270 = vpop.f32.mrf.mxu0
      %v2271 = vadd.f32 %v2251, %v2270
      %2272 = vdwg.mxu0
      %2273 = vmatpush.msra.mxu0 %v1972
      %2274 = vmatpush.msra.mxu0 %v1971
      %2275 = vmatpush.msra.mxu0 %v1970
      %2276 = vmatpush.msra.mxu0 %v1969
      %2277 = vmatpush.msra.mxu0 %v1968
      %2278 = vmatpush.msra.mxu0 %v1967
      %2279 = vmatpush.msra.mxu0 %v1966
      %2280 = vmatpush.msra.mxu0 %v1965
      %2281 = vmatpush.msra.mxu0 %v1964
      %2282 = vmatpush.msra.mxu0 %v1963
      %2283 = vmatpush.msra.mxu0 %v1962
      %2284 = vmatpush.msra.mxu0 %v1961
      %2285 = vmatpush.msra.mxu0 %v1960
      %2286 = vmatpush.msra.mxu0 %v1959
      %2287 = vmatpush.msra.mxu0 %v1958
      %2288 = vmatpush.msra.mxu0 %v1957
      %2289 = vmatmul.f32.gmra.mxu0 %v1731
      %v2290 = vpop.f32.mrf.mxu0
      %v2291 = vadd.f32 %v2271, %v2290
      %2292 = vdwg.mxu0
      %2293 = vmatpush.msra.mxu0 %v1988
      %2294 = vmatpush.msra.mxu0 %v1987
      %2295 = vmatpush.msra.mxu0 %v1986
      %2296 = vmatpush.msra.mxu0 %v1985
      %2297 = vmatpush.msra.mxu0 %v1984
      %2298 = vmatpush.msra.mxu0 %v1983
      %2299 = vmatpush.msra.mxu0 %v1982
      %2300 = vmatpush.msra.mxu0 %v1981
      %2301 = vmatpush.msra.mxu0 %v1980
      %2302 = vmatpush.msra.mxu0 %v1979
      %2303 = vmatpush.msra.mxu0 %v1978
      %2304 = vmatpush.msra.mxu0 %v1977
      %2305 = vmatpush.msra.mxu0 %v1976
      %2306 = vmatpush.msra.mxu0 %v1975
      %2307 = vmatpush.msra.mxu0 %v1974
      %2308 = vmatpush.msra.mxu0 %v1973
      %2309 = vmatmul.f32.gmra.mxu0 %v1732
      %v2310 = vpop.f32.mrf.mxu0
      %v2311 = vadd.f32 %v2291, %v2310
      %2312 = vdwg.mxu0
      %v2313 = vadd.f32 %v1293, %v2311
      %v2314 = vld [vmem:[%s15] sm:$0x1]
      %v2315 = vld [vmem:[%s16] sm:$0x1]
      %v2316 = vsel %vm553, %v2313, 0.0
      %2317 = vadd.xlane.f32.xlu0 %v2316
      %v2318 = vpop.xlane.xlu0 %2317
      %v2319 = vmul.f32 %v2318, %v1266
      %v2320 = vsub.f32 %v2313, %v2319
      %v2321 = vmul.f32 %v2320, %v2320
      %v2322 = vsel %vm553, %v2321, 0.0
      %2323 = vadd.xlane.f32.xlu0 %v2322
      %v2324 = vpop.xlane.xlu0 %2323
      %v2325 = vmul.f32 %v2324, %v1266
      %v2326 = vadd.f32 %v2325, 1e-05
      %v2327 = vrsqrt.pop %v2326
      %v2328 = vmul.f32 %v2327, %v2326
      %v2329 = vmul.f32 %v2328, %v2327
      %v2330 = vmul.f32 0.5, %v2329
      %v2331 = vsub.f32 1.5, %v2330
      %v2332 = vmul.f32 %v2327, %v2331
      %vm2333 = vweird.f32 %v2326
      %vm2334 = vweird.f32 %v2327
      %vm2335 = vmor %vm2333, %vm2334
      %v2336 = vsel %vm2335, %v2327, %v2332
      %v2337 = vmul.f32 %v2320, %v2336
      %v2339 = vperm.slane %v2314, 0
      %v2341 = vmul.f32 %v2337, %v2339
      %v2343 = vperm.slane %v2315, 0
      %v2345 = vadd.f32 %v2341, %v2343
      %2346 = vst.msk [vmem:[%s543] sm:$0xff] %vm553, %v2345
      %p2347 = scmp.lt.s32.totalorder %s28, 1
      %s2348 = scalar_select %p2347, %s28, 1
      %s2349 = smul.addr %s2348, 8
      %s2350 = scalar_lea.vmem %s17, %s2349
      // Predicated region
      $region89: #{encoder_pca_forward.5} parent=87 // pred_check
        %p2351 = pneg %p408
      $region90: #{encoder_pca_forward.5} parent=87 // pred_check_branch
        %2353 = sbr.rel (%p2351) target = $region92
      $region91: #{encoder_pca_forward.5} parent=87 // pred_region
        _
      $region92: #{encoder_pca_forward.5} parent=87 // pred_fallthru
        _
    $region88: #{encoder_pca_forward.5} parent=5 // pred_fallthru
      _
    %p2354 = scmp.le.s32.totalorder 2, %s23
    // Predicated region
    $region93: #{encoder_pca_forward.5} parent=5 // pred_check
      %p2355 = pneg %p2354
    $region94: #{encoder_pca_forward.5} parent=5 // pred_check_branch
      %2357 = sbr.rel (%p2355) target = $region96
    $region95: #{encoder_pca_forward.5} parent=5 // pred_region
      %s2358 = ssub.s32 %s23, 2
      // Predicated region
      $region97: #{encoder_pca_forward.5} parent=95 // pred_check
        %p2359 = pneg %p414
      $region98: #{encoder_pca_forward.5} parent=95 // pred_check_branch
        %2361 = sbr.rel (%p2359) target = $region100
      $region99: #{encoder_pca_forward.5} parent=95 // pred_region
        %p2362 = scmp.lt.s32.totalorder %s29, 1
        %s2363 = scalar_select %p2362, %s29, 1
        %s2364 = smul.addr %s2363, 8
        %s2365 = scalar_lea.vmem %s17, %s2364
      $region100: #{encoder_pca_forward.5} parent=95 // pred_fallthru
        _
    $region96: #{encoder_pca_forward.5} parent=5 // pred_fallthru
      _
  $region6: #{encoder_pca_forward.5} parent=0 // loop_footer
    %s27 = sadd.s32 1, %s23
  $region7: #{encoder_pca_forward.5} parent=0 // loop_footer_branch
    %22 = sbr.rel target = $region3
  $region8: #{encoder_pca_forward.5} parent=0 // loop_exit
    _

</llo_original>
